<compile_context>
chip_gen: v7x
topology: tpu7x:2x2x1
jax: 0.10.0
libtpu: 0.0.40
codegen_flags: <defaults>
</compile_context>

<pallas_src>
import jax
import jax.numpy as jnp
import numpy as np
from jax import lax
from jax.experimental import pallas as pl
from jax.experimental.pallas import tpu as pltpu


# ----------------------------- fused Pallas kernel ---------------------------

def _down_fused_kernel(x_ref, w1_ref, b1_ref, w2_ref, b2_ref, o_ref,
                       pad1_ref, pad2_ref):
    # x_ref : (nb, H, W, Cin)        nb batch elements, NHWC, un-pooled
    # w1_ref: (9*Cin,  Cmid)         conv1 weights (tap-major), BN1 folded in
    # b1_ref: (1, Cmid)              conv1 bias + BN1 folded (f32)
    # w2_ref: (9*Cmid, Cout)         conv2 weights, BN2 folded in
    # b2_ref: (1, Cout)
    # o_ref : (nb*Hp*Wp, Cout)       flat output tile (f32)
    # pad1_ref / pad2_ref : VMEM scratch (nb, Hp+2, Wp+2, Cin/Cmid)
    nb, H, W, Cin = x_ref.shape
    Cmid = pad2_ref.shape[3]
    Hp, Wp = H // 2, W // 2
    M = nb * Hp * Wp

    # ---- MaxPool2d(2): four strided loads + three VPU maxima ---------------
    p00 = x_ref[:, pl.ds(0, Hp, stride=2), pl.ds(0, Wp, stride=2), :]
    p01 = x_ref[:, pl.ds(0, Hp, stride=2), pl.ds(1, Wp, stride=2), :]
    p10 = x_ref[:, pl.ds(1, Hp, stride=2), pl.ds(0, Wp, stride=2), :]
    p11 = x_ref[:, pl.ds(1, Hp, stride=2), pl.ds(1, Wp, stride=2), :]
    pooled = jnp.maximum(jnp.maximum(p00, p01), jnp.maximum(p10, p11))

    def zero_halo_ring(pad_ref, c):
        # Only the 1-element halo ring needs zeros; the interior is fully
        # rewritten each step. Done every step => safe under megacore sharding.
        zrow = jnp.zeros((nb, 1, Wp + 2, c), pad_ref.dtype)
        zcol = jnp.zeros((nb, Hp + 2, 1, c), pad_ref.dtype)
        pad_ref[:, 0:1, :, :] = zrow
        pad_ref[:, Hp + 1:Hp + 2, :, :] = zrow
        pad_ref[:, :, 0:1, :] = zcol
        pad_ref[:, :, Wp + 1:Wp + 2, :] = zcol

    def conv3x3(pad_ref, w_ref, b_ref, cin):
        # per-tap accumulation: 9 small MXU matmuls into one f32 accumulator
        cout = w_ref.shape[1]
        acc = jnp.zeros((M, cout), jnp.float32)
        for ky in range(3):
            for kx in range(3):
                tap = pad_ref[:, ky:ky + Hp, kx:kx + Wp, :]       # (nb,Hp,Wp,cin)
                k = 3 * ky + kx
                acc = acc + jnp.dot(tap.reshape(M, cin),
                                    w_ref[pl.ds(k * cin, cin), :],
                                    preferred_element_type=jnp.float32)
        return jnp.maximum(acc + b_ref[...], 0.0)                  # (M, cout) f32

    # ---- conv1 + BN1(folded) + ReLU -----------------------------------------
    zero_halo_ring(pad1_ref, Cin)
    pad1_ref[:, 1:Hp + 1, 1:Wp + 1, :] = pooled.astype(pad1_ref.dtype)
    h1 = conv3x3(pad1_ref, w1_ref, b1_ref, Cin)                    # (M, Cmid)

    # ---- conv1 activation stays on-chip: pad it in VMEM for conv2 -----------
    zero_halo_ring(pad2_ref, Cmid)
    pad2_ref[:, 1:Hp + 1, 1:Wp + 1, :] = (
        h1.reshape(nb, Hp, Wp, Cmid).astype(pad2_ref.dtype))

    # ---- conv2 + BN2(folded) + ReLU ------------------------------------------
    y = conv3x3(pad2_ref, w2_ref, b2_ref, Cmid)                     # (M, Cout)
    o_ref[...] = y.astype(o_ref.dtype)                              # flat store


# ----------------------------- wrapper ----------------------------------------

def _fold_bn_into_conv(w_hwio, conv_b, gamma, beta, mean, var, eps, dtype):
    # eval-mode BN folded into the conv: w *= s (per out-channel),
    # b = (conv_b - mean) * s + beta, with s = gamma / sqrt(var + eps)
    scale = gamma / jnp.sqrt(var + eps)
    w_f = w_hwio * scale                                   # broadcast over Cout
    b_f = (conv_b - mean) * scale + beta
    kh, kw, cin, cout = w_hwio.shape
    return (w_f.reshape(kh * kw * cin, cout).astype(dtype),
            b_f.reshape(1, cout).astype(jnp.float32))


def _pick_batch_tile(n, hp, wp, target_m=256):
    # largest divisor of n with nb*Hp*Wp <= target_m, keeping >= 2 grid steps
    # when possible (v7x has 2 TensorCores).
    cap = max(1, target_m // max(1, hp * wp))
    divs = [d for d in range(1, n + 1) if n % d == 0 and d <= cap]
    multi = [d for d in divs if n // d >= 2]
    if multi:
        return max(multi)
    return max(divs) if divs else 1


def down_forward(x_nchw, params, eps=1e-5, compute_dtype=jnp.float32):
    # x_nchw: (N, C_in, H, W) -> (N, C_out, H//2, W//2)
    N, Cin, H, W = x_nchw.shape
    assert H % 2 == 0 and W % 2 == 0, "MaxPool2d(2) requires even H and W"
    Hp, Wp = H // 2, W // 2

    w1m, b1 = _fold_bn_into_conv(params["w1"], params["b1"], params["g1"],
                                 params["be1"], params["m1"], params["v1"],
                                 eps, compute_dtype)
    w2m, b2 = _fold_bn_into_conv(params["w2"], params["b2"], params["g2"],
                                 params["be2"], params["m2"], params["v2"],
                                 eps, compute_dtype)
    Cmid = w1m.shape[1]
    Cout = w2m.shape[1]

    nb = _pick_batch_tile(N, Hp, Wp)
    grid = (N // nb,)

    # NOTE: an NHWC-native entry point would drop these two HBM transposes.
    x_nhwc = jnp.transpose(x_nchw, (0, 2, 3, 1)).astype(compute_dtype)

    # --- VMEM / cost estimates ------------------------------------------------
    itemsize = jnp.dtype(compute_dtype).itemsize
    m_blk = nb * Hp * Wp
    in_blk = nb * H * W * Cin * itemsize
    out_blk = m_blk * Cout * 4
    wt_bytes = (9 * Cin * Cmid + 9 * Cmid * Cout) * itemsize + (Cmid + Cout) * 4
    scr_bytes = nb * (Hp + 2) * (Wp + 2) * (Cin + Cmid) * itemsize
    tmp_bytes = 6 * m_blk * max(Cin, Cmid, Cout) * 4
    vmem_est = 2 * (in_blk + out_blk) + 2 * wt_bytes + scr_bytes + tmp_bytes
    vmem_limit = int(min(max(2 * vmem_est, 32 << 20), 64 << 20))

    flops = 2 * N * Hp * Wp * 9 * (Cin * Cmid + Cmid * Cout)
    bytes_accessed = (N * H * W * Cin * itemsize + N * Hp * Wp * Cout * 4
                      + wt_bytes)

    out = pl.pallas_call(
        _down_fused_kernel,
        out_shape=jax.ShapeDtypeStruct((N * Hp * Wp, Cout), jnp.float32),
        grid_spec=pltpu.PrefetchScalarGridSpec(
            num_scalar_prefetch=0,
            grid=grid,
            in_specs=[
                pl.BlockSpec((nb, H, W, Cin), lambda n: (n, 0, 0, 0)),
                pl.BlockSpec((9 * Cin, Cmid), lambda n: (0, 0)),
                pl.BlockSpec((1, Cmid), lambda n: (0, 0)),
                pl.BlockSpec((9 * Cmid, Cout), lambda n: (0, 0)),
                pl.BlockSpec((1, Cout), lambda n: (0, 0)),
            ],
            out_specs=pl.BlockSpec((nb * Hp * Wp, Cout), lambda n: (n, 0)),
            scratch_shapes=[
                pltpu.VMEM((nb, Hp + 2, Wp + 2, Cin), compute_dtype),
                pltpu.VMEM((nb, Hp + 2, Wp + 2, Cmid), compute_dtype),
            ],
        ),
        compiler_params=pltpu.CompilerParams(
            dimension_semantics=("parallel",),      # v7x: shard batch over 2 TCs
            vmem_limit_bytes=vmem_limit),
        cost_estimate=pl.CostEstimate(flops=int(flops), transcendentals=0,
                                      bytes_accessed=int(bytes_accessed)),
    )(x_nhwc, w1m, b1, w2m, b2)

    out = out.reshape(N, Hp, Wp, Cout)
    return jnp.transpose(out, (0, 3, 1, 2)).astype(x_nchw.dtype)


# ----------------------------- pure-JAX reference ------------------------------

def ref_forward(x_nchw, params, eps=1e-5):
    x = jnp.transpose(x_nchw, (0, 2, 3, 1))
    x = jnp.maximum(jnp.maximum(x[:, 0::2, 0::2], x[:, 0::2, 1::2]),
                    jnp.maximum(x[:, 1::2, 0::2], x[:, 1::2, 1::2]))
    dn = ("NHWC", "HWIO", "NHWC")

    def bn(z, conv_b, g, be, m, v):
        s = g / jnp.sqrt(v + eps)
        return (z + conv_b - m) * s + be

    x = lax.conv_general_dilated(x, params["w1"], (1, 1), "SAME",
                                 dimension_numbers=dn)
    x = jnp.maximum(bn(x, params["b1"], params["g1"], params["be1"],
                       params["m1"], params["v1"]), 0.0)
    x = lax.conv_general_dilated(x, params["w2"], (1, 1), "SAME",
                                 dimension_numbers=dn)
    x = jnp.maximum(bn(x, params["b2"], params["g2"], params["be2"],
                       params["m2"], params["v2"]), 0.0)
    return jnp.transpose(x, (0, 3, 1, 2))


# ----------------------------- main ---------------------------------------------

if __name__ == "__main__":
    N, C_IN, C_OUT, H, W = 2, 4, 8, 16, 16
    key = jax.random.PRNGKey(0)
    ks = jax.random.split(key, 12)

    # deterministic parameters (PyTorch Conv2d weight OIHW -> HWIO)
    w1_oihw = 0.1 * jax.random.normal(ks[0], (C_OUT, C_IN, 3, 3), jnp.float32)
    w2_oihw = 0.1 * jax.random.normal(ks[1], (C_OUT, C_OUT, 3, 3), jnp.float32)
    params = {
        "w1": jnp.transpose(w1_oihw, (2, 3, 1, 0)),     # (3,3,Cin,Cout)
        "b1": 0.05 * jax.random.normal(ks[2], (C_OUT,), jnp.float32),
        "g1": 0.5 + jax.random.uniform(ks[3], (C_OUT,), jnp.float32),
        "be1": 0.05 * jax.random.normal(ks[4], (C_OUT,), jnp.float32),
        "m1": 0.05 * jax.random.normal(ks[5], (C_OUT,), jnp.float32),
        "v1": 0.5 + jax.random.uniform(ks[6], (C_OUT,), jnp.float32),
        "w2": jnp.transpose(w2_oihw, (2, 3, 1, 0)),     # (3,3,Cout,Cout)
        "b2": 0.05 * jax.random.normal(ks[7], (C_OUT,), jnp.float32),
        "g2": 0.5 + jax.random.uniform(ks[8], (C_OUT,), jnp.float32),
        "be2": 0.05 * jax.random.normal(ks[9], (C_OUT,), jnp.float32),
        "m2": 0.05 * jax.random.normal(ks[10], (C_OUT,), jnp.float32),
        "v2": 0.5 + jax.random.uniform(ks[11], (C_OUT,), jnp.float32),
    }

    x = jax.random.normal(jax.random.PRNGKey(42), (N, C_IN, H, W), jnp.float32)

    out = jax.jit(down_forward)(x, params)
    out = jax.block_until_ready(out)

    ref = jax.block_until_ready(ref_forward(x, params))
    assert out.shape == (N, C_OUT, H // 2, W // 2), out.shape
    np.testing.assert_allclose(np.asarray(out), np.asarray(ref),
                               rtol=1e-4, atol=1e-4)
    print("KERNEL_OK")
</pallas_src>

<mosaic_0001>
module attributes {stable_mosaic.version = 11 : i64} {
  func.func @_down_fused_kernel(%arg0: i32, %arg1: memref<1x16x16x4xf32, #tpu.memory_space<vmem>>, %arg2: memref<36x8xf32, #tpu.memory_space<vmem>>, %arg3: memref<1x8xf32, #tpu.memory_space<vmem>>, %arg4: memref<72x8xf32, #tpu.memory_space<vmem>>, %arg5: memref<1x8xf32, #tpu.memory_space<vmem>>, %arg6: memref<64x8xf32, #tpu.memory_space<vmem>>, %arg7: memref<1x10x10x4xf32, #tpu.memory_space<vmem>>, %arg8: memref<1x10x10x8xf32, #tpu.memory_space<vmem>>) attributes {dimension_semantics = [#tpu.dimension_semantics<parallel>], iteration_bounds = array<i64: 2>, scalar_prefetch = 0 : i64, scratch_operands = 2 : i64, tpu.core_type = #tpu.core_type<tc>, window_params = [{transform_indices = @transform_0, window_bounds = array<i64: 1, 16, 16, 4>}, {pipeline_mode = #tpu.pipeline_mode<synchronous>, transform_indices = @transform_1, window_bounds = array<i64: 36, 8>}, {pipeline_mode = #tpu.pipeline_mode<synchronous>, transform_indices = @transform_2, window_bounds = array<i64: 1, 8>}, {pipeline_mode = #tpu.pipeline_mode<synchronous>, transform_indices = @transform_3, window_bounds = array<i64: 72, 8>}, {pipeline_mode = #tpu.pipeline_mode<synchronous>, transform_indices = @transform_4, window_bounds = array<i64: 1, 8>}, {transform_indices = @transform_5, window_bounds = array<i64: 64, 8>}]} {
    %c0 = arith.constant 0 : index
    %c0_0 = arith.constant 0 : index
    %c0_1 = arith.constant 0 : index
    %c0_2 = arith.constant 0 : index
    %0 = tpu.strided_load %arg1[%c0, %c0_0, %c0_1, %c0_2] {strides = array<i32: 1, 2, 2, 1>} : memref<1x16x16x4xf32, #tpu.memory_space<vmem>>, vector<1x8x8x4xf32>
    %c0_3 = arith.constant 0 : index
    %c0_4 = arith.constant 0 : index
    %c1 = arith.constant 1 : index
    %c0_5 = arith.constant 0 : index
    %1 = tpu.strided_load %arg1[%c0_3, %c0_4, %c1, %c0_5] {strides = array<i32: 1, 2, 2, 1>} : memref<1x16x16x4xf32, #tpu.memory_space<vmem>>, vector<1x8x8x4xf32>
    %c0_6 = arith.constant 0 : index
    %c1_7 = arith.constant 1 : index
    %c0_8 = arith.constant 0 : index
    %c0_9 = arith.constant 0 : index
    %2 = tpu.strided_load %arg1[%c0_6, %c1_7, %c0_8, %c0_9] {strides = array<i32: 1, 2, 2, 1>} : memref<1x16x16x4xf32, #tpu.memory_space<vmem>>, vector<1x8x8x4xf32>
    %c0_10 = arith.constant 0 : index
    %c1_11 = arith.constant 1 : index
    %c1_12 = arith.constant 1 : index
    %c0_13 = arith.constant 0 : index
    %3 = tpu.strided_load %arg1[%c0_10, %c1_11, %c1_12, %c0_13] {strides = array<i32: 1, 2, 2, 1>} : memref<1x16x16x4xf32, #tpu.memory_space<vmem>>, vector<1x8x8x4xf32>
    %4 = arith.maximumf %0, %1 : vector<1x8x8x4xf32>
    %5 = arith.maximumf %2, %3 : vector<1x8x8x4xf32>
    %6 = arith.maximumf %4, %5 : vector<1x8x8x4xf32>
    %cst = arith.constant 0.000000e+00 : f32
    %7 = vector.broadcast %cst : f32 to vector<1x1x10x4xf32>
    %cst_14 = arith.constant 0.000000e+00 : f32
    %8 = vector.broadcast %cst_14 : f32 to vector<1x10x1x4xf32>
    %c0_15 = arith.constant 0 : index
    %c0_16 = arith.constant 0 : index
    %c0_17 = arith.constant 0 : index
    %c0_18 = arith.constant 0 : index
    %9 = vector.load %arg7[%c0_15, %c0_16, %c0_17, %c0_18] : memref<1x10x10x4xf32, #tpu.memory_space<vmem>>, vector<1x1x10x4xf32>
    tpu.vector_store %arg7[%c0_15, %c0_16, %c0_17, %c0_18], %7 {strides = array<i32>} : memref<1x10x10x4xf32, #tpu.memory_space<vmem>>, vector<1x1x10x4xf32>,
    %c0_19 = arith.constant 0 : index
    %c9 = arith.constant 9 : index
    %c0_20 = arith.constant 0 : index
    %c0_21 = arith.constant 0 : index
    %10 = vector.load %arg7[%c0_19, %c9, %c0_20, %c0_21] : memref<1x10x10x4xf32, #tpu.memory_space<vmem>>, vector<1x1x10x4xf32>
    tpu.vector_store %arg7[%c0_19, %c9, %c0_20, %c0_21], %7 {strides = array<i32>} : memref<1x10x10x4xf32, #tpu.memory_space<vmem>>, vector<1x1x10x4xf32>,
    %c0_22 = arith.constant 0 : index
    %c0_23 = arith.constant 0 : index
    %c0_24 = arith.constant 0 : index
    %c0_25 = arith.constant 0 : index
    %11 = vector.load %arg7[%c0_22, %c0_23, %c0_24, %c0_25] : memref<1x10x10x4xf32, #tpu.memory_space<vmem>>, vector<1x10x1x4xf32>
    tpu.vector_store %arg7[%c0_22, %c0_23, %c0_24, %c0_25], %8 {strides = array<i32>} : memref<1x10x10x4xf32, #tpu.memory_space<vmem>>, vector<1x10x1x4xf32>,
    %c0_26 = arith.constant 0 : index
    %c0_27 = arith.constant 0 : index
    %c9_28 = arith.constant 9 : index
    %c0_29 = arith.constant 0 : index
    %12 = vector.load %arg7[%c0_26, %c0_27, %c9_28, %c0_29] : memref<1x10x10x4xf32, #tpu.memory_space<vmem>>, vector<1x10x1x4xf32>
    tpu.vector_store %arg7[%c0_26, %c0_27, %c9_28, %c0_29], %8 {strides = array<i32>} : memref<1x10x10x4xf32, #tpu.memory_space<vmem>>, vector<1x10x1x4xf32>,
    %c0_30 = arith.constant 0 : index
    %c1_31 = arith.constant 1 : index
    %c1_32 = arith.constant 1 : index
    %c0_33 = arith.constant 0 : index
    %13 = vector.load %arg7[%c0_30, %c1_31, %c1_32, %c0_33] : memref<1x10x10x4xf32, #tpu.memory_space<vmem>>, vector<1x8x8x4xf32>
    tpu.vector_store %arg7[%c0_30, %c1_31, %c1_32, %c0_33], %6 {strides = array<i32>} : memref<1x10x10x4xf32, #tpu.memory_space<vmem>>, vector<1x8x8x4xf32>,
    %cst_34 = arith.constant 0.000000e+00 : f32
    %14 = vector.broadcast %cst_34 : f32 to vector<64x8xf32>
    %c0_35 = arith.constant 0 : index
    %c0_36 = arith.constant 0 : index
    %c0_37 = arith.constant 0 : index
    %c0_38 = arith.constant 0 : index
    %15 = vector.load %arg7[%c0_35, %c0_36, %c0_37, %c0_38] : memref<1x10x10x4xf32, #tpu.memory_space<vmem>>, vector<1x8x8x4xf32>
    %16 = vector.shape_cast %15 : vector<1x8x8x4xf32> to vector<64x4xf32>
    %c0_39 = arith.constant 0 : index
    %c0_40 = arith.constant 0 : index
    %17 = vector.load %arg2[%c0_39, %c0_40] : memref<36x8xf32, #tpu.memory_space<vmem>>, vector<4x8xf32>
    %cst_41 = arith.constant dense<0.000000e+00> : vector<64x8xf32>
    %18 = tpu.matmul %16, %17, %cst_41 {dimension_numbers = #tpu.dot_dimension_numbers<[1], [0], [0], [1], [0, 0, 1, 1], [], []>} : vector<64x4xf32>, vector<4x8xf32>, vector<64x8xf32> -> vector<64x8xf32>
    %19 = arith.addf %14, %18 : vector<64x8xf32>
    %c0_42 = arith.constant 0 : index
    %c0_43 = arith.constant 0 : index
    %c1_44 = arith.constant 1 : index
    %c0_45 = arith.constant 0 : index
    %20 = vector.load %arg7[%c0_42, %c0_43, %c1_44, %c0_45] : memref<1x10x10x4xf32, #tpu.memory_space<vmem>>, vector<1x8x8x4xf32>
    %21 = vector.shape_cast %20 : vector<1x8x8x4xf32> to vector<64x4xf32>
    %c4 = arith.constant 4 : index
    %c0_46 = arith.constant 0 : index
    %22 = vector.load %arg2[%c4, %c0_46] : memref<36x8xf32, #tpu.memory_space<vmem>>, vector<4x8xf32>
    %cst_47 = arith.constant dense<0.000000e+00> : vector<64x8xf32>
    %23 = tpu.matmul %21, %22, %cst_47 {dimension_numbers = #tpu.dot_dimension_numbers<[1], [0], [0], [1], [0, 0, 1, 1], [], []>} : vector<64x4xf32>, vector<4x8xf32>, vector<64x8xf32> -> vector<64x8xf32>
    %24 = arith.addf %19, %23 : vector<64x8xf32>
    %c0_48 = arith.constant 0 : index
    %c0_49 = arith.constant 0 : index
    %c2 = arith.constant 2 : index
    %c0_50 = arith.constant 0 : index
    %25 = vector.load %arg7[%c0_48, %c0_49, %c2, %c0_50] : memref<1x10x10x4xf32, #tpu.memory_space<vmem>>, vector<1x8x8x4xf32>
    %26 = vector.shape_cast %25 : vector<1x8x8x4xf32> to vector<64x4xf32>
    %c8 = arith.constant 8 : index
    %c0_51 = arith.constant 0 : index
    %27 = vector.load %arg2[%c8, %c0_51] : memref<36x8xf32, #tpu.memory_space<vmem>>, vector<4x8xf32>
    %cst_52 = arith.constant dense<0.000000e+00> : vector<64x8xf32>
    %28 = tpu.matmul %26, %27, %cst_52 {dimension_numbers = #tpu.dot_dimension_numbers<[1], [0], [0], [1], [0, 0, 1, 1], [], []>} : vector<64x4xf32>, vector<4x8xf32>, vector<64x8xf32> -> vector<64x8xf32>
    %29 = arith.addf %24, %28 : vector<64x8xf32>
    %c0_53 = arith.constant 0 : index
    %c1_54 = arith.constant 1 : index
    %c0_55 = arith.constant 0 : index
    %c0_56 = arith.constant 0 : index
    %30 = vector.load %arg7[%c0_53, %c1_54, %c0_55, %c0_56] : memref<1x10x10x4xf32, #tpu.memory_space<vmem>>, vector<1x8x8x4xf32>
    %31 = vector.shape_cast %30 : vector<1x8x8x4xf32> to vector<64x4xf32>
    %c12 = arith.constant 12 : index
    %c0_57 = arith.constant 0 : index
    %32 = vector.load %arg2[%c12, %c0_57] : memref<36x8xf32, #tpu.memory_space<vmem>>, vector<4x8xf32>
    %cst_58 = arith.constant dense<0.000000e+00> : vector<64x8xf32>
    %33 = tpu.matmul %31, %32, %cst_58 {dimension_numbers = #tpu.dot_dimension_numbers<[1], [0], [0], [1], [0, 0, 1, 1], [], []>} : vector<64x4xf32>, vector<4x8xf32>, vector<64x8xf32> -> vector<64x8xf32>
    %34 = arith.addf %29, %33 : vector<64x8xf32>
    %c0_59 = arith.constant 0 : index
    %c1_60 = arith.constant 1 : index
    %c1_61 = arith.constant 1 : index
    %c0_62 = arith.constant 0 : index
    %35 = vector.load %arg7[%c0_59, %c1_60, %c1_61, %c0_62] : memref<1x10x10x4xf32, #tpu.memory_space<vmem>>, vector<1x8x8x4xf32>
    %36 = vector.shape_cast %35 : vector<1x8x8x4xf32> to vector<64x4xf32>
    %c16 = arith.constant 16 : index
    %c0_63 = arith.constant 0 : index
    %37 = vector.load %arg2[%c16, %c0_63] : memref<36x8xf32, #tpu.memory_space<vmem>>, vector<4x8xf32>
    %cst_64 = arith.constant dense<0.000000e+00> : vector<64x8xf32>
    %38 = tpu.matmul %36, %37, %cst_64 {dimension_numbers = #tpu.dot_dimension_numbers<[1], [0], [0], [1], [0, 0, 1, 1], [], []>} : vector<64x4xf32>, vector<4x8xf32>, vector<64x8xf32> -> vector<64x8xf32>
    %39 = arith.addf %34, %38 : vector<64x8xf32>
    %c0_65 = arith.constant 0 : index
    %c1_66 = arith.constant 1 : index
    %c2_67 = arith.constant 2 : index
    %c0_68 = arith.constant 0 : index
    %40 = vector.load %arg7[%c0_65, %c1_66, %c2_67, %c0_68] : memref<1x10x10x4xf32, #tpu.memory_space<vmem>>, vector<1x8x8x4xf32>
    %41 = vector.shape_cast %40 : vector<1x8x8x4xf32> to vector<64x4xf32>
    %c20 = arith.constant 20 : index
    %c0_69 = arith.constant 0 : index
    %42 = vector.load %arg2[%c20, %c0_69] : memref<36x8xf32, #tpu.memory_space<vmem>>, vector<4x8xf32>
    %cst_70 = arith.constant dense<0.000000e+00> : vector<64x8xf32>
    %43 = tpu.matmul %41, %42, %cst_70 {dimension_numbers = #tpu.dot_dimension_numbers<[1], [0], [0], [1], [0, 0, 1, 1], [], []>} : vector<64x4xf32>, vector<4x8xf32>, vector<64x8xf32> -> vector<64x8xf32>
    %44 = arith.addf %39, %43 : vector<64x8xf32>
    %c0_71 = arith.constant 0 : index
    %c2_72 = arith.constant 2 : index
    %c0_73 = arith.constant 0 : index
    %c0_74 = arith.constant 0 : index
    %45 = vector.load %arg7[%c0_71, %c2_72, %c0_73, %c0_74] : memref<1x10x10x4xf32, #tpu.memory_space<vmem>>, vector<1x8x8x4xf32>
    %46 = vector.shape_cast %45 : vector<1x8x8x4xf32> to vector<64x4xf32>
    %c24 = arith.constant 24 : index
    %c0_75 = arith.constant 0 : index
    %47 = vector.load %arg2[%c24, %c0_75] : memref<36x8xf32, #tpu.memory_space<vmem>>, vector<4x8xf32>
    %cst_76 = arith.constant dense<0.000000e+00> : vector<64x8xf32>
    %48 = tpu.matmul %46, %47, %cst_76 {dimension_numbers = #tpu.dot_dimension_numbers<[1], [0], [0], [1], [0, 0, 1, 1], [], []>} : vector<64x4xf32>, vector<4x8xf32>, vector<64x8xf32> -> vector<64x8xf32>
    %49 = arith.addf %44, %48 : vector<64x8xf32>
    %c0_77 = arith.constant 0 : index
    %c2_78 = arith.constant 2 : index
    %c1_79 = arith.constant 1 : index
    %c0_80 = arith.constant 0 : index
    %50 = vector.load %arg7[%c0_77, %c2_78, %c1_79, %c0_80] : memref<1x10x10x4xf32, #tpu.memory_space<vmem>>, vector<1x8x8x4xf32>
    %51 = vector.shape_cast %50 : vector<1x8x8x4xf32> to vector<64x4xf32>
    %c28 = arith.constant 28 : index
    %c0_81 = arith.constant 0 : index
    %52 = vector.load %arg2[%c28, %c0_81] : memref<36x8xf32, #tpu.memory_space<vmem>>, vector<4x8xf32>
    %cst_82 = arith.constant dense<0.000000e+00> : vector<64x8xf32>
    %53 = tpu.matmul %51, %52, %cst_82 {dimension_numbers = #tpu.dot_dimension_numbers<[1], [0], [0], [1], [0, 0, 1, 1], [], []>} : vector<64x4xf32>, vector<4x8xf32>, vector<64x8xf32> -> vector<64x8xf32>
    %54 = arith.addf %49, %53 : vector<64x8xf32>
    %c0_83 = arith.constant 0 : index
    %c2_84 = arith.constant 2 : index
    %c2_85 = arith.constant 2 : index
    %c0_86 = arith.constant 0 : index
    %55 = vector.load %arg7[%c0_83, %c2_84, %c2_85, %c0_86] : memref<1x10x10x4xf32, #tpu.memory_space<vmem>>, vector<1x8x8x4xf32>
    %56 = vector.shape_cast %55 : vector<1x8x8x4xf32> to vector<64x4xf32>
    %c32 = arith.constant 32 : index
    %c0_87 = arith.constant 0 : index
    %57 = vector.load %arg2[%c32, %c0_87] : memref<36x8xf32, #tpu.memory_space<vmem>>, vector<4x8xf32>
    %cst_88 = arith.constant dense<0.000000e+00> : vector<64x8xf32>
    %58 = tpu.matmul %56, %57, %cst_88 {dimension_numbers = #tpu.dot_dimension_numbers<[1], [0], [0], [1], [0, 0, 1, 1], [], []>} : vector<64x4xf32>, vector<4x8xf32>, vector<64x8xf32> -> vector<64x8xf32>
    %59 = arith.addf %54, %58 : vector<64x8xf32>
    %c0_89 = arith.constant 0 : index
    %c0_90 = arith.constant 0 : index
    %60 = vector.load %arg3[%c0_89, %c0_90] : memref<1x8xf32, #tpu.memory_space<vmem>>, vector<1x8xf32>
    %61 = vector.broadcast %60 : vector<1x8xf32> to vector<64x8xf32>
    %62 = arith.addf %59, %61 : vector<64x8xf32>
    %cst_91 = arith.constant 0.000000e+00 : f32
    %63 = vector.broadcast %cst_91 : f32 to vector<64x8xf32>
    %64 = arith.maximumf %62, %63 : vector<64x8xf32>
    %cst_92 = arith.constant 0.000000e+00 : f32
    %65 = vector.broadcast %cst_92 : f32 to vector<1x1x10x8xf32>
    %cst_93 = arith.constant 0.000000e+00 : f32
    %66 = vector.broadcast %cst_93 : f32 to vector<1x10x1x8xf32>
    %c0_94 = arith.constant 0 : index
    %c0_95 = arith.constant 0 : index
    %c0_96 = arith.constant 0 : index
    %c0_97 = arith.constant 0 : index
    %67 = vector.load %arg8[%c0_94, %c0_95, %c0_96, %c0_97] : memref<1x10x10x8xf32, #tpu.memory_space<vmem>>, vector<1x1x10x8xf32>
    tpu.vector_store %arg8[%c0_94, %c0_95, %c0_96, %c0_97], %65 {strides = array<i32>} : memref<1x10x10x8xf32, #tpu.memory_space<vmem>>, vector<1x1x10x8xf32>,
    %c0_98 = arith.constant 0 : index
    %c9_99 = arith.constant 9 : index
    %c0_100 = arith.constant 0 : index
    %c0_101 = arith.constant 0 : index
    %68 = vector.load %arg8[%c0_98, %c9_99, %c0_100, %c0_101] : memref<1x10x10x8xf32, #tpu.memory_space<vmem>>, vector<1x1x10x8xf32>
    tpu.vector_store %arg8[%c0_98, %c9_99, %c0_100, %c0_101], %65 {strides = array<i32>} : memref<1x10x10x8xf32, #tpu.memory_space<vmem>>, vector<1x1x10x8xf32>,
    %c0_102 = arith.constant 0 : index
    %c0_103 = arith.constant 0 : index
    %c0_104 = arith.constant 0 : index
    %c0_105 = arith.constant 0 : index
    %69 = vector.load %arg8[%c0_102, %c0_103, %c0_104, %c0_105] : memref<1x10x10x8xf32, #tpu.memory_space<vmem>>, vector<1x10x1x8xf32>
    tpu.vector_store %arg8[%c0_102, %c0_103, %c0_104, %c0_105], %66 {strides = array<i32>} : memref<1x10x10x8xf32, #tpu.memory_space<vmem>>, vector<1x10x1x8xf32>,
    %c0_106 = arith.constant 0 : index
    %c0_107 = arith.constant 0 : index
    %c9_108 = arith.constant 9 : index
    %c0_109 = arith.constant 0 : index
    %70 = vector.load %arg8[%c0_106, %c0_107, %c9_108, %c0_109] : memref<1x10x10x8xf32, #tpu.memory_space<vmem>>, vector<1x10x1x8xf32>
    tpu.vector_store %arg8[%c0_106, %c0_107, %c9_108, %c0_109], %66 {strides = array<i32>} : memref<1x10x10x8xf32, #tpu.memory_space<vmem>>, vector<1x10x1x8xf32>,
    %71 = vector.shape_cast %64 : vector<64x8xf32> to vector<1x8x8x8xf32>
    %c0_110 = arith.constant 0 : index
    %c1_111 = arith.constant 1 : index
    %c1_112 = arith.constant 1 : index
    %c0_113 = arith.constant 0 : index
    %72 = vector.load %arg8[%c0_110, %c1_111, %c1_112, %c0_113] : memref<1x10x10x8xf32, #tpu.memory_space<vmem>>, vector<1x8x8x8xf32>
    tpu.vector_store %arg8[%c0_110, %c1_111, %c1_112, %c0_113], %71 {strides = array<i32>} : memref<1x10x10x8xf32, #tpu.memory_space<vmem>>, vector<1x8x8x8xf32>,
    %cst_114 = arith.constant 0.000000e+00 : f32
    %73 = vector.broadcast %cst_114 : f32 to vector<64x8xf32>
    %c0_115 = arith.constant 0 : index
    %c0_116 = arith.constant 0 : index
    %c0_117 = arith.constant 0 : index
    %c0_118 = arith.constant 0 : index
    %74 = vector.load %arg8[%c0_115, %c0_116, %c0_117, %c0_118] : memref<1x10x10x8xf32, #tpu.memory_space<vmem>>, vector<1x8x8x8xf32>
    %75 = vector.shape_cast %74 : vector<1x8x8x8xf32> to vector<64x8xf32>
    %c0_119 = arith.constant 0 : index
    %c0_120 = arith.constant 0 : index
    %76 = vector.load %arg4[%c0_119, %c0_120] : memref<72x8xf32, #tpu.memory_space<vmem>>, vector<8x8xf32>
    %cst_121 = arith.constant dense<0.000000e+00> : vector<64x8xf32>
    %77 = tpu.matmul %75, %76, %cst_121 {dimension_numbers = #tpu.dot_dimension_numbers<[1], [0], [0], [1], [0, 0, 1, 1], [], []>} : vector<64x8xf32>, vector<8x8xf32>, vector<64x8xf32> -> vector<64x8xf32>
    %78 = arith.addf %73, %77 : vector<64x8xf32>
    %c0_122 = arith.constant 0 : index
    %c0_123 = arith.constant 0 : index
    %c1_124 = arith.constant 1 : index
    %c0_125 = arith.constant 0 : index
    %79 = vector.load %arg8[%c0_122, %c0_123, %c1_124, %c0_125] : memref<1x10x10x8xf32, #tpu.memory_space<vmem>>, vector<1x8x8x8xf32>
    %80 = vector.shape_cast %79 : vector<1x8x8x8xf32> to vector<64x8xf32>
    %c8_126 = arith.constant 8 : index
    %c0_127 = arith.constant 0 : index
    %81 = vector.load %arg4[%c8_126, %c0_127] : memref<72x8xf32, #tpu.memory_space<vmem>>, vector<8x8xf32>
    %cst_128 = arith.constant dense<0.000000e+00> : vector<64x8xf32>
    %82 = tpu.matmul %80, %81, %cst_128 {dimension_numbers = #tpu.dot_dimension_numbers<[1], [0], [0], [1], [0, 0, 1, 1], [], []>} : vector<64x8xf32>, vector<8x8xf32>, vector<64x8xf32> -> vector<64x8xf32>
    %83 = arith.addf %78, %82 : vector<64x8xf32>
    %c0_129 = arith.constant 0 : index
    %c0_130 = arith.constant 0 : index
    %c2_131 = arith.constant 2 : index
    %c0_132 = arith.constant 0 : index
    %84 = vector.load %arg8[%c0_129, %c0_130, %c2_131, %c0_132] : memref<1x10x10x8xf32, #tpu.memory_space<vmem>>, vector<1x8x8x8xf32>
    %85 = vector.shape_cast %84 : vector<1x8x8x8xf32> to vector<64x8xf32>
    %c16_133 = arith.constant 16 : index
    %c0_134 = arith.constant 0 : index
    %86 = vector.load %arg4[%c16_133, %c0_134] : memref<72x8xf32, #tpu.memory_space<vmem>>, vector<8x8xf32>
    %cst_135 = arith.constant dense<0.000000e+00> : vector<64x8xf32>
    %87 = tpu.matmul %85, %86, %cst_135 {dimension_numbers = #tpu.dot_dimension_numbers<[1], [0], [0], [1], [0, 0, 1, 1], [], []>} : vector<64x8xf32>, vector<8x8xf32>, vector<64x8xf32> -> vector<64x8xf32>
    %88 = arith.addf %83, %87 : vector<64x8xf32>
    %c0_136 = arith.constant 0 : index
    %c1_137 = arith.constant 1 : index
    %c0_138 = arith.constant 0 : index
    %c0_139 = arith.constant 0 : index
    %89 = vector.load %arg8[%c0_136, %c1_137, %c0_138, %c0_139] : memref<1x10x10x8xf32, #tpu.memory_space<vmem>>, vector<1x8x8x8xf32>
    %90 = vector.shape_cast %89 : vector<1x8x8x8xf32> to vector<64x8xf32>
    %c24_140 = arith.constant 24 : index
    %c0_141 = arith.constant 0 : index
    %91 = vector.load %arg4[%c24_140, %c0_141] : memref<72x8xf32, #tpu.memory_space<vmem>>, vector<8x8xf32>
    %cst_142 = arith.constant dense<0.000000e+00> : vector<64x8xf32>
    %92 = tpu.matmul %90, %91, %cst_142 {dimension_numbers = #tpu.dot_dimension_numbers<[1], [0], [0], [1], [0, 0, 1, 1], [], []>} : vector<64x8xf32>, vector<8x8xf32>, vector<64x8xf32> -> vector<64x8xf32>
    %93 = arith.addf %88, %92 : vector<64x8xf32>
    %c0_143 = arith.constant 0 : index
    %c1_144 = arith.constant 1 : index
    %c1_145 = arith.constant 1 : index
    %c0_146 = arith.constant 0 : index
    %94 = vector.load %arg8[%c0_143, %c1_144, %c1_145, %c0_146] : memref<1x10x10x8xf32, #tpu.memory_space<vmem>>, vector<1x8x8x8xf32>
    %95 = vector.shape_cast %94 : vector<1x8x8x8xf32> to vector<64x8xf32>
    %c32_147 = arith.constant 32 : index
    %c0_148 = arith.constant 0 : index
    %96 = vector.load %arg4[%c32_147, %c0_148] : memref<72x8xf32, #tpu.memory_space<vmem>>, vector<8x8xf32>
    %cst_149 = arith.constant dense<0.000000e+00> : vector<64x8xf32>
    %97 = tpu.matmul %95, %96, %cst_149 {dimension_numbers = #tpu.dot_dimension_numbers<[1], [0], [0], [1], [0, 0, 1, 1], [], []>} : vector<64x8xf32>, vector<8x8xf32>, vector<64x8xf32> -> vector<64x8xf32>
    %98 = arith.addf %93, %97 : vector<64x8xf32>
    %c0_150 = arith.constant 0 : index
    %c1_151 = arith.constant 1 : index
    %c2_152 = arith.constant 2 : index
    %c0_153 = arith.constant 0 : index
    %99 = vector.load %arg8[%c0_150, %c1_151, %c2_152, %c0_153] : memref<1x10x10x8xf32, #tpu.memory_space<vmem>>, vector<1x8x8x8xf32>
    %100 = vector.shape_cast %99 : vector<1x8x8x8xf32> to vector<64x8xf32>
    %c40 = arith.constant 40 : index
    %c0_154 = arith.constant 0 : index
    %101 = vector.load %arg4[%c40, %c0_154] : memref<72x8xf32, #tpu.memory_space<vmem>>, vector<8x8xf32>
    %cst_155 = arith.constant dense<0.000000e+00> : vector<64x8xf32>
    %102 = tpu.matmul %100, %101, %cst_155 {dimension_numbers = #tpu.dot_dimension_numbers<[1], [0], [0], [1], [0, 0, 1, 1], [], []>} : vector<64x8xf32>, vector<8x8xf32>, vector<64x8xf32> -> vector<64x8xf32>
    %103 = arith.addf %98, %102 : vector<64x8xf32>
    %c0_156 = arith.constant 0 : index
    %c2_157 = arith.constant 2 : index
    %c0_158 = arith.constant 0 : index
    %c0_159 = arith.constant 0 : index
    %104 = vector.load %arg8[%c0_156, %c2_157, %c0_158, %c0_159] : memref<1x10x10x8xf32, #tpu.memory_space<vmem>>, vector<1x8x8x8xf32>
    %105 = vector.shape_cast %104 : vector<1x8x8x8xf32> to vector<64x8xf32>
    %c48 = arith.constant 48 : index
    %c0_160 = arith.constant 0 : index
    %106 = vector.load %arg4[%c48, %c0_160] : memref<72x8xf32, #tpu.memory_space<vmem>>, vector<8x8xf32>
    %cst_161 = arith.constant dense<0.000000e+00> : vector<64x8xf32>
    %107 = tpu.matmul %105, %106, %cst_161 {dimension_numbers = #tpu.dot_dimension_numbers<[1], [0], [0], [1], [0, 0, 1, 1], [], []>} : vector<64x8xf32>, vector<8x8xf32>, vector<64x8xf32> -> vector<64x8xf32>
    %108 = arith.addf %103, %107 : vector<64x8xf32>
    %c0_162 = arith.constant 0 : index
    %c2_163 = arith.constant 2 : index
    %c1_164 = arith.constant 1 : index
    %c0_165 = arith.constant 0 : index
    %109 = vector.load %arg8[%c0_162, %c2_163, %c1_164, %c0_165] : memref<1x10x10x8xf32, #tpu.memory_space<vmem>>, vector<1x8x8x8xf32>
    %110 = vector.shape_cast %109 : vector<1x8x8x8xf32> to vector<64x8xf32>
    %c56 = arith.constant 56 : index
    %c0_166 = arith.constant 0 : index
    %111 = vector.load %arg4[%c56, %c0_166] : memref<72x8xf32, #tpu.memory_space<vmem>>, vector<8x8xf32>
    %cst_167 = arith.constant dense<0.000000e+00> : vector<64x8xf32>
    %112 = tpu.matmul %110, %111, %cst_167 {dimension_numbers = #tpu.dot_dimension_numbers<[1], [0], [0], [1], [0, 0, 1, 1], [], []>} : vector<64x8xf32>, vector<8x8xf32>, vector<64x8xf32> -> vector<64x8xf32>
    %113 = arith.addf %108, %112 : vector<64x8xf32>
    %c0_168 = arith.constant 0 : index
    %c2_169 = arith.constant 2 : index
    %c2_170 = arith.constant 2 : index
    %c0_171 = arith.constant 0 : index
    %114 = vector.load %arg8[%c0_168, %c2_169, %c2_170, %c0_171] : memref<1x10x10x8xf32, #tpu.memory_space<vmem>>, vector<1x8x8x8xf32>
    %115 = vector.shape_cast %114 : vector<1x8x8x8xf32> to vector<64x8xf32>
    %c64 = arith.constant 64 : index
    %c0_172 = arith.constant 0 : index
    %116 = vector.load %arg4[%c64, %c0_172] : memref<72x8xf32, #tpu.memory_space<vmem>>, vector<8x8xf32>
    %cst_173 = arith.constant dense<0.000000e+00> : vector<64x8xf32>
    %117 = tpu.matmul %115, %116, %cst_173 {dimension_numbers = #tpu.dot_dimension_numbers<[1], [0], [0], [1], [0, 0, 1, 1], [], []>} : vector<64x8xf32>, vector<8x8xf32>, vector<64x8xf32> -> vector<64x8xf32>
    %118 = arith.addf %113, %117 : vector<64x8xf32>
    %c0_174 = arith.constant 0 : index
    %c0_175 = arith.constant 0 : index
    %119 = vector.load %arg5[%c0_174, %c0_175] : memref<1x8xf32, #tpu.memory_space<vmem>>, vector<1x8xf32>
    %120 = vector.broadcast %119 : vector<1x8xf32> to vector<64x8xf32>
    %121 = arith.addf %118, %120 : vector<64x8xf32>
    %cst_176 = arith.constant 0.000000e+00 : f32
    %122 = vector.broadcast %cst_176 : f32 to vector<64x8xf32>
    %123 = arith.maximumf %121, %122 : vector<64x8xf32>
    %c0_177 = arith.constant 0 : index
    %c0_178 = arith.constant 0 : index
    %124 = vector.load %arg6[%c0_177, %c0_178] : memref<64x8xf32, #tpu.memory_space<vmem>>, vector<64x8xf32>
    tpu.vector_store %arg6[%c0_177, %c0_178], %123 {strides = array<i32>} : memref<64x8xf32, #tpu.memory_space<vmem>>, vector<64x8xf32>,
    return
  }
  func.func @transform_0(%arg0: i32) -> (i32, i32, i32, i32) {
    %c0_i32 = arith.constant 0 : i32
    %c0_i32_0 = arith.constant 0 : i32
    %c0_i32_1 = arith.constant 0 : i32
    %c0_i32_2 = arith.constant 0 : i32
    return %arg0, %c0_i32, %c0_i32_0, %c0_i32_1 : i32, i32, i32, i32
  }
  func.func @transform_1(%arg0: i32) -> (i32, i32) {
    %c0_i32 = arith.constant 0 : i32
    %c0_i32_0 = arith.constant 0 : i32
    %c0_i32_1 = arith.constant 0 : i32
    return %c0_i32, %c0_i32_0 : i32, i32
  }
  func.func @transform_2(%arg0: i32) -> (i32, i32) {
    %c0_i32 = arith.constant 0 : i32
    %c0_i32_0 = arith.constant 0 : i32
    %c0_i32_1 = arith.constant 0 : i32
    return %c0_i32, %c0_i32_0 : i32, i32
  }
  func.func @transform_3(%arg0: i32) -> (i32, i32) {
    %c0_i32 = arith.constant 0 : i32
    %c0_i32_0 = arith.constant 0 : i32
    %c0_i32_1 = arith.constant 0 : i32
    return %c0_i32, %c0_i32_0 : i32, i32
  }
  func.func @transform_4(%arg0: i32) -> (i32, i32) {
    %c0_i32 = arith.constant 0 : i32
    %c0_i32_0 = arith.constant 0 : i32
    %c0_i32_1 = arith.constant 0 : i32
    return %c0_i32, %c0_i32_0 : i32, i32
  }
  func.func @transform_5(%arg0: i32) -> (i32, i32) {
    %c0_i32 = arith.constant 0 : i32
    %c0_i32_0 = arith.constant 0 : i32
    return %arg0, %c0_i32 : i32, i32
  }
}

</mosaic_0001>

<llo_original>
// kernel: down_forward.1
$region0: #{down_forward.1}
  #allocation0 [shape = 'u32[]', space=smem, size = 0x4, offset = 0x4, fixed_abs, tag = 'smem constant byte address 0x4 - core index']
  #allocation1 [shape = 'u32[144,128]{1,0:T(1,128)}', space=vmem, size = 0x12000, scoped, tag = 'internal scratch']
  #allocation2 [shape = 'f32[1,10,10,4]{3,2,1,0:T(8,128)}', space=vmem, size = 0x14000, scoped, tag = 'scratch operand']
  #allocation3 [shape = 'f32[1,10,10,8]{3,2,1,0:T(8,128)}', space=vmem, size = 0x14000, scoped, tag = 'scratch operand']
  %s0 = inlined_call_operand.vmem [shape: f32[2,16,16,4], index: 0, kind: input, shape index: {}]
  %s1 = inlined_call_operand.vmem [shape: f32[36,8], index: 1, kind: input, shape index: {}]
  %s2 = inlined_call_operand.vmem [shape: f32[1,8], index: 2, kind: input, shape index: {}]
  %s3 = inlined_call_operand.vmem [shape: f32[72,8], index: 3, kind: input, shape index: {}]
  %s4 = inlined_call_operand.vmem [shape: f32[1,8], index: 4, kind: input, shape index: {}]
  %s5 = inlined_call_operand.vmem [shape: f32[128,8], index: 5, kind: output, shape index: {}]
  %s6 = sld [smem:[#allocation0]]
  $region53: #{down_forward.1} parent=0
    _
  %s8 = ssub.s32 1, %s6
  %s9 = scalar_select 0, %s8, %s6
  loop: start=0, step=1, limit=4
  $region2: #{down_forward.1} parent=0 // loop_pre_header
    _
  $region3: #{down_forward.1} parent=0 // loop_header
    %s11 = sphi 0, %s15
    %p12 = scmp.ge.s32.totalorder %s11, 4
    %s21 = sphi 0, %s23
    %s24 = sphi 0, %s21
    %s25 = sphi 0, %s24
    %s41 = sphi 0, %s25
    %s45 = sphi 0, %s45
    %s47 = sphi 0, %s45
    %s48 = sphi 0, %s47
    %s62 = sphi 0, %s48
    %s66 = sphi 0, %s66
    %s68 = sphi 0, %s66
    %s69 = sphi 0, %s68
    %s83 = sphi 0, %s69
    %s87 = sphi 0, %s87
    %s89 = sphi 0, %s87
    %s90 = sphi 0, %s89
    %s104 = sphi 0, %s90
    %s108 = sphi 0, %s108
    %s110 = sphi 0, %s108
    %s111 = sphi 0, %s110
    %s125 = sphi 0, %s111
    %s131 = sphi 0, %s133
    %s134 = sphi 0, %s131
    %s135 = sphi 0, %s134
    %s151 = sphi 0, %s135
  $region4: #{down_forward.1} parent=0 // loop_header_branch
    %14 = sbr.rel (%p12) target = $region8
  $region5: #{down_forward.1} parent=0 // loop_body
    %s16 = ssub.s32 %s11, 1
    %s17 = ssub.s32 %s11, 2
    %s18 = sadd.s32 %s11, 1
    %s19 = ssub.s32 %s11, %s18
    %p20 = scmp.eq.s32.totalorder %s19, 0
    %s22 = sadd.s32 %s21, 1
    %s23 = scalar_select %p20, %s21, %s22
    %p26 = pneg %p20
    %p27 = scmp.eq.s32.totalorder %s11, 1
    %p28 = por %p26, %p27
    %p29 = scmp.ne.s32.totalorder %s21, %s24
    %p30 = scmp.eq.s32.totalorder %s11, 0
    %p31 = por %p29, %p30
    %p32 = scmp.ne.s32.totalorder %s21, %s24
    %p33 = scmp.eq.s32.totalorder %s16, 1
    %p34 = por %p32, %p33
    %p35 = scmp.ne.s32.totalorder %s24, %s25
    %p36 = scmp.eq.s32.totalorder %s16, 0
    %p37 = por %p35, %p36
    %p38 = scmp.ne.s32.totalorder %s24, %s25
    %p39 = scmp.eq.s32.totalorder %s17, 1
    %p40 = por %p38, %p39
    %p42 = scmp.ne.s32.totalorder %s25, %s41
    %p43 = scmp.eq.s32.totalorder %s17, 0
    %p44 = por %p42, %p43
    %s46 = sadd.s32 %s45, 1
    %p49 = scmp.eq.s32.totalorder %s11, 1
    %p50 = scmp.ne.s32.totalorder %s45, %s47
    %p51 = scmp.eq.s32.totalorder %s11, 0
    %p52 = por %p50, %p51
    %p53 = scmp.ne.s32.totalorder %s45, %s47
    %p54 = scmp.eq.s32.totalorder %s16, 1
    %p55 = por %p53, %p54
    %p56 = scmp.ne.s32.totalorder %s47, %s48
    %p57 = scmp.eq.s32.totalorder %s16, 0
    %p58 = por %p56, %p57
    %p59 = scmp.ne.s32.totalorder %s47, %s48
    %p60 = scmp.eq.s32.totalorder %s17, 1
    %p61 = por %p59, %p60
    %p63 = scmp.ne.s32.totalorder %s48, %s62
    %p64 = scmp.eq.s32.totalorder %s17, 0
    %p65 = por %p63, %p64
    %s67 = sadd.s32 %s66, 1
    %p70 = scmp.eq.s32.totalorder %s11, 1
    %p71 = scmp.ne.s32.totalorder %s66, %s68
    %p72 = scmp.eq.s32.totalorder %s11, 0
    %p73 = por %p71, %p72
    %p74 = scmp.ne.s32.totalorder %s66, %s68
    %p75 = scmp.eq.s32.totalorder %s16, 1
    %p76 = por %p74, %p75
    %p77 = scmp.ne.s32.totalorder %s68, %s69
    %p78 = scmp.eq.s32.totalorder %s16, 0
    %p79 = por %p77, %p78
    %p80 = scmp.ne.s32.totalorder %s68, %s69
    %p81 = scmp.eq.s32.totalorder %s17, 1
    %p82 = por %p80, %p81
    %p84 = scmp.ne.s32.totalorder %s69, %s83
    %p85 = scmp.eq.s32.totalorder %s17, 0
    %p86 = por %p84, %p85
    %s88 = sadd.s32 %s87, 1
    %p91 = scmp.eq.s32.totalorder %s11, 1
    %p92 = scmp.ne.s32.totalorder %s87, %s89
    %p93 = scmp.eq.s32.totalorder %s11, 0
    %p94 = por %p92, %p93
    %p95 = scmp.ne.s32.totalorder %s87, %s89
    %p96 = scmp.eq.s32.totalorder %s16, 1
    %p97 = por %p95, %p96
    %p98 = scmp.ne.s32.totalorder %s89, %s90
    %p99 = scmp.eq.s32.totalorder %s16, 0
    %p100 = por %p98, %p99
    %p101 = scmp.ne.s32.totalorder %s89, %s90
    %p102 = scmp.eq.s32.totalorder %s17, 1
    %p103 = por %p101, %p102
    %p105 = scmp.ne.s32.totalorder %s90, %s104
    %p106 = scmp.eq.s32.totalorder %s17, 0
    %p107 = por %p105, %p106
    %s109 = sadd.s32 %s108, 1
    %p112 = scmp.eq.s32.totalorder %s11, 1
    %p113 = scmp.ne.s32.totalorder %s108, %s110
    %p114 = scmp.eq.s32.totalorder %s11, 0
    %p115 = por %p113, %p114
    %p116 = scmp.ne.s32.totalorder %s108, %s110
    %p117 = scmp.eq.s32.totalorder %s16, 1
    %p118 = por %p116, %p117
    %p119 = scmp.ne.s32.totalorder %s110, %s111
    %p120 = scmp.eq.s32.totalorder %s16, 0
    %p121 = por %p119, %p120
    %p122 = scmp.ne.s32.totalorder %s110, %s111
    %p123 = scmp.eq.s32.totalorder %s17, 1
    %p124 = por %p122, %p123
    %p126 = scmp.ne.s32.totalorder %s111, %s125
    %p127 = scmp.eq.s32.totalorder %s17, 0
    %p128 = por %p126, %p127
    %s129 = ssub.s32 %s11, %s18
    %p130 = scmp.eq.s32.totalorder %s129, 0
    %s132 = sadd.s32 %s131, 1
    %s133 = scalar_select %p130, %s131, %s132
    %p136 = pneg %p130
    %p137 = scmp.eq.s32.totalorder %s11, 1
    %p138 = por %p136, %p137
    %p139 = scmp.ne.s32.totalorder %s131, %s134
    %p140 = scmp.eq.s32.totalorder %s11, 0
    %p141 = por %p139, %p140
    %p142 = scmp.ne.s32.totalorder %s131, %s134
    %p143 = scmp.eq.s32.totalorder %s16, 1
    %p144 = por %p142, %p143
    %p145 = scmp.ne.s32.totalorder %s134, %s135
    %p146 = scmp.eq.s32.totalorder %s16, 0
    %p147 = por %p145, %p146
    %p148 = scmp.ne.s32.totalorder %s134, %s135
    %p149 = scmp.eq.s32.totalorder %s17, 1
    %p150 = por %p148, %p149
    %p152 = scmp.ne.s32.totalorder %s135, %s151
    %p153 = scmp.eq.s32.totalorder %s17, 0
    %p154 = por %p152, %p153
    %p155 = scmp.le.s32.totalorder 1, %s11
    %p156 = scmp.lt.s32.totalorder %s11, 3
    %p157 = pnand %p155, %p156
    %p158 = pneg %p157
    // Predicated region
    $region9: #{down_forward.1} parent=5 // pred_check
      _
    $region10: #{down_forward.1} parent=5 // pred_check_branch
      %160 = sbr.rel (%p157) target = $region12
    $region11: #{down_forward.1} parent=5 // pred_region
      %s161 = ssub.s32 %s11, 1
      // Predicated region
      $region13: #{down_forward.1} parent=11 // pred_check
        %p162 = pneg %p58
      $region14: #{down_forward.1} parent=11 // pred_check_branch
        %164 = sbr.rel (%p162) target = $region16
      $region15: #{down_forward.1} parent=11 // pred_region
        _
      $region16: #{down_forward.1} parent=11 // pred_fallthru
        _
      // Predicated region
      $region17: #{down_forward.1} parent=11 // pred_check
        %p165 = pneg %p79
      $region18: #{down_forward.1} parent=11 // pred_check_branch
        %167 = sbr.rel (%p165) target = $region20
      $region19: #{down_forward.1} parent=11 // pred_region
        _
      $region20: #{down_forward.1} parent=11 // pred_fallthru
        _
      // Predicated region
      $region21: #{down_forward.1} parent=11 // pred_check
        %p168 = pneg %p100
      $region22: #{down_forward.1} parent=11 // pred_check_branch
        %170 = sbr.rel (%p168) target = $region24
      $region23: #{down_forward.1} parent=11 // pred_region
        _
      $region24: #{down_forward.1} parent=11 // pred_fallthru
        _
      // Predicated region
      $region25: #{down_forward.1} parent=11 // pred_check
        %p171 = pneg %p121
      $region26: #{down_forward.1} parent=11 // pred_check_branch
        %173 = sbr.rel (%p171) target = $region28
      $region27: #{down_forward.1} parent=11 // pred_region
        _
      $region28: #{down_forward.1} parent=11 // pred_fallthru
        _
    $region12: #{down_forward.1} parent=5 // pred_fallthru
      _
    %p174 = scmp.lt.s32.totalorder %s11, 2
    // Predicated region
    $region29: #{down_forward.1} parent=5 // pred_check
      %p175 = pneg %p174
    $region30: #{down_forward.1} parent=5 // pred_check_branch
      %177 = sbr.rel (%p175) target = $region32
    $region31: #{down_forward.1} parent=5 // pred_region
      // Predicated region
      $region33: #{down_forward.1} parent=31 // pred_check
        %p178 = pneg %p31
      $region34: #{down_forward.1} parent=31 // pred_check_branch
        %180 = sbr.rel (%p178) target = $region36
      $region35: #{down_forward.1} parent=31 // pred_region
        %p181 = scmp.lt.s32.totalorder %s11, 1
        %s182 = scalar_select %p181, %s11, 1
        %s183 = smul.addr %s182, 32
        %s184 = smul.addr %s183, 8
        %s185 = scalar_lea.vmem %s0, %s184
      $region36: #{down_forward.1} parent=31 // pred_fallthru
        _
    $region32: #{down_forward.1} parent=5 // pred_fallthru
      _
    %p186 = scmp.le.s32.totalorder 1, %s11
    %p187 = scmp.lt.s32.totalorder %s11, 3
    %p188 = pnand %p186, %p187
    %p189 = pneg %p188
    // Predicated region
    $region37: #{down_forward.1} parent=5 // pred_check
      _
    $region38: #{down_forward.1} parent=5 // pred_check_branch
      %191 = sbr.rel (%p188) target = $region40
    $region39: #{down_forward.1} parent=5 // pred_region
      %s192 = ssub.s32 %s11, 1
      %p193 = scmp.lt.s32.totalorder %s16, 1
      %s194 = scalar_select %p193, %s16, 1
      %s195 = smul.addr %s194, 32
      %s196 = smul.addr %s195, 8
      %s197 = scalar_lea.vmem %s0, %s196
      %p198 = pneg %p37
      %p199 = pneg %p34
      %p200 = pneg %p58
      %p201 = pneg %p55
      %p202 = pneg %p79
      %p203 = pneg %p76
      %p204 = pneg %p100
      %p205 = pneg %p97
      %p206 = pneg %p121
      %p207 = pneg %p118
      %p208 = pneg %p147
      %p209 = pneg %p144
      %s210 = smul.u32 8, %s16
      %p211 = scmp.lt.s32.totalorder %s210, 15
      %s212 = scalar_select %p211, %s210, 15
      %s213 = smul.addr %s212, 8
      %s214 = scalar_lea.vmem %s5, %s213
      %p215 = scmp.lt.s32.totalorder %s16, 1
      %s216 = scalar_select %p215, %s16, 1
      %s217 = smul.addr %s216, 32
      %s218 = smul.addr %s217, 8
      %s219 = scalar_lea.vmem %s0, %s218
      %s220 = smul.u32 8, %s16
      %p221 = scmp.lt.s32.totalorder %s220, 15
      %s222 = scalar_select %p221, %s220, 15
      %s223 = smul.addr %s222, 8
      %s224 = scalar_lea.vmem %s5, %s223
      %s225 = smul.u32 8, %s16
      %v226 = vld [vmem:[%s219] ss:$2 sm:$0xff]
      %s227 = scalar_lea.vmem %s219, 32
      %v228 = vld [vmem:[%s227] ss:$2 sm:$0xff]
      %s229 = scalar_lea.vmem %s219, 64
      %v230 = vld [vmem:[%s229] ss:$2 sm:$0xff]
      %s231 = scalar_lea.vmem %s219, 96
      %v232 = vld [vmem:[%s231] ss:$2 sm:$0xff]
      %s233 = scalar_lea.vmem %s219, 128
      %v234 = vld [vmem:[%s233] ss:$2 sm:$0xff]
      %s235 = scalar_lea.vmem %s219, 160
      %v236 = vld [vmem:[%s235] ss:$2 sm:$0xff]
      %s237 = scalar_lea.vmem %s219, 192
      %v238 = vld [vmem:[%s237] ss:$2 sm:$0xff]
      %s239 = scalar_lea.vmem %s219, 224
      %v240 = vld [vmem:[%s239] ss:$2 sm:$0xff]
      %s241 = scalar_lea.vmem %s219, 1
      %v242 = vld [vmem:[%s241] ss:$2 sm:$0xff]
      %s243 = scalar_lea.vmem %s219, 33
      %v244 = vld [vmem:[%s243] ss:$2 sm:$0xff]
      %s245 = scalar_lea.vmem %s219, 65
      %v246 = vld [vmem:[%s245] ss:$2 sm:$0xff]
      %s247 = scalar_lea.vmem %s219, 97
      %v248 = vld [vmem:[%s247] ss:$2 sm:$0xff]
      %s249 = scalar_lea.vmem %s219, 129
      %v250 = vld [vmem:[%s249] ss:$2 sm:$0xff]
      %s251 = scalar_lea.vmem %s219, 161
      %v252 = vld [vmem:[%s251] ss:$2 sm:$0xff]
      %s253 = scalar_lea.vmem %s219, 193
      %v254 = vld [vmem:[%s253] ss:$2 sm:$0xff]
      %s255 = scalar_lea.vmem %s219, 225
      %v256 = vld [vmem:[%s255] ss:$2 sm:$0xff]
      %s257 = scalar_lea.vmem %s219, 16
      %v258 = vld [vmem:[%s257] ss:$2 sm:$0xff]
      %s259 = scalar_lea.vmem %s257, 32
      %v260 = vld [vmem:[%s259] ss:$2 sm:$0xff]
      %s261 = scalar_lea.vmem %s257, 64
      %v262 = vld [vmem:[%s261] ss:$2 sm:$0xff]
      %s263 = scalar_lea.vmem %s257, 96
      %v264 = vld [vmem:[%s263] ss:$2 sm:$0xff]
      %s265 = scalar_lea.vmem %s257, 128
      %v266 = vld [vmem:[%s265] ss:$2 sm:$0xff]
      %s267 = scalar_lea.vmem %s257, 160
      %v268 = vld [vmem:[%s267] ss:$2 sm:$0xff]
      %s269 = scalar_lea.vmem %s257, 192
      %v270 = vld [vmem:[%s269] ss:$2 sm:$0xff]
      %s271 = scalar_lea.vmem %s257, 224
      %v272 = vld [vmem:[%s271] ss:$2 sm:$0xff]
      %s273 = scalar_lea.vmem %s257, 1
      %v274 = vld [vmem:[%s273] ss:$2 sm:$0xff]
      %s275 = scalar_lea.vmem %s257, 33
      %v276 = vld [vmem:[%s275] ss:$2 sm:$0xff]
      %s277 = scalar_lea.vmem %s257, 65
      %v278 = vld [vmem:[%s277] ss:$2 sm:$0xff]
      %s279 = scalar_lea.vmem %s257, 97
      %v280 = vld [vmem:[%s279] ss:$2 sm:$0xff]
      %s281 = scalar_lea.vmem %s257, 129
      %v282 = vld [vmem:[%s281] ss:$2 sm:$0xff]
      %s283 = scalar_lea.vmem %s257, 161
      %v284 = vld [vmem:[%s283] ss:$2 sm:$0xff]
      %s285 = scalar_lea.vmem %s257, 193
      %v286 = vld [vmem:[%s285] ss:$2 sm:$0xff]
      %s287 = scalar_lea.vmem %s257, 225
      %v288 = vld [vmem:[%s287] ss:$2 sm:$0xff]
      %v289 = vmax.f32 %v226, %v242
      %v290 = vmax.f32 %v228, %v244
      %v291 = vmax.f32 %v230, %v246
      %v292 = vmax.f32 %v232, %v248
      %v293 = vmax.f32 %v234, %v250
      %v294 = vmax.f32 %v236, %v252
      %v295 = vmax.f32 %v238, %v254
      %v296 = vmax.f32 %v240, %v256
      %v297 = vmax.f32 %v258, %v274
      %v298 = vmax.f32 %v260, %v276
      %v299 = vmax.f32 %v262, %v278
      %v300 = vmax.f32 %v264, %v280
      %v301 = vmax.f32 %v266, %v282
      %v302 = vmax.f32 %v268, %v284
      %v303 = vmax.f32 %v270, %v286
      %v304 = vmax.f32 %v272, %v288
      %v305 = vmax.f32 %v289, %v297
      %v306 = vmax.f32 %v290, %v298
      %v307 = vmax.f32 %v291, %v299
      %v308 = vmax.f32 %v292, %v300
      %v309 = vmax.f32 %v293, %v301
      %v310 = vmax.f32 %v294, %v302
      %v311 = vmax.f32 %v295, %v303
      %v312 = vmax.f32 %v296, %v304
      %vm313 = vcmask 31744
      %314 = vst.msk [vmem:[#allocation2] sm:$0xff] %vm313, 0.0
      %vm315 = vcmask 25600
      %316 = vst.msk [vmem:[#allocation2 + $0x8] sm:$0x3] %vm315, 0.0
      %s317 = scalar_lea.vmem [#allocation2], 144
      %318 = vst.msk [vmem:[%s317] sm:$0xff] %vm313, 0.0
      %319 = vst.msk [vmem:[%s317 + $0x8] sm:$0x3] %vm315, 0.0
      %vm320 = vcmask 24576
      %321 = vst.msk [vmem:[#allocation2] sm:$0x1] %vm320, 0.0
      %322 = vst.msk [vmem:[#allocation2 + $0x10] sm:$0x1] %vm320, 0.0
      %323 = vst.msk [vmem:[#allocation2 + $0x20] sm:$0x1] %vm320, 0.0
      %324 = vst.msk [vmem:[#allocation2 + $0x30] sm:$0x1] %vm320, 0.0
      %325 = vst.msk [vmem:[#allocation2 + $0x40] sm:$0x1] %vm320, 0.0
      %326 = vst.msk [vmem:[#allocation2 + $0x50] sm:$0x1] %vm320, 0.0
      %327 = vst.msk [vmem:[#allocation2 + $0x60] sm:$0x1] %vm320, 0.0
      %328 = vst.msk [vmem:[#allocation2 + $0x70] sm:$0x1] %vm320, 0.0
      %329 = vst.msk [vmem:[#allocation2 + $0x80] sm:$0x1] %vm320, 0.0
      %330 = vst.msk [vmem:[#allocation2 + $0x90] sm:$0x1] %vm320, 0.0
      %331 = vst.msk [vmem:[#allocation2 + $0x9] sm:$0x1] %vm320, 0.0
      %332 = vst.msk [vmem:[#allocation2 + $0x19] sm:$0x1] %vm320, 0.0
      %333 = vst.msk [vmem:[#allocation2 + $0x29] sm:$0x1] %vm320, 0.0
      %334 = vst.msk [vmem:[#allocation2 + $0x39] sm:$0x1] %vm320, 0.0
      %335 = vst.msk [vmem:[#allocation2 + $0x49] sm:$0x1] %vm320, 0.0
      %336 = vst.msk [vmem:[#allocation2 + $0x59] sm:$0x1] %vm320, 0.0
      %337 = vst.msk [vmem:[#allocation2 + $0x69] sm:$0x1] %vm320, 0.0
      %338 = vst.msk [vmem:[#allocation2 + $0x79] sm:$0x1] %vm320, 0.0
      %339 = vst.msk [vmem:[#allocation2 + $0x89] sm:$0x1] %vm320, 0.0
      %340 = vst.msk [vmem:[#allocation2 + $0x99] sm:$0x1] %vm320, 0.0
      %s341 = scalar_lea.vmem [#allocation2], 16
      %342 = vst.msk [vmem:[%s341 + $0x1] sm:$0xff] %vm313, %v305
      %343 = vst.msk [vmem:[%s341 + $0x11] sm:$0xff] %vm313, %v306
      %344 = vst.msk [vmem:[%s341 + $0x21] sm:$0xff] %vm313, %v307
      %345 = vst.msk [vmem:[%s341 + $0x31] sm:$0xff] %vm313, %v308
      %346 = vst.msk [vmem:[%s341 + $0x41] sm:$0xff] %vm313, %v309
      %347 = vst.msk [vmem:[%s341 + $0x51] sm:$0xff] %vm313, %v310
      %348 = vst.msk [vmem:[%s341 + $0x61] sm:$0xff] %vm313, %v311
      %349 = vst.msk [vmem:[%s341 + $0x71] sm:$0xff] %vm313, %v312
      %v350 = vld [vmem:[#allocation2] sm:$0xff]
      %v351 = vld [vmem:[#allocation2 + $0x10] sm:$0xff]
      %v352 = vld [vmem:[#allocation2 + $0x20] sm:$0xff]
      %v353 = vld [vmem:[#allocation2 + $0x30] sm:$0xff]
      %v354 = vld [vmem:[#allocation2 + $0x40] sm:$0xff]
      %v355 = vld [vmem:[#allocation2 + $0x50] sm:$0xff]
      %v356 = vld [vmem:[#allocation2 + $0x60] sm:$0xff]
      %v357 = vld [vmem:[#allocation2 + $0x70] sm:$0xff]
      %v358 = vld [vmem:[%s1] sm:$0xf]
      %v359 = vld [vmem:[#allocation2 + $0x1] sm:$0xff]
      %v360 = vld [vmem:[#allocation2 + $0x11] sm:$0xff]
      %v361 = vld [vmem:[#allocation2 + $0x21] sm:$0xff]
      %v362 = vld [vmem:[#allocation2 + $0x31] sm:$0xff]
      %v363 = vld [vmem:[#allocation2 + $0x41] sm:$0xff]
      %v364 = vld [vmem:[#allocation2 + $0x51] sm:$0xff]
      %v365 = vld [vmem:[#allocation2 + $0x61] sm:$0xff]
      %v366 = vld [vmem:[#allocation2 + $0x71] sm:$0xff]
      %v367 = vld [vmem:[%s1 + $0x4] sm:$0xf]
      %v369 = vsel %vm313, %v359, 0
      %v372 = vsel %vm313, %v360, 0
      %v375 = vsel %vm313, %v361, 0
      %v378 = vsel %vm313, %v362, 0
      %v381 = vsel %vm313, %v363, 0
      %v384 = vsel %vm313, %v364, 0
      %v387 = vsel %vm313, %v365, 0
      %v390 = vsel %vm313, %v366, 0
      %vm392 = vcmask 1043456
      %v394 = vsel %vm392, %v367, 0
      %396 = vmatprep.subr.mxu0 0.0
      %397 = vmatpush1.msra.mxu0 %v394
      %398 = vmatprep.subr.mxu0 0.0
      %399 = vmatpush1.msra.mxu0 0.0
      %400 = vmatprep.subr.mxu0 0.0
      %401 = vmatpush1.msra.mxu0 0.0
      %402 = vmatprep.subr.mxu0 0.0
      %403 = vmatpush1.msra.mxu0 0.0
      %404 = vmatprep.subr.mxu0 0.0
      %405 = vmatpush1.msra.mxu0 0.0
      %406 = vmatprep.subr.mxu0 0.0
      %407 = vmatpush1.msra.mxu0 0.0
      %408 = vmatprep.subr.mxu0 0.0
      %409 = vmatpush1.msra.mxu0 0.0
      %410 = vmatprep.subr.mxu0 0.0
      %411 = vmatpush1.msra.mxu0 0.0
      %412 = vmatprep.subr.mxu0 0.0
      %413 = vmatpush1.msra.mxu0 0.0
      %414 = vmatprep.subr.mxu0 0.0
      %415 = vmatpush1.msra.mxu0 0.0
      %416 = vmatprep.subr.mxu0 0.0
      %417 = vmatpush1.msra.mxu0 0.0
      %418 = vmatprep.subr.mxu0 0.0
      %419 = vmatpush1.msra.mxu0 0.0
      %420 = vmatprep.subr.mxu0 0.0
      %421 = vmatpush1.msra.mxu0 0.0
      %422 = vmatprep.subr.mxu0 0.0
      %423 = vmatpush1.msra.mxu0 0.0
      %424 = vmatprep.subr.mxu0 0.0
      %425 = vmatpush1.msra.mxu0 0.0
      %426 = vmatprep.subr.mxu0 0.0
      %427 = vmatpush1.msra.mxu0 0.0
      %428 = vmatprep.subr.mxu0 0.0
      %429 = vmatpush1.msra.mxu0 0.0
      %430 = vmatprep.subr.mxu0 0.0
      %431 = vmatpush1.msra.mxu0 0.0
      %432 = vmatprep.subr.mxu0 0.0
      %433 = vmatpush1.msra.mxu0 0.0
      %434 = vmatprep.subr.mxu0 0.0
      %435 = vmatpush1.msra.mxu0 0.0
      %436 = vmatprep.subr.mxu0 0.0
      %437 = vmatpush1.msra.mxu0 0.0
      %438 = vmatprep.subr.mxu0 0.0
      %439 = vmatpush1.msra.mxu0 0.0
      %440 = vmatprep.subr.mxu0 0.0
      %441 = vmatpush1.msra.mxu0 0.0
      %442 = vmatprep.subr.mxu0 0.0
      %443 = vmatpush1.msra.mxu0 0.0
      %444 = vmatprep.subr.mxu0 0.0
      %445 = vmatpush1.msra.mxu0 0.0
      %446 = vmatprep.subr.mxu0 0.0
      %447 = vmatpush1.msra.mxu0 0.0
      %448 = vmatprep.subr.mxu0 0.0
      %449 = vmatpush1.msra.mxu0 0.0
      %450 = vmatprep.subr.mxu0 0.0
      %451 = vmatpush1.msra.mxu0 0.0
      %452 = vmatprep.subr.mxu0 0.0
      %453 = vmatpush1.msra.mxu0 0.0
      %454 = vmatprep.subr.mxu0 0.0
      %455 = vmatpush1.msra.mxu0 0.0
      %456 = vmatprep.subr.mxu0 0.0
      %457 = vmatpush1.msra.mxu0 0.0
      %458 = vmatprep.subr.mxu0 0.0
      %459 = vmatpush1.msra.mxu0 0.0
      %460 = vmatprep.mubr.f32.mxu0 0.0
      %461 = vmatmul.mubr.f32.gmra.mrb[0].mxu0 %v369
      %v462 = vpop.f32.mrb[0].mxu0
      %v463 = vadd.f32 0.0, %v462
      %v464 = vpop.f32.mrb[0].mxu0
      %465 = vmatprep.mubr.f32.mxu0 0.0
      %466 = vmatmul.mubr.f32.gmra.mrb[0].mxu0 %v372
      %v467 = vpop.f32.mrb[0].mxu0
      %v468 = vadd.f32 0.0, %v467
      %v469 = vpop.f32.mrb[0].mxu0
      %470 = vmatprep.mubr.f32.mxu0 0.0
      %471 = vmatmul.mubr.f32.gmra.mrb[0].mxu0 %v375
      %v472 = vpop.f32.mrb[0].mxu0
      %v473 = vadd.f32 0.0, %v472
      %v474 = vpop.f32.mrb[0].mxu0
      %475 = vmatprep.mubr.f32.mxu0 0.0
      %476 = vmatmul.mubr.f32.gmra.mrb[0].mxu0 %v378
      %v477 = vpop.f32.mrb[0].mxu0
      %v478 = vadd.f32 0.0, %v477
      %v479 = vpop.f32.mrb[0].mxu0
      %480 = vmatprep.mubr.f32.mxu0 0.0
      %481 = vmatmul.mubr.f32.gmra.mrb[0].mxu0 %v381
      %v482 = vpop.f32.mrb[0].mxu0
      %v483 = vadd.f32 0.0, %v482
      %v484 = vpop.f32.mrb[0].mxu0
      %485 = vmatprep.mubr.f32.mxu0 0.0
      %486 = vmatmul.mubr.f32.gmra.mrb[0].mxu0 %v384
      %v487 = vpop.f32.mrb[0].mxu0
      %v488 = vadd.f32 0.0, %v487
      %v489 = vpop.f32.mrb[0].mxu0
      %490 = vmatprep.mubr.f32.mxu0 0.0
      %491 = vmatmul.mubr.f32.gmra.mrb[0].mxu0 %v387
      %v492 = vpop.f32.mrb[0].mxu0
      %v493 = vadd.f32 0.0, %v492
      %v494 = vpop.f32.mrb[0].mxu0
      %495 = vmatprep.mubr.f32.mxu0 0.0
      %496 = vmatmul.mubr.f32.gmra.mrb[0].mxu0 %v390
      %v497 = vpop.f32.mrb[0].mxu0
      %v498 = vadd.f32 0.0, %v497
      %v499 = vpop.f32.mrb[0].mxu0
      %500 = vdwg.mxu0
      %v502 = vsel %vm313, %v350, 0
      %v505 = vsel %vm313, %v351, 0
      %v508 = vsel %vm313, %v352, 0
      %v511 = vsel %vm313, %v353, 0
      %v514 = vsel %vm313, %v354, 0
      %v517 = vsel %vm313, %v355, 0
      %v520 = vsel %vm313, %v356, 0
      %v523 = vsel %vm313, %v357, 0
      %v526 = vsel %vm392, %v358, 0
      %528 = vmatprep.subr.mxu0 0.0
      %529 = vmatpush1.msra.mxu0 %v526
      %530 = vmatprep.subr.mxu0 0.0
      %531 = vmatpush1.msra.mxu0 0.0
      %532 = vmatprep.subr.mxu0 0.0
      %533 = vmatpush1.msra.mxu0 0.0
      %534 = vmatprep.subr.mxu0 0.0
      %535 = vmatpush1.msra.mxu0 0.0
      %536 = vmatprep.subr.mxu0 0.0
      %537 = vmatpush1.msra.mxu0 0.0
      %538 = vmatprep.subr.mxu0 0.0
      %539 = vmatpush1.msra.mxu0 0.0
      %540 = vmatprep.subr.mxu0 0.0
      %541 = vmatpush1.msra.mxu0 0.0
      %542 = vmatprep.subr.mxu0 0.0
      %543 = vmatpush1.msra.mxu0 0.0
      %544 = vmatprep.subr.mxu0 0.0
      %545 = vmatpush1.msra.mxu0 0.0
      %546 = vmatprep.subr.mxu0 0.0
      %547 = vmatpush1.msra.mxu0 0.0
      %548 = vmatprep.subr.mxu0 0.0
      %549 = vmatpush1.msra.mxu0 0.0
      %550 = vmatprep.subr.mxu0 0.0
      %551 = vmatpush1.msra.mxu0 0.0
      %552 = vmatprep.subr.mxu0 0.0
      %553 = vmatpush1.msra.mxu0 0.0
      %554 = vmatprep.subr.mxu0 0.0
      %555 = vmatpush1.msra.mxu0 0.0
      %556 = vmatprep.subr.mxu0 0.0
      %557 = vmatpush1.msra.mxu0 0.0
      %558 = vmatprep.subr.mxu0 0.0
      %559 = vmatpush1.msra.mxu0 0.0
      %560 = vmatprep.subr.mxu0 0.0
      %561 = vmatpush1.msra.mxu0 0.0
      %562 = vmatprep.subr.mxu0 0.0
      %563 = vmatpush1.msra.mxu0 0.0
      %564 = vmatprep.subr.mxu0 0.0
      %565 = vmatpush1.msra.mxu0 0.0
      %566 = vmatprep.subr.mxu0 0.0
      %567 = vmatpush1.msra.mxu0 0.0
      %568 = vmatprep.subr.mxu0 0.0
      %569 = vmatpush1.msra.mxu0 0.0
      %570 = vmatprep.subr.mxu0 0.0
      %571 = vmatpush1.msra.mxu0 0.0
      %572 = vmatprep.subr.mxu0 0.0
      %573 = vmatpush1.msra.mxu0 0.0
      %574 = vmatprep.subr.mxu0 0.0
      %575 = vmatpush1.msra.mxu0 0.0
      %576 = vmatprep.subr.mxu0 0.0
      %577 = vmatpush1.msra.mxu0 0.0
      %578 = vmatprep.subr.mxu0 0.0
      %579 = vmatpush1.msra.mxu0 0.0
      %580 = vmatprep.subr.mxu0 0.0
      %581 = vmatpush1.msra.mxu0 0.0
      %582 = vmatprep.subr.mxu0 0.0
      %583 = vmatpush1.msra.mxu0 0.0
      %584 = vmatprep.subr.mxu0 0.0
      %585 = vmatpush1.msra.mxu0 0.0
      %586 = vmatprep.subr.mxu0 0.0
      %587 = vmatpush1.msra.mxu0 0.0
      %588 = vmatprep.subr.mxu0 0.0
      %589 = vmatpush1.msra.mxu0 0.0
      %590 = vmatprep.subr.mxu0 0.0
      %591 = vmatpush1.msra.mxu0 0.0
      %592 = vmatprep.mubr.f32.mxu0 0.0
      %593 = vmatmul.mubr.f32.gmra.mrb[0].mxu0 %v502
      %v594 = vpop.f32.mrb[0].mxu0
      %v595 = vadd.f32 %v463, %v594
      %v596 = vpop.f32.mrb[0].mxu0
      %597 = vmatprep.mubr.f32.mxu0 0.0
      %598 = vmatmul.mubr.f32.gmra.mrb[0].mxu0 %v505
      %v599 = vpop.f32.mrb[0].mxu0
      %v600 = vadd.f32 %v468, %v599
      %v601 = vpop.f32.mrb[0].mxu0
      %602 = vmatprep.mubr.f32.mxu0 0.0
      %603 = vmatmul.mubr.f32.gmra.mrb[0].mxu0 %v508
      %v604 = vpop.f32.mrb[0].mxu0
      %v605 = vadd.f32 %v473, %v604
      %v606 = vpop.f32.mrb[0].mxu0
      %607 = vmatprep.mubr.f32.mxu0 0.0
      %608 = vmatmul.mubr.f32.gmra.mrb[0].mxu0 %v511
      %v609 = vpop.f32.mrb[0].mxu0
      %v610 = vadd.f32 %v478, %v609
      %v611 = vpop.f32.mrb[0].mxu0
      %612 = vmatprep.mubr.f32.mxu0 0.0
      %613 = vmatmul.mubr.f32.gmra.mrb[0].mxu0 %v514
      %v614 = vpop.f32.mrb[0].mxu0
      %v615 = vadd.f32 %v483, %v614
      %v616 = vpop.f32.mrb[0].mxu0
      %617 = vmatprep.mubr.f32.mxu0 0.0
      %618 = vmatmul.mubr.f32.gmra.mrb[0].mxu0 %v517
      %v619 = vpop.f32.mrb[0].mxu0
      %v620 = vadd.f32 %v488, %v619
      %v621 = vpop.f32.mrb[0].mxu0
      %622 = vmatprep.mubr.f32.mxu0 0.0
      %623 = vmatmul.mubr.f32.gmra.mrb[0].mxu0 %v520
      %v624 = vpop.f32.mrb[0].mxu0
      %v625 = vadd.f32 %v493, %v624
      %v626 = vpop.f32.mrb[0].mxu0
      %627 = vmatprep.mubr.f32.mxu0 0.0
      %628 = vmatmul.mubr.f32.gmra.mrb[0].mxu0 %v523
      %v629 = vpop.f32.mrb[0].mxu0
      %v630 = vadd.f32 %v498, %v629
      %v631 = vpop.f32.mrb[0].mxu0
      %632 = vdwg.mxu0
      %v633 = vld [vmem:[#allocation2 + $0x2] sm:$0xff]
      %v634 = vld [vmem:[#allocation2 + $0x12] sm:$0xff]
      %v635 = vld [vmem:[#allocation2 + $0x22] sm:$0xff]
      %v636 = vld [vmem:[#allocation2 + $0x32] sm:$0xff]
      %v637 = vld [vmem:[#allocation2 + $0x42] sm:$0xff]
      %v638 = vld [vmem:[#allocation2 + $0x52] sm:$0xff]
      %v639 = vld [vmem:[#allocation2 + $0x62] sm:$0xff]
      %v640 = vld [vmem:[#allocation2 + $0x72] sm:$0xff]
      %v641 = vld [vmem:[%s1 + $0x8] sm:$0xf]
      %v643 = vsel %vm313, %v633, 0
      %v646 = vsel %vm313, %v634, 0
      %v649 = vsel %vm313, %v635, 0
      %v652 = vsel %vm313, %v636, 0
      %v655 = vsel %vm313, %v637, 0
      %v658 = vsel %vm313, %v638, 0
      %v661 = vsel %vm313, %v639, 0
      %v664 = vsel %vm313, %v640, 0
      %v667 = vsel %vm392, %v641, 0
      %669 = vmatprep.subr.mxu0 0.0
      %670 = vmatpush1.msra.mxu0 %v667
      %671 = vmatprep.subr.mxu0 0.0
      %672 = vmatpush1.msra.mxu0 0.0
      %673 = vmatprep.subr.mxu0 0.0
      %674 = vmatpush1.msra.mxu0 0.0
      %675 = vmatprep.subr.mxu0 0.0
      %676 = vmatpush1.msra.mxu0 0.0
      %677 = vmatprep.subr.mxu0 0.0
      %678 = vmatpush1.msra.mxu0 0.0
      %679 = vmatprep.subr.mxu0 0.0
      %680 = vmatpush1.msra.mxu0 0.0
      %681 = vmatprep.subr.mxu0 0.0
      %682 = vmatpush1.msra.mxu0 0.0
      %683 = vmatprep.subr.mxu0 0.0
      %684 = vmatpush1.msra.mxu0 0.0
      %685 = vmatprep.subr.mxu0 0.0
      %686 = vmatpush1.msra.mxu0 0.0
      %687 = vmatprep.subr.mxu0 0.0
      %688 = vmatpush1.msra.mxu0 0.0
      %689 = vmatprep.subr.mxu0 0.0
      %690 = vmatpush1.msra.mxu0 0.0
      %691 = vmatprep.subr.mxu0 0.0
      %692 = vmatpush1.msra.mxu0 0.0
      %693 = vmatprep.subr.mxu0 0.0
      %694 = vmatpush1.msra.mxu0 0.0
      %695 = vmatprep.subr.mxu0 0.0
      %696 = vmatpush1.msra.mxu0 0.0
      %697 = vmatprep.subr.mxu0 0.0
      %698 = vmatpush1.msra.mxu0 0.0
      %699 = vmatprep.subr.mxu0 0.0
      %700 = vmatpush1.msra.mxu0 0.0
      %701 = vmatprep.subr.mxu0 0.0
      %702 = vmatpush1.msra.mxu0 0.0
      %703 = vmatprep.subr.mxu0 0.0
      %704 = vmatpush1.msra.mxu0 0.0
      %705 = vmatprep.subr.mxu0 0.0
      %706 = vmatpush1.msra.mxu0 0.0
      %707 = vmatprep.subr.mxu0 0.0
      %708 = vmatpush1.msra.mxu0 0.0
      %709 = vmatprep.subr.mxu0 0.0
      %710 = vmatpush1.msra.mxu0 0.0
      %711 = vmatprep.subr.mxu0 0.0
      %712 = vmatpush1.msra.mxu0 0.0
      %713 = vmatprep.subr.mxu0 0.0
      %714 = vmatpush1.msra.mxu0 0.0
      %715 = vmatprep.subr.mxu0 0.0
      %716 = vmatpush1.msra.mxu0 0.0
      %717 = vmatprep.subr.mxu0 0.0
      %718 = vmatpush1.msra.mxu0 0.0
      %719 = vmatprep.subr.mxu0 0.0
      %720 = vmatpush1.msra.mxu0 0.0
      %721 = vmatprep.subr.mxu0 0.0
      %722 = vmatpush1.msra.mxu0 0.0
      %723 = vmatprep.subr.mxu0 0.0
      %724 = vmatpush1.msra.mxu0 0.0
      %725 = vmatprep.subr.mxu0 0.0
      %726 = vmatpush1.msra.mxu0 0.0
      %727 = vmatprep.subr.mxu0 0.0
      %728 = vmatpush1.msra.mxu0 0.0
      %729 = vmatprep.subr.mxu0 0.0
      %730 = vmatpush1.msra.mxu0 0.0
      %731 = vmatprep.subr.mxu0 0.0
      %732 = vmatpush1.msra.mxu0 0.0
      %733 = vmatprep.mubr.f32.mxu0 0.0
      %734 = vmatmul.mubr.f32.gmra.mrb[0].mxu0 %v643
      %v735 = vpop.f32.mrb[0].mxu0
      %v736 = vadd.f32 0.0, %v735
      %v737 = vpop.f32.mrb[0].mxu0
      %738 = vmatprep.mubr.f32.mxu0 0.0
      %739 = vmatmul.mubr.f32.gmra.mrb[0].mxu0 %v646
      %v740 = vpop.f32.mrb[0].mxu0
      %v741 = vadd.f32 0.0, %v740
      %v742 = vpop.f32.mrb[0].mxu0
      %743 = vmatprep.mubr.f32.mxu0 0.0
      %744 = vmatmul.mubr.f32.gmra.mrb[0].mxu0 %v649
      %v745 = vpop.f32.mrb[0].mxu0
      %v746 = vadd.f32 0.0, %v745
      %v747 = vpop.f32.mrb[0].mxu0
      %748 = vmatprep.mubr.f32.mxu0 0.0
      %749 = vmatmul.mubr.f32.gmra.mrb[0].mxu0 %v652
      %v750 = vpop.f32.mrb[0].mxu0
      %v751 = vadd.f32 0.0, %v750
      %v752 = vpop.f32.mrb[0].mxu0
      %753 = vmatprep.mubr.f32.mxu0 0.0
      %754 = vmatmul.mubr.f32.gmra.mrb[0].mxu0 %v655
      %v755 = vpop.f32.mrb[0].mxu0
      %v756 = vadd.f32 0.0, %v755
      %v757 = vpop.f32.mrb[0].mxu0
      %758 = vmatprep.mubr.f32.mxu0 0.0
      %759 = vmatmul.mubr.f32.gmra.mrb[0].mxu0 %v658
      %v760 = vpop.f32.mrb[0].mxu0
      %v761 = vadd.f32 0.0, %v760
      %v762 = vpop.f32.mrb[0].mxu0
      %763 = vmatprep.mubr.f32.mxu0 0.0
      %764 = vmatmul.mubr.f32.gmra.mrb[0].mxu0 %v661
      %v765 = vpop.f32.mrb[0].mxu0
      %v766 = vadd.f32 0.0, %v765
      %v767 = vpop.f32.mrb[0].mxu0
      %768 = vmatprep.mubr.f32.mxu0 0.0
      %769 = vmatmul.mubr.f32.gmra.mrb[0].mxu0 %v664
      %v770 = vpop.f32.mrb[0].mxu0
      %v771 = vadd.f32 0.0, %v770
      %v772 = vpop.f32.mrb[0].mxu0
      %773 = vdwg.mxu0
      %v774 = vadd.f32 %v595, %v736
      %v775 = vadd.f32 %v600, %v741
      %v776 = vadd.f32 %v605, %v746
      %v777 = vadd.f32 %v610, %v751
      %v778 = vadd.f32 %v615, %v756
      %v779 = vadd.f32 %v620, %v761
      %v780 = vadd.f32 %v625, %v766
      %v781 = vadd.f32 %v630, %v771
      %v782 = vld [vmem:[%s341] sm:$0xff]
      %v783 = vld [vmem:[%s341 + $0x10] sm:$0xff]
      %v784 = vld [vmem:[%s341 + $0x20] sm:$0xff]
      %v785 = vld [vmem:[%s341 + $0x30] sm:$0xff]
      %v786 = vld [vmem:[%s341 + $0x40] sm:$0xff]
      %v787 = vld [vmem:[%s341 + $0x50] sm:$0xff]
      %v788 = vld [vmem:[%s341 + $0x60] sm:$0xff]
      %v789 = vld [vmem:[%s341 + $0x70] sm:$0xff]
      %v790 = vld [vmem:[%s1 + $0xc] sm:$0xf]
      %v792 = vsel %vm313, %v782, 0
      %v795 = vsel %vm313, %v783, 0
      %v798 = vsel %vm313, %v784, 0
      %v801 = vsel %vm313, %v785, 0
      %v804 = vsel %vm313, %v786, 0
      %v807 = vsel %vm313, %v787, 0
      %v810 = vsel %vm313, %v788, 0
      %v813 = vsel %vm313, %v789, 0
      %v816 = vsel %vm392, %v790, 0
      %818 = vmatprep.subr.mxu0 0.0
      %819 = vmatpush1.msra.mxu0 %v816
      %820 = vmatprep.subr.mxu0 0.0
      %821 = vmatpush1.msra.mxu0 0.0
      %822 = vmatprep.subr.mxu0 0.0
      %823 = vmatpush1.msra.mxu0 0.0
      %824 = vmatprep.subr.mxu0 0.0
      %825 = vmatpush1.msra.mxu0 0.0
      %826 = vmatprep.subr.mxu0 0.0
      %827 = vmatpush1.msra.mxu0 0.0
      %828 = vmatprep.subr.mxu0 0.0
      %829 = vmatpush1.msra.mxu0 0.0
      %830 = vmatprep.subr.mxu0 0.0
      %831 = vmatpush1.msra.mxu0 0.0
      %832 = vmatprep.subr.mxu0 0.0
      %833 = vmatpush1.msra.mxu0 0.0
      %834 = vmatprep.subr.mxu0 0.0
      %835 = vmatpush1.msra.mxu0 0.0
      %836 = vmatprep.subr.mxu0 0.0
      %837 = vmatpush1.msra.mxu0 0.0
      %838 = vmatprep.subr.mxu0 0.0
      %839 = vmatpush1.msra.mxu0 0.0
      %840 = vmatprep.subr.mxu0 0.0
      %841 = vmatpush1.msra.mxu0 0.0
      %842 = vmatprep.subr.mxu0 0.0
      %843 = vmatpush1.msra.mxu0 0.0
      %844 = vmatprep.subr.mxu0 0.0
      %845 = vmatpush1.msra.mxu0 0.0
      %846 = vmatprep.subr.mxu0 0.0
      %847 = vmatpush1.msra.mxu0 0.0
      %848 = vmatprep.subr.mxu0 0.0
      %849 = vmatpush1.msra.mxu0 0.0
      %850 = vmatprep.subr.mxu0 0.0
      %851 = vmatpush1.msra.mxu0 0.0
      %852 = vmatprep.subr.mxu0 0.0
      %853 = vmatpush1.msra.mxu0 0.0
      %854 = vmatprep.subr.mxu0 0.0
      %855 = vmatpush1.msra.mxu0 0.0
      %856 = vmatprep.subr.mxu0 0.0
      %857 = vmatpush1.msra.mxu0 0.0
      %858 = vmatprep.subr.mxu0 0.0
      %859 = vmatpush1.msra.mxu0 0.0
      %860 = vmatprep.subr.mxu0 0.0
      %861 = vmatpush1.msra.mxu0 0.0
      %862 = vmatprep.subr.mxu0 0.0
      %863 = vmatpush1.msra.mxu0 0.0
      %864 = vmatprep.subr.mxu0 0.0
      %865 = vmatpush1.msra.mxu0 0.0
      %866 = vmatprep.subr.mxu0 0.0
      %867 = vmatpush1.msra.mxu0 0.0
      %868 = vmatprep.subr.mxu0 0.0
      %869 = vmatpush1.msra.mxu0 0.0
      %870 = vmatprep.subr.mxu0 0.0
      %871 = vmatpush1.msra.mxu0 0.0
      %872 = vmatprep.subr.mxu0 0.0
      %873 = vmatpush1.msra.mxu0 0.0
      %874 = vmatprep.subr.mxu0 0.0
      %875 = vmatpush1.msra.mxu0 0.0
      %876 = vmatprep.subr.mxu0 0.0
      %877 = vmatpush1.msra.mxu0 0.0
      %878 = vmatprep.subr.mxu0 0.0
      %879 = vmatpush1.msra.mxu0 0.0
      %880 = vmatprep.subr.mxu0 0.0
      %881 = vmatpush1.msra.mxu0 0.0
      %882 = vmatprep.mubr.f32.mxu0 0.0
      %883 = vmatmul.mubr.f32.gmra.mrb[0].mxu0 %v792
      %v884 = vpop.f32.mrb[0].mxu0
      %v885 = vadd.f32 0.0, %v884
      %v886 = vpop.f32.mrb[0].mxu0
      %887 = vmatprep.mubr.f32.mxu0 0.0
      %888 = vmatmul.mubr.f32.gmra.mrb[0].mxu0 %v795
      %v889 = vpop.f32.mrb[0].mxu0
      %v890 = vadd.f32 0.0, %v889
      %v891 = vpop.f32.mrb[0].mxu0
      %892 = vmatprep.mubr.f32.mxu0 0.0
      %893 = vmatmul.mubr.f32.gmra.mrb[0].mxu0 %v798
      %v894 = vpop.f32.mrb[0].mxu0
      %v895 = vadd.f32 0.0, %v894
      %v896 = vpop.f32.mrb[0].mxu0
      %897 = vmatprep.mubr.f32.mxu0 0.0
      %898 = vmatmul.mubr.f32.gmra.mrb[0].mxu0 %v801
      %v899 = vpop.f32.mrb[0].mxu0
      %v900 = vadd.f32 0.0, %v899
      %v901 = vpop.f32.mrb[0].mxu0
      %902 = vmatprep.mubr.f32.mxu0 0.0
      %903 = vmatmul.mubr.f32.gmra.mrb[0].mxu0 %v804
      %v904 = vpop.f32.mrb[0].mxu0
      %v905 = vadd.f32 0.0, %v904
      %v906 = vpop.f32.mrb[0].mxu0
      %907 = vmatprep.mubr.f32.mxu0 0.0
      %908 = vmatmul.mubr.f32.gmra.mrb[0].mxu0 %v807
      %v909 = vpop.f32.mrb[0].mxu0
      %v910 = vadd.f32 0.0, %v909
      %v911 = vpop.f32.mrb[0].mxu0
      %912 = vmatprep.mubr.f32.mxu0 0.0
      %913 = vmatmul.mubr.f32.gmra.mrb[0].mxu0 %v810
      %v914 = vpop.f32.mrb[0].mxu0
      %v915 = vadd.f32 0.0, %v914
      %v916 = vpop.f32.mrb[0].mxu0
      %917 = vmatprep.mubr.f32.mxu0 0.0
      %918 = vmatmul.mubr.f32.gmra.mrb[0].mxu0 %v813
      %v919 = vpop.f32.mrb[0].mxu0
      %v920 = vadd.f32 0.0, %v919
      %v921 = vpop.f32.mrb[0].mxu0
      %922 = vdwg.mxu0
      %v923 = vadd.f32 %v774, %v885
      %v924 = vadd.f32 %v775, %v890
      %v925 = vadd.f32 %v776, %v895
      %v926 = vadd.f32 %v777, %v900
      %v927 = vadd.f32 %v778, %v905
      %v928 = vadd.f32 %v779, %v910
      %v929 = vadd.f32 %v780, %v915
      %v930 = vadd.f32 %v781, %v920
      %v931 = vld [vmem:[%s341 + $0x1] sm:$0xff]
      %v932 = vld [vmem:[%s341 + $0x11] sm:$0xff]
      %v933 = vld [vmem:[%s341 + $0x21] sm:$0xff]
      %v934 = vld [vmem:[%s341 + $0x31] sm:$0xff]
      %v935 = vld [vmem:[%s341 + $0x41] sm:$0xff]
      %v936 = vld [vmem:[%s341 + $0x51] sm:$0xff]
      %v937 = vld [vmem:[%s341 + $0x61] sm:$0xff]
      %v938 = vld [vmem:[%s341 + $0x71] sm:$0xff]
      %v939 = vld [vmem:[%s1 + $0x10] sm:$0xf]
      %v941 = vsel %vm313, %v931, 0
      %v944 = vsel %vm313, %v932, 0
      %v947 = vsel %vm313, %v933, 0
      %v950 = vsel %vm313, %v934, 0
      %v953 = vsel %vm313, %v935, 0
      %v956 = vsel %vm313, %v936, 0
      %v959 = vsel %vm313, %v937, 0
      %v962 = vsel %vm313, %v938, 0
      %v965 = vsel %vm392, %v939, 0
      %967 = vmatprep.subr.mxu0 0.0
      %968 = vmatpush1.msra.mxu0 %v965
      %969 = vmatprep.subr.mxu0 0.0
      %970 = vmatpush1.msra.mxu0 0.0
      %971 = vmatprep.subr.mxu0 0.0
      %972 = vmatpush1.msra.mxu0 0.0
      %973 = vmatprep.subr.mxu0 0.0
      %974 = vmatpush1.msra.mxu0 0.0
      %975 = vmatprep.subr.mxu0 0.0
      %976 = vmatpush1.msra.mxu0 0.0
      %977 = vmatprep.subr.mxu0 0.0
      %978 = vmatpush1.msra.mxu0 0.0
      %979 = vmatprep.subr.mxu0 0.0
      %980 = vmatpush1.msra.mxu0 0.0
      %981 = vmatprep.subr.mxu0 0.0
      %982 = vmatpush1.msra.mxu0 0.0
      %983 = vmatprep.subr.mxu0 0.0
      %984 = vmatpush1.msra.mxu0 0.0
      %985 = vmatprep.subr.mxu0 0.0
      %986 = vmatpush1.msra.mxu0 0.0
      %987 = vmatprep.subr.mxu0 0.0
      %988 = vmatpush1.msra.mxu0 0.0
      %989 = vmatprep.subr.mxu0 0.0
      %990 = vmatpush1.msra.mxu0 0.0
      %991 = vmatprep.subr.mxu0 0.0
      %992 = vmatpush1.msra.mxu0 0.0
      %993 = vmatprep.subr.mxu0 0.0
      %994 = vmatpush1.msra.mxu0 0.0
      %995 = vmatprep.subr.mxu0 0.0
      %996 = vmatpush1.msra.mxu0 0.0
      %997 = vmatprep.subr.mxu0 0.0
      %998 = vmatpush1.msra.mxu0 0.0
      %999 = vmatprep.subr.mxu0 0.0
      %1000 = vmatpush1.msra.mxu0 0.0
      %1001 = vmatprep.subr.mxu0 0.0
      %1002 = vmatpush1.msra.mxu0 0.0
      %1003 = vmatprep.subr.mxu0 0.0
      %1004 = vmatpush1.msra.mxu0 0.0
      %1005 = vmatprep.subr.mxu0 0.0
      %1006 = vmatpush1.msra.mxu0 0.0
      %1007 = vmatprep.subr.mxu0 0.0
      %1008 = vmatpush1.msra.mxu0 0.0
      %1009 = vmatprep.subr.mxu0 0.0
      %1010 = vmatpush1.msra.mxu0 0.0
      %1011 = vmatprep.subr.mxu0 0.0
      %1012 = vmatpush1.msra.mxu0 0.0
      %1013 = vmatprep.subr.mxu0 0.0
      %1014 = vmatpush1.msra.mxu0 0.0
      %1015 = vmatprep.subr.mxu0 0.0
      %1016 = vmatpush1.msra.mxu0 0.0
      %1017 = vmatprep.subr.mxu0 0.0
      %1018 = vmatpush1.msra.mxu0 0.0
      %1019 = vmatprep.subr.mxu0 0.0
      %1020 = vmatpush1.msra.mxu0 0.0
      %1021 = vmatprep.subr.mxu0 0.0
      %1022 = vmatpush1.msra.mxu0 0.0
      %1023 = vmatprep.subr.mxu0 0.0
      %1024 = vmatpush1.msra.mxu0 0.0
      %1025 = vmatprep.subr.mxu0 0.0
      %1026 = vmatpush1.msra.mxu0 0.0
      %1027 = vmatprep.subr.mxu0 0.0
      %1028 = vmatpush1.msra.mxu0 0.0
      %1029 = vmatprep.subr.mxu0 0.0
      %1030 = vmatpush1.msra.mxu0 0.0
      %1031 = vmatprep.mubr.f32.mxu0 0.0
      %1032 = vmatmul.mubr.f32.gmra.mrb[0].mxu0 %v941
      %v1033 = vpop.f32.mrb[0].mxu0
      %v1034 = vadd.f32 0.0, %v1033
      %v1035 = vpop.f32.mrb[0].mxu0
      %1036 = vmatprep.mubr.f32.mxu0 0.0
      %1037 = vmatmul.mubr.f32.gmra.mrb[0].mxu0 %v944
      %v1038 = vpop.f32.mrb[0].mxu0
      %v1039 = vadd.f32 0.0, %v1038
      %v1040 = vpop.f32.mrb[0].mxu0
      %1041 = vmatprep.mubr.f32.mxu0 0.0
      %1042 = vmatmul.mubr.f32.gmra.mrb[0].mxu0 %v947
      %v1043 = vpop.f32.mrb[0].mxu0
      %v1044 = vadd.f32 0.0, %v1043
      %v1045 = vpop.f32.mrb[0].mxu0
      %1046 = vmatprep.mubr.f32.mxu0 0.0
      %1047 = vmatmul.mubr.f32.gmra.mrb[0].mxu0 %v950
      %v1048 = vpop.f32.mrb[0].mxu0
      %v1049 = vadd.f32 0.0, %v1048
      %v1050 = vpop.f32.mrb[0].mxu0
      %1051 = vmatprep.mubr.f32.mxu0 0.0
      %1052 = vmatmul.mubr.f32.gmra.mrb[0].mxu0 %v953
      %v1053 = vpop.f32.mrb[0].mxu0
      %v1054 = vadd.f32 0.0, %v1053
      %v1055 = vpop.f32.mrb[0].mxu0
      %1056 = vmatprep.mubr.f32.mxu0 0.0
      %1057 = vmatmul.mubr.f32.gmra.mrb[0].mxu0 %v956
      %v1058 = vpop.f32.mrb[0].mxu0
      %v1059 = vadd.f32 0.0, %v1058
      %v1060 = vpop.f32.mrb[0].mxu0
      %1061 = vmatprep.mubr.f32.mxu0 0.0
      %1062 = vmatmul.mubr.f32.gmra.mrb[0].mxu0 %v959
      %v1063 = vpop.f32.mrb[0].mxu0
      %v1064 = vadd.f32 0.0, %v1063
      %v1065 = vpop.f32.mrb[0].mxu0
      %1066 = vmatprep.mubr.f32.mxu0 0.0
      %1067 = vmatmul.mubr.f32.gmra.mrb[0].mxu0 %v962
      %v1068 = vpop.f32.mrb[0].mxu0
      %v1069 = vadd.f32 0.0, %v1068
      %v1070 = vpop.f32.mrb[0].mxu0
      %1071 = vdwg.mxu0
      %v1072 = vadd.f32 %v923, %v1034
      %v1073 = vadd.f32 %v924, %v1039
      %v1074 = vadd.f32 %v925, %v1044
      %v1075 = vadd.f32 %v926, %v1049
      %v1076 = vadd.f32 %v927, %v1054
      %v1077 = vadd.f32 %v928, %v1059
      %v1078 = vadd.f32 %v929, %v1064
      %v1079 = vadd.f32 %v930, %v1069
      %v1080 = vld [vmem:[%s341 + $0x2] sm:$0xff]
      %v1081 = vld [vmem:[%s341 + $0x12] sm:$0xff]
      %v1082 = vld [vmem:[%s341 + $0x22] sm:$0xff]
      %v1083 = vld [vmem:[%s341 + $0x32] sm:$0xff]
      %v1084 = vld [vmem:[%s341 + $0x42] sm:$0xff]
      %v1085 = vld [vmem:[%s341 + $0x52] sm:$0xff]
      %v1086 = vld [vmem:[%s341 + $0x62] sm:$0xff]
      %v1087 = vld [vmem:[%s341 + $0x72] sm:$0xff]
      %v1088 = vld [vmem:[%s1 + $0x14] sm:$0xf]
      %v1090 = vsel %vm313, %v1080, 0
      %v1093 = vsel %vm313, %v1081, 0
      %v1096 = vsel %vm313, %v1082, 0
      %v1099 = vsel %vm313, %v1083, 0
      %v1102 = vsel %vm313, %v1084, 0
      %v1105 = vsel %vm313, %v1085, 0
      %v1108 = vsel %vm313, %v1086, 0
      %v1111 = vsel %vm313, %v1087, 0
      %v1114 = vsel %vm392, %v1088, 0
      %1116 = vmatprep.subr.mxu0 0.0
      %1117 = vmatpush1.msra.mxu0 %v1114
      %1118 = vmatprep.subr.mxu0 0.0
      %1119 = vmatpush1.msra.mxu0 0.0
      %1120 = vmatprep.subr.mxu0 0.0
      %1121 = vmatpush1.msra.mxu0 0.0
      %1122 = vmatprep.subr.mxu0 0.0
      %1123 = vmatpush1.msra.mxu0 0.0
      %1124 = vmatprep.subr.mxu0 0.0
      %1125 = vmatpush1.msra.mxu0 0.0
      %1126 = vmatprep.subr.mxu0 0.0
      %1127 = vmatpush1.msra.mxu0 0.0
      %1128 = vmatprep.subr.mxu0 0.0
      %1129 = vmatpush1.msra.mxu0 0.0
      %1130 = vmatprep.subr.mxu0 0.0
      %1131 = vmatpush1.msra.mxu0 0.0
      %1132 = vmatprep.subr.mxu0 0.0
      %1133 = vmatpush1.msra.mxu0 0.0
      %1134 = vmatprep.subr.mxu0 0.0
      %1135 = vmatpush1.msra.mxu0 0.0
      %1136 = vmatprep.subr.mxu0 0.0
      %1137 = vmatpush1.msra.mxu0 0.0
      %1138 = vmatprep.subr.mxu0 0.0
      %1139 = vmatpush1.msra.mxu0 0.0
      %1140 = vmatprep.subr.mxu0 0.0
      %1141 = vmatpush1.msra.mxu0 0.0
      %1142 = vmatprep.subr.mxu0 0.0
      %1143 = vmatpush1.msra.mxu0 0.0
      %1144 = vmatprep.subr.mxu0 0.0
      %1145 = vmatpush1.msra.mxu0 0.0
      %1146 = vmatprep.subr.mxu0 0.0
      %1147 = vmatpush1.msra.mxu0 0.0
      %1148 = vmatprep.subr.mxu0 0.0
      %1149 = vmatpush1.msra.mxu0 0.0
      %1150 = vmatprep.subr.mxu0 0.0
      %1151 = vmatpush1.msra.mxu0 0.0
      %1152 = vmatprep.subr.mxu0 0.0
      %1153 = vmatpush1.msra.mxu0 0.0
      %1154 = vmatprep.subr.mxu0 0.0
      %1155 = vmatpush1.msra.mxu0 0.0
      %1156 = vmatprep.subr.mxu0 0.0
      %1157 = vmatpush1.msra.mxu0 0.0
      %1158 = vmatprep.subr.mxu0 0.0
      %1159 = vmatpush1.msra.mxu0 0.0
      %1160 = vmatprep.subr.mxu0 0.0
      %1161 = vmatpush1.msra.mxu0 0.0
      %1162 = vmatprep.subr.mxu0 0.0
      %1163 = vmatpush1.msra.mxu0 0.0
      %1164 = vmatprep.subr.mxu0 0.0
      %1165 = vmatpush1.msra.mxu0 0.0
      %1166 = vmatprep.subr.mxu0 0.0
      %1167 = vmatpush1.msra.mxu0 0.0
      %1168 = vmatprep.subr.mxu0 0.0
      %1169 = vmatpush1.msra.mxu0 0.0
      %1170 = vmatprep.subr.mxu0 0.0
      %1171 = vmatpush1.msra.mxu0 0.0
      %1172 = vmatprep.subr.mxu0 0.0
      %1173 = vmatpush1.msra.mxu0 0.0
      %1174 = vmatprep.subr.mxu0 0.0
      %1175 = vmatpush1.msra.mxu0 0.0
      %1176 = vmatprep.subr.mxu0 0.0
      %1177 = vmatpush1.msra.mxu0 0.0
      %1178 = vmatprep.subr.mxu0 0.0
      %1179 = vmatpush1.msra.mxu0 0.0
      %1180 = vmatprep.mubr.f32.mxu0 0.0
      %1181 = vmatmul.mubr.f32.gmra.mrb[0].mxu0 %v1090
      %v1182 = vpop.f32.mrb[0].mxu0
      %v1183 = vadd.f32 0.0, %v1182
      %v1184 = vpop.f32.mrb[0].mxu0
      %1185 = vmatprep.mubr.f32.mxu0 0.0
      %1186 = vmatmul.mubr.f32.gmra.mrb[0].mxu0 %v1093
      %v1187 = vpop.f32.mrb[0].mxu0
      %v1188 = vadd.f32 0.0, %v1187
      %v1189 = vpop.f32.mrb[0].mxu0
      %1190 = vmatprep.mubr.f32.mxu0 0.0
      %1191 = vmatmul.mubr.f32.gmra.mrb[0].mxu0 %v1096
      %v1192 = vpop.f32.mrb[0].mxu0
      %v1193 = vadd.f32 0.0, %v1192
      %v1194 = vpop.f32.mrb[0].mxu0
      %1195 = vmatprep.mubr.f32.mxu0 0.0
      %1196 = vmatmul.mubr.f32.gmra.mrb[0].mxu0 %v1099
      %v1197 = vpop.f32.mrb[0].mxu0
      %v1198 = vadd.f32 0.0, %v1197
      %v1199 = vpop.f32.mrb[0].mxu0
      %1200 = vmatprep.mubr.f32.mxu0 0.0
      %1201 = vmatmul.mubr.f32.gmra.mrb[0].mxu0 %v1102
      %v1202 = vpop.f32.mrb[0].mxu0
      %v1203 = vadd.f32 0.0, %v1202
      %v1204 = vpop.f32.mrb[0].mxu0
      %1205 = vmatprep.mubr.f32.mxu0 0.0
      %1206 = vmatmul.mubr.f32.gmra.mrb[0].mxu0 %v1105
      %v1207 = vpop.f32.mrb[0].mxu0
      %v1208 = vadd.f32 0.0, %v1207
      %v1209 = vpop.f32.mrb[0].mxu0
      %1210 = vmatprep.mubr.f32.mxu0 0.0
      %1211 = vmatmul.mubr.f32.gmra.mrb[0].mxu0 %v1108
      %v1212 = vpop.f32.mrb[0].mxu0
      %v1213 = vadd.f32 0.0, %v1212
      %v1214 = vpop.f32.mrb[0].mxu0
      %1215 = vmatprep.mubr.f32.mxu0 0.0
      %1216 = vmatmul.mubr.f32.gmra.mrb[0].mxu0 %v1111
      %v1217 = vpop.f32.mrb[0].mxu0
      %v1218 = vadd.f32 0.0, %v1217
      %v1219 = vpop.f32.mrb[0].mxu0
      %1220 = vdwg.mxu0
      %v1221 = vadd.f32 %v1072, %v1183
      %v1222 = vadd.f32 %v1073, %v1188
      %v1223 = vadd.f32 %v1074, %v1193
      %v1224 = vadd.f32 %v1075, %v1198
      %v1225 = vadd.f32 %v1076, %v1203
      %v1226 = vadd.f32 %v1077, %v1208
      %v1227 = vadd.f32 %v1078, %v1213
      %v1228 = vadd.f32 %v1079, %v1218
      %s1229 = scalar_lea.vmem [#allocation2], 32
      %v1230 = vld [vmem:[%s1229] sm:$0xff]
      %v1231 = vld [vmem:[%s1229 + $0x10] sm:$0xff]
      %v1232 = vld [vmem:[%s1229 + $0x20] sm:$0xff]
      %v1233 = vld [vmem:[%s1229 + $0x30] sm:$0xff]
      %v1234 = vld [vmem:[%s1229 + $0x40] sm:$0xff]
      %v1235 = vld [vmem:[%s1229 + $0x50] sm:$0xff]
      %v1236 = vld [vmem:[%s1229 + $0x60] sm:$0xff]
      %v1237 = vld [vmem:[%s1229 + $0x70] sm:$0xff]
      %v1238 = vld [vmem:[%s1 + $0x18] sm:$0xf]
      %v1240 = vsel %vm313, %v1230, 0
      %v1243 = vsel %vm313, %v1231, 0
      %v1246 = vsel %vm313, %v1232, 0
      %v1249 = vsel %vm313, %v1233, 0
      %v1252 = vsel %vm313, %v1234, 0
      %v1255 = vsel %vm313, %v1235, 0
      %v1258 = vsel %vm313, %v1236, 0
      %v1261 = vsel %vm313, %v1237, 0
      %v1264 = vsel %vm392, %v1238, 0
      %1266 = vmatprep.subr.mxu0 0.0
      %1267 = vmatpush1.msra.mxu0 %v1264
      %1268 = vmatprep.subr.mxu0 0.0
      %1269 = vmatpush1.msra.mxu0 0.0
      %1270 = vmatprep.subr.mxu0 0.0
      %1271 = vmatpush1.msra.mxu0 0.0
      %1272 = vmatprep.subr.mxu0 0.0
      %1273 = vmatpush1.msra.mxu0 0.0
      %1274 = vmatprep.subr.mxu0 0.0
      %1275 = vmatpush1.msra.mxu0 0.0
      %1276 = vmatprep.subr.mxu0 0.0
      %1277 = vmatpush1.msra.mxu0 0.0
      %1278 = vmatprep.subr.mxu0 0.0
      %1279 = vmatpush1.msra.mxu0 0.0
      %1280 = vmatprep.subr.mxu0 0.0
      %1281 = vmatpush1.msra.mxu0 0.0
      %1282 = vmatprep.subr.mxu0 0.0
      %1283 = vmatpush1.msra.mxu0 0.0
      %1284 = vmatprep.subr.mxu0 0.0
      %1285 = vmatpush1.msra.mxu0 0.0
      %1286 = vmatprep.subr.mxu0 0.0
      %1287 = vmatpush1.msra.mxu0 0.0
      %1288 = vmatprep.subr.mxu0 0.0
      %1289 = vmatpush1.msra.mxu0 0.0
      %1290 = vmatprep.subr.mxu0 0.0
      %1291 = vmatpush1.msra.mxu0 0.0
      %1292 = vmatprep.subr.mxu0 0.0
      %1293 = vmatpush1.msra.mxu0 0.0
      %1294 = vmatprep.subr.mxu0 0.0
      %1295 = vmatpush1.msra.mxu0 0.0
      %1296 = vmatprep.subr.mxu0 0.0
      %1297 = vmatpush1.msra.mxu0 0.0
      %1298 = vmatprep.subr.mxu0 0.0
      %1299 = vmatpush1.msra.mxu0 0.0
      %1300 = vmatprep.subr.mxu0 0.0
      %1301 = vmatpush1.msra.mxu0 0.0
      %1302 = vmatprep.subr.mxu0 0.0
      %1303 = vmatpush1.msra.mxu0 0.0
      %1304 = vmatprep.subr.mxu0 0.0
      %1305 = vmatpush1.msra.mxu0 0.0
      %1306 = vmatprep.subr.mxu0 0.0
      %1307 = vmatpush1.msra.mxu0 0.0
      %1308 = vmatprep.subr.mxu0 0.0
      %1309 = vmatpush1.msra.mxu0 0.0
      %1310 = vmatprep.subr.mxu0 0.0
      %1311 = vmatpush1.msra.mxu0 0.0
      %1312 = vmatprep.subr.mxu0 0.0
      %1313 = vmatpush1.msra.mxu0 0.0
      %1314 = vmatprep.subr.mxu0 0.0
      %1315 = vmatpush1.msra.mxu0 0.0
      %1316 = vmatprep.subr.mxu0 0.0
      %1317 = vmatpush1.msra.mxu0 0.0
      %1318 = vmatprep.subr.mxu0 0.0
      %1319 = vmatpush1.msra.mxu0 0.0
      %1320 = vmatprep.subr.mxu0 0.0
      %1321 = vmatpush1.msra.mxu0 0.0
      %1322 = vmatprep.subr.mxu0 0.0
      %1323 = vmatpush1.msra.mxu0 0.0
      %1324 = vmatprep.subr.mxu0 0.0
      %1325 = vmatpush1.msra.mxu0 0.0
      %1326 = vmatprep.subr.mxu0 0.0
      %1327 = vmatpush1.msra.mxu0 0.0
      %1328 = vmatprep.subr.mxu0 0.0
      %1329 = vmatpush1.msra.mxu0 0.0
      %1330 = vmatprep.mubr.f32.mxu0 0.0
      %1331 = vmatmul.mubr.f32.gmra.mrb[0].mxu0 %v1240
      %v1332 = vpop.f32.mrb[0].mxu0
      %v1333 = vadd.f32 0.0, %v1332
      %v1334 = vpop.f32.mrb[0].mxu0
      %1335 = vmatprep.mubr.f32.mxu0 0.0
      %1336 = vmatmul.mubr.f32.gmra.mrb[0].mxu0 %v1243
      %v1337 = vpop.f32.mrb[0].mxu0
      %v1338 = vadd.f32 0.0, %v1337
      %v1339 = vpop.f32.mrb[0].mxu0
      %1340 = vmatprep.mubr.f32.mxu0 0.0
      %1341 = vmatmul.mubr.f32.gmra.mrb[0].mxu0 %v1246
      %v1342 = vpop.f32.mrb[0].mxu0
      %v1343 = vadd.f32 0.0, %v1342
      %v1344 = vpop.f32.mrb[0].mxu0
      %1345 = vmatprep.mubr.f32.mxu0 0.0
      %1346 = vmatmul.mubr.f32.gmra.mrb[0].mxu0 %v1249
      %v1347 = vpop.f32.mrb[0].mxu0
      %v1348 = vadd.f32 0.0, %v1347
      %v1349 = vpop.f32.mrb[0].mxu0
      %1350 = vmatprep.mubr.f32.mxu0 0.0
      %1351 = vmatmul.mubr.f32.gmra.mrb[0].mxu0 %v1252
      %v1352 = vpop.f32.mrb[0].mxu0
      %v1353 = vadd.f32 0.0, %v1352
      %v1354 = vpop.f32.mrb[0].mxu0
      %1355 = vmatprep.mubr.f32.mxu0 0.0
      %1356 = vmatmul.mubr.f32.gmra.mrb[0].mxu0 %v1255
      %v1357 = vpop.f32.mrb[0].mxu0
      %v1358 = vadd.f32 0.0, %v1357
      %v1359 = vpop.f32.mrb[0].mxu0
      %1360 = vmatprep.mubr.f32.mxu0 0.0
      %1361 = vmatmul.mubr.f32.gmra.mrb[0].mxu0 %v1258
      %v1362 = vpop.f32.mrb[0].mxu0
      %v1363 = vadd.f32 0.0, %v1362
      %v1364 = vpop.f32.mrb[0].mxu0
      %1365 = vmatprep.mubr.f32.mxu0 0.0
      %1366 = vmatmul.mubr.f32.gmra.mrb[0].mxu0 %v1261
      %v1367 = vpop.f32.mrb[0].mxu0
      %v1368 = vadd.f32 0.0, %v1367
      %v1369 = vpop.f32.mrb[0].mxu0
      %1370 = vdwg.mxu0
      %v1371 = vadd.f32 %v1221, %v1333
      %v1372 = vadd.f32 %v1222, %v1338
      %v1373 = vadd.f32 %v1223, %v1343
      %v1374 = vadd.f32 %v1224, %v1348
      %v1375 = vadd.f32 %v1225, %v1353
      %v1376 = vadd.f32 %v1226, %v1358
      %v1377 = vadd.f32 %v1227, %v1363
      %v1378 = vadd.f32 %v1228, %v1368
      %v1379 = vld [vmem:[%s1229 + $0x1] sm:$0xff]
      %v1380 = vld [vmem:[%s1229 + $0x11] sm:$0xff]
      %v1381 = vld [vmem:[%s1229 + $0x21] sm:$0xff]
      %v1382 = vld [vmem:[%s1229 + $0x31] sm:$0xff]
      %v1383 = vld [vmem:[%s1229 + $0x41] sm:$0xff]
      %v1384 = vld [vmem:[%s1229 + $0x51] sm:$0xff]
      %v1385 = vld [vmem:[%s1229 + $0x61] sm:$0xff]
      %v1386 = vld [vmem:[%s1229 + $0x71] sm:$0xff]
      %v1387 = vld [vmem:[%s1 + $0x1c] sm:$0xf]
      %v1389 = vsel %vm313, %v1379, 0
      %v1392 = vsel %vm313, %v1380, 0
      %v1395 = vsel %vm313, %v1381, 0
      %v1398 = vsel %vm313, %v1382, 0
      %v1401 = vsel %vm313, %v1383, 0
      %v1404 = vsel %vm313, %v1384, 0
      %v1407 = vsel %vm313, %v1385, 0
      %v1410 = vsel %vm313, %v1386, 0
      %v1413 = vsel %vm392, %v1387, 0
      %1415 = vmatprep.subr.mxu0 0.0
      %1416 = vmatpush1.msra.mxu0 %v1413
      %1417 = vmatprep.subr.mxu0 0.0
      %1418 = vmatpush1.msra.mxu0 0.0
      %1419 = vmatprep.subr.mxu0 0.0
      %1420 = vmatpush1.msra.mxu0 0.0
      %1421 = vmatprep.subr.mxu0 0.0
      %1422 = vmatpush1.msra.mxu0 0.0
      %1423 = vmatprep.subr.mxu0 0.0
      %1424 = vmatpush1.msra.mxu0 0.0
      %1425 = vmatprep.subr.mxu0 0.0
      %1426 = vmatpush1.msra.mxu0 0.0
      %1427 = vmatprep.subr.mxu0 0.0
      %1428 = vmatpush1.msra.mxu0 0.0
      %1429 = vmatprep.subr.mxu0 0.0
      %1430 = vmatpush1.msra.mxu0 0.0
      %1431 = vmatprep.subr.mxu0 0.0
      %1432 = vmatpush1.msra.mxu0 0.0
      %1433 = vmatprep.subr.mxu0 0.0
      %1434 = vmatpush1.msra.mxu0 0.0
      %1435 = vmatprep.subr.mxu0 0.0
      %1436 = vmatpush1.msra.mxu0 0.0
      %1437 = vmatprep.subr.mxu0 0.0
      %1438 = vmatpush1.msra.mxu0 0.0
      %1439 = vmatprep.subr.mxu0 0.0
      %1440 = vmatpush1.msra.mxu0 0.0
      %1441 = vmatprep.subr.mxu0 0.0
      %1442 = vmatpush1.msra.mxu0 0.0
      %1443 = vmatprep.subr.mxu0 0.0
      %1444 = vmatpush1.msra.mxu0 0.0
      %1445 = vmatprep.subr.mxu0 0.0
      %1446 = vmatpush1.msra.mxu0 0.0
      %1447 = vmatprep.subr.mxu0 0.0
      %1448 = vmatpush1.msra.mxu0 0.0
      %1449 = vmatprep.subr.mxu0 0.0
      %1450 = vmatpush1.msra.mxu0 0.0
      %1451 = vmatprep.subr.mxu0 0.0
      %1452 = vmatpush1.msra.mxu0 0.0
      %1453 = vmatprep.subr.mxu0 0.0
      %1454 = vmatpush1.msra.mxu0 0.0
      %1455 = vmatprep.subr.mxu0 0.0
      %1456 = vmatpush1.msra.mxu0 0.0
      %1457 = vmatprep.subr.mxu0 0.0
      %1458 = vmatpush1.msra.mxu0 0.0
      %1459 = vmatprep.subr.mxu0 0.0
      %1460 = vmatpush1.msra.mxu0 0.0
      %1461 = vmatprep.subr.mxu0 0.0
      %1462 = vmatpush1.msra.mxu0 0.0
      %1463 = vmatprep.subr.mxu0 0.0
      %1464 = vmatpush1.msra.mxu0 0.0
      %1465 = vmatprep.subr.mxu0 0.0
      %1466 = vmatpush1.msra.mxu0 0.0
      %1467 = vmatprep.subr.mxu0 0.0
      %1468 = vmatpush1.msra.mxu0 0.0
      %1469 = vmatprep.subr.mxu0 0.0
      %1470 = vmatpush1.msra.mxu0 0.0
      %1471 = vmatprep.subr.mxu0 0.0
      %1472 = vmatpush1.msra.mxu0 0.0
      %1473 = vmatprep.subr.mxu0 0.0
      %1474 = vmatpush1.msra.mxu0 0.0
      %1475 = vmatprep.subr.mxu0 0.0
      %1476 = vmatpush1.msra.mxu0 0.0
      %1477 = vmatprep.subr.mxu0 0.0
      %1478 = vmatpush1.msra.mxu0 0.0
      %1479 = vmatprep.mubr.f32.mxu0 0.0
      %1480 = vmatmul.mubr.f32.gmra.mrb[0].mxu0 %v1389
      %v1481 = vpop.f32.mrb[0].mxu0
      %v1482 = vadd.f32 0.0, %v1481
      %v1483 = vpop.f32.mrb[0].mxu0
      %1484 = vmatprep.mubr.f32.mxu0 0.0
      %1485 = vmatmul.mubr.f32.gmra.mrb[0].mxu0 %v1392
      %v1486 = vpop.f32.mrb[0].mxu0
      %v1487 = vadd.f32 0.0, %v1486
      %v1488 = vpop.f32.mrb[0].mxu0
      %1489 = vmatprep.mubr.f32.mxu0 0.0
      %1490 = vmatmul.mubr.f32.gmra.mrb[0].mxu0 %v1395
      %v1491 = vpop.f32.mrb[0].mxu0
      %v1492 = vadd.f32 0.0, %v1491
      %v1493 = vpop.f32.mrb[0].mxu0
      %1494 = vmatprep.mubr.f32.mxu0 0.0
      %1495 = vmatmul.mubr.f32.gmra.mrb[0].mxu0 %v1398
      %v1496 = vpop.f32.mrb[0].mxu0
      %v1497 = vadd.f32 0.0, %v1496
      %v1498 = vpop.f32.mrb[0].mxu0
      %1499 = vmatprep.mubr.f32.mxu0 0.0
      %1500 = vmatmul.mubr.f32.gmra.mrb[0].mxu0 %v1401
      %v1501 = vpop.f32.mrb[0].mxu0
      %v1502 = vadd.f32 0.0, %v1501
      %v1503 = vpop.f32.mrb[0].mxu0
      %1504 = vmatprep.mubr.f32.mxu0 0.0
      %1505 = vmatmul.mubr.f32.gmra.mrb[0].mxu0 %v1404
      %v1506 = vpop.f32.mrb[0].mxu0
      %v1507 = vadd.f32 0.0, %v1506
      %v1508 = vpop.f32.mrb[0].mxu0
      %1509 = vmatprep.mubr.f32.mxu0 0.0
      %1510 = vmatmul.mubr.f32.gmra.mrb[0].mxu0 %v1407
      %v1511 = vpop.f32.mrb[0].mxu0
      %v1512 = vadd.f32 0.0, %v1511
      %v1513 = vpop.f32.mrb[0].mxu0
      %1514 = vmatprep.mubr.f32.mxu0 0.0
      %1515 = vmatmul.mubr.f32.gmra.mrb[0].mxu0 %v1410
      %v1516 = vpop.f32.mrb[0].mxu0
      %v1517 = vadd.f32 0.0, %v1516
      %v1518 = vpop.f32.mrb[0].mxu0
      %1519 = vdwg.mxu0
      %v1520 = vadd.f32 %v1371, %v1482
      %v1521 = vadd.f32 %v1372, %v1487
      %v1522 = vadd.f32 %v1373, %v1492
      %v1523 = vadd.f32 %v1374, %v1497
      %v1524 = vadd.f32 %v1375, %v1502
      %v1525 = vadd.f32 %v1376, %v1507
      %v1526 = vadd.f32 %v1377, %v1512
      %v1527 = vadd.f32 %v1378, %v1517
      %v1528 = vld [vmem:[%s1229 + $0x2] sm:$0xff]
      %v1529 = vld [vmem:[%s1229 + $0x12] sm:$0xff]
      %v1530 = vld [vmem:[%s1229 + $0x22] sm:$0xff]
      %v1531 = vld [vmem:[%s1229 + $0x32] sm:$0xff]
      %v1532 = vld [vmem:[%s1229 + $0x42] sm:$0xff]
      %v1533 = vld [vmem:[%s1229 + $0x52] sm:$0xff]
      %v1534 = vld [vmem:[%s1229 + $0x62] sm:$0xff]
      %v1535 = vld [vmem:[%s1229 + $0x72] sm:$0xff]
      %v1536 = vld [vmem:[%s1 + $0x20] sm:$0xf]
      %v1538 = vsel %vm313, %v1528, 0
      %v1541 = vsel %vm313, %v1529, 0
      %v1544 = vsel %vm313, %v1530, 0
      %v1547 = vsel %vm313, %v1531, 0
      %v1550 = vsel %vm313, %v1532, 0
      %v1553 = vsel %vm313, %v1533, 0
      %v1556 = vsel %vm313, %v1534, 0
      %v1559 = vsel %vm313, %v1535, 0
      %v1562 = vsel %vm392, %v1536, 0
      %1564 = vmatprep.subr.mxu0 0.0
      %1565 = vmatpush1.msra.mxu0 %v1562
      %1566 = vmatprep.subr.mxu0 0.0
      %1567 = vmatpush1.msra.mxu0 0.0
      %1568 = vmatprep.subr.mxu0 0.0
      %1569 = vmatpush1.msra.mxu0 0.0
      %1570 = vmatprep.subr.mxu0 0.0
      %1571 = vmatpush1.msra.mxu0 0.0
      %1572 = vmatprep.subr.mxu0 0.0
      %1573 = vmatpush1.msra.mxu0 0.0
      %1574 = vmatprep.subr.mxu0 0.0
      %1575 = vmatpush1.msra.mxu0 0.0
      %1576 = vmatprep.subr.mxu0 0.0
      %1577 = vmatpush1.msra.mxu0 0.0
      %1578 = vmatprep.subr.mxu0 0.0
      %1579 = vmatpush1.msra.mxu0 0.0
      %1580 = vmatprep.subr.mxu0 0.0
      %1581 = vmatpush1.msra.mxu0 0.0
      %1582 = vmatprep.subr.mxu0 0.0
      %1583 = vmatpush1.msra.mxu0 0.0
      %1584 = vmatprep.subr.mxu0 0.0
      %1585 = vmatpush1.msra.mxu0 0.0
      %1586 = vmatprep.subr.mxu0 0.0
      %1587 = vmatpush1.msra.mxu0 0.0
      %1588 = vmatprep.subr.mxu0 0.0
      %1589 = vmatpush1.msra.mxu0 0.0
      %1590 = vmatprep.subr.mxu0 0.0
      %1591 = vmatpush1.msra.mxu0 0.0
      %1592 = vmatprep.subr.mxu0 0.0
      %1593 = vmatpush1.msra.mxu0 0.0
      %1594 = vmatprep.subr.mxu0 0.0
      %1595 = vmatpush1.msra.mxu0 0.0
      %1596 = vmatprep.subr.mxu0 0.0
      %1597 = vmatpush1.msra.mxu0 0.0
      %1598 = vmatprep.subr.mxu0 0.0
      %1599 = vmatpush1.msra.mxu0 0.0
      %1600 = vmatprep.subr.mxu0 0.0
      %1601 = vmatpush1.msra.mxu0 0.0
      %1602 = vmatprep.subr.mxu0 0.0
      %1603 = vmatpush1.msra.mxu0 0.0
      %1604 = vmatprep.subr.mxu0 0.0
      %1605 = vmatpush1.msra.mxu0 0.0
      %1606 = vmatprep.subr.mxu0 0.0
      %1607 = vmatpush1.msra.mxu0 0.0
      %1608 = vmatprep.subr.mxu0 0.0
      %1609 = vmatpush1.msra.mxu0 0.0
      %1610 = vmatprep.subr.mxu0 0.0
      %1611 = vmatpush1.msra.mxu0 0.0
      %1612 = vmatprep.subr.mxu0 0.0
      %1613 = vmatpush1.msra.mxu0 0.0
      %1614 = vmatprep.subr.mxu0 0.0
      %1615 = vmatpush1.msra.mxu0 0.0
      %1616 = vmatprep.subr.mxu0 0.0
      %1617 = vmatpush1.msra.mxu0 0.0
      %1618 = vmatprep.subr.mxu0 0.0
      %1619 = vmatpush1.msra.mxu0 0.0
      %1620 = vmatprep.subr.mxu0 0.0
      %1621 = vmatpush1.msra.mxu0 0.0
      %1622 = vmatprep.subr.mxu0 0.0
      %1623 = vmatpush1.msra.mxu0 0.0
      %1624 = vmatprep.subr.mxu0 0.0
      %1625 = vmatpush1.msra.mxu0 0.0
      %1626 = vmatprep.subr.mxu0 0.0
      %1627 = vmatpush1.msra.mxu0 0.0
      %1628 = vmatprep.mubr.f32.mxu0 0.0
      %1629 = vmatmul.mubr.f32.gmra.mrb[0].mxu0 %v1538
      %v1630 = vpop.f32.mrb[0].mxu0
      %v1631 = vadd.f32 0.0, %v1630
      %v1632 = vpop.f32.mrb[0].mxu0
      %1633 = vmatprep.mubr.f32.mxu0 0.0
      %1634 = vmatmul.mubr.f32.gmra.mrb[0].mxu0 %v1541
      %v1635 = vpop.f32.mrb[0].mxu0
      %v1636 = vadd.f32 0.0, %v1635
      %v1637 = vpop.f32.mrb[0].mxu0
      %1638 = vmatprep.mubr.f32.mxu0 0.0
      %1639 = vmatmul.mubr.f32.gmra.mrb[0].mxu0 %v1544
      %v1640 = vpop.f32.mrb[0].mxu0
      %v1641 = vadd.f32 0.0, %v1640
      %v1642 = vpop.f32.mrb[0].mxu0
      %1643 = vmatprep.mubr.f32.mxu0 0.0
      %1644 = vmatmul.mubr.f32.gmra.mrb[0].mxu0 %v1547
      %v1645 = vpop.f32.mrb[0].mxu0
      %v1646 = vadd.f32 0.0, %v1645
      %v1647 = vpop.f32.mrb[0].mxu0
      %1648 = vmatprep.mubr.f32.mxu0 0.0
      %1649 = vmatmul.mubr.f32.gmra.mrb[0].mxu0 %v1550
      %v1650 = vpop.f32.mrb[0].mxu0
      %v1651 = vadd.f32 0.0, %v1650
      %v1652 = vpop.f32.mrb[0].mxu0
      %1653 = vmatprep.mubr.f32.mxu0 0.0
      %1654 = vmatmul.mubr.f32.gmra.mrb[0].mxu0 %v1553
      %v1655 = vpop.f32.mrb[0].mxu0
      %v1656 = vadd.f32 0.0, %v1655
      %v1657 = vpop.f32.mrb[0].mxu0
      %1658 = vmatprep.mubr.f32.mxu0 0.0
      %1659 = vmatmul.mubr.f32.gmra.mrb[0].mxu0 %v1556
      %v1660 = vpop.f32.mrb[0].mxu0
      %v1661 = vadd.f32 0.0, %v1660
      %v1662 = vpop.f32.mrb[0].mxu0
      %1663 = vmatprep.mubr.f32.mxu0 0.0
      %1664 = vmatmul.mubr.f32.gmra.mrb[0].mxu0 %v1559
      %v1665 = vpop.f32.mrb[0].mxu0
      %v1666 = vadd.f32 0.0, %v1665
      %v1667 = vpop.f32.mrb[0].mxu0
      %1668 = vdwg.mxu0
      %v1669 = vadd.f32 %v1520, %v1631
      %v1670 = vadd.f32 %v1521, %v1636
      %v1671 = vadd.f32 %v1522, %v1641
      %v1672 = vadd.f32 %v1523, %v1646
      %v1673 = vadd.f32 %v1524, %v1651
      %v1674 = vadd.f32 %v1525, %v1656
      %v1675 = vadd.f32 %v1526, %v1661
      %v1676 = vadd.f32 %v1527, %v1666
      %v1677 = vld [vmem:[%s2] sm:$0x1]
      %v1679 = vlaneseq
      %v1680 = vshrl.u32 %v1679, 7
      %v1681 = vsub.s32 0, %v1680
      %v1682 = vrot.slane %v1677, %v1681
      %v1684 = vadd.f32 %v1669, %v1682
      %v1685 = vadd.f32 %v1670, %v1682
      %v1686 = vadd.f32 %v1671, %v1682
      %v1687 = vadd.f32 %v1672, %v1682
      %v1688 = vadd.f32 %v1673, %v1682
      %v1689 = vadd.f32 %v1674, %v1682
      %v1690 = vadd.f32 %v1675, %v1682
      %v1691 = vadd.f32 %v1676, %v1682
      %v1692 = vmax.f32 %v1684, 0.0
      %v1693 = vmax.f32 %v1685, 0.0
      %v1694 = vmax.f32 %v1686, 0.0
      %v1695 = vmax.f32 %v1687, 0.0
      %v1696 = vmax.f32 %v1688, 0.0
      %v1697 = vmax.f32 %v1689, 0.0
      %v1698 = vmax.f32 %v1690, 0.0
      %v1699 = vmax.f32 %v1691, 0.0
      %vm1700 = vcmask 64512
      %1701 = vst.msk [vmem:[#allocation3] sm:$0xff] %vm1700, 0.0
      %vm1702 = vcmask 58368
      %1703 = vst.msk [vmem:[#allocation3 + $0x8] sm:$0x3] %vm1702, 0.0
      %s1704 = scalar_lea.vmem [#allocation3], 144
      %1705 = vst.msk [vmem:[%s1704] sm:$0xff] %vm1700, 0.0
      %1706 = vst.msk [vmem:[%s1704 + $0x8] sm:$0x3] %vm1702, 0.0
      %vm1707 = vcmask 57344
      %1708 = vst.msk [vmem:[#allocation3] sm:$0x1] %vm1707, 0.0
      %1709 = vst.msk [vmem:[#allocation3 + $0x10] sm:$0x1] %vm1707, 0.0
      %1710 = vst.msk [vmem:[#allocation3 + $0x20] sm:$0x1] %vm1707, 0.0
      %1711 = vst.msk [vmem:[#allocation3 + $0x30] sm:$0x1] %vm1707, 0.0
      %1712 = vst.msk [vmem:[#allocation3 + $0x40] sm:$0x1] %vm1707, 0.0
      %1713 = vst.msk [vmem:[#allocation3 + $0x50] sm:$0x1] %vm1707, 0.0
      %1714 = vst.msk [vmem:[#allocation3 + $0x60] sm:$0x1] %vm1707, 0.0
      %1715 = vst.msk [vmem:[#allocation3 + $0x70] sm:$0x1] %vm1707, 0.0
      %1716 = vst.msk [vmem:[#allocation3 + $0x80] sm:$0x1] %vm1707, 0.0
      %1717 = vst.msk [vmem:[#allocation3 + $0x90] sm:$0x1] %vm1707, 0.0
      %1718 = vst.msk [vmem:[#allocation3 + $0x9] sm:$0x1] %vm1707, 0.0
      %1719 = vst.msk [vmem:[#allocation3 + $0x19] sm:$0x1] %vm1707, 0.0
      %1720 = vst.msk [vmem:[#allocation3 + $0x29] sm:$0x1] %vm1707, 0.0
      %1721 = vst.msk [vmem:[#allocation3 + $0x39] sm:$0x1] %vm1707, 0.0
      %1722 = vst.msk [vmem:[#allocation3 + $0x49] sm:$0x1] %vm1707, 0.0
      %1723 = vst.msk [vmem:[#allocation3 + $0x59] sm:$0x1] %vm1707, 0.0
      %1724 = vst.msk [vmem:[#allocation3 + $0x69] sm:$0x1] %vm1707, 0.0
      %1725 = vst.msk [vmem:[#allocation3 + $0x79] sm:$0x1] %vm1707, 0.0
      %1726 = vst.msk [vmem:[#allocation3 + $0x89] sm:$0x1] %vm1707, 0.0
      %1727 = vst.msk [vmem:[#allocation3 + $0x99] sm:$0x1] %vm1707, 0.0
      %s1728 = scalar_lea.vmem [#allocation3], 16
      %1729 = vst.msk [vmem:[%s1728 + $0x1] sm:$0xff] %vm1700, %v1692
      %1730 = vst.msk [vmem:[%s1728 + $0x11] sm:$0xff] %vm1700, %v1693
      %1731 = vst.msk [vmem:[%s1728 + $0x21] sm:$0xff] %vm1700, %v1694
      %1732 = vst.msk [vmem:[%s1728 + $0x31] sm:$0xff] %vm1700, %v1695
      %1733 = vst.msk [vmem:[%s1728 + $0x41] sm:$0xff] %vm1700, %v1696
      %1734 = vst.msk [vmem:[%s1728 + $0x51] sm:$0xff] %vm1700, %v1697
      %1735 = vst.msk [vmem:[%s1728 + $0x61] sm:$0xff] %vm1700, %v1698
      %1736 = vst.msk [vmem:[%s1728 + $0x71] sm:$0xff] %vm1700, %v1699
      %v1737 = vld [vmem:[#allocation3] sm:$0xff]
      %v1738 = vld [vmem:[#allocation3 + $0x10] sm:$0xff]
      %v1739 = vld [vmem:[#allocation3 + $0x20] sm:$0xff]
      %v1740 = vld [vmem:[#allocation3 + $0x30] sm:$0xff]
      %v1741 = vld [vmem:[#allocation3 + $0x40] sm:$0xff]
      %v1742 = vld [vmem:[#allocation3 + $0x50] sm:$0xff]
      %v1743 = vld [vmem:[#allocation3 + $0x60] sm:$0xff]
      %v1744 = vld [vmem:[#allocation3 + $0x70] sm:$0xff]
      %v1745 = vld [vmem:[%s3] sm:$0xff]
      %v1746 = vld [vmem:[#allocation3 + $0x1] sm:$0xff]
      %v1747 = vld [vmem:[#allocation3 + $0x11] sm:$0xff]
      %v1748 = vld [vmem:[#allocation3 + $0x21] sm:$0xff]
      %v1749 = vld [vmem:[#allocation3 + $0x31] sm:$0xff]
      %v1750 = vld [vmem:[#allocation3 + $0x41] sm:$0xff]
      %v1751 = vld [vmem:[#allocation3 + $0x51] sm:$0xff]
      %v1752 = vld [vmem:[#allocation3 + $0x61] sm:$0xff]
      %v1753 = vld [vmem:[#allocation3 + $0x71] sm:$0xff]
      %v1754 = vld [vmem:[%s3 + $0x8] sm:$0xff]
      %v1756 = vsel %vm1700, %v1746, 0
      %v1759 = vsel %vm1700, %v1747, 0
      %v1762 = vsel %vm1700, %v1748, 0
      %v1765 = vsel %vm1700, %v1749, 0
      %v1768 = vsel %vm1700, %v1750, 0
      %v1771 = vsel %vm1700, %v1751, 0
      %v1774 = vsel %vm1700, %v1752, 0
      %v1777 = vsel %vm1700, %v1753, 0
      %1779 = vmatprep.subr.mxu0 0.0
      %1780 = vmatpush1.msra.mxu0 %v1754
      %1781 = vmatprep.subr.mxu0 0.0
      %1782 = vmatpush1.msra.mxu0 0.0
      %1783 = vmatprep.subr.mxu0 0.0
      %1784 = vmatpush1.msra.mxu0 0.0
      %1785 = vmatprep.subr.mxu0 0.0
      %1786 = vmatpush1.msra.mxu0 0.0
      %1787 = vmatprep.subr.mxu0 0.0
      %1788 = vmatpush1.msra.mxu0 0.0
      %1789 = vmatprep.subr.mxu0 0.0
      %1790 = vmatpush1.msra.mxu0 0.0
      %1791 = vmatprep.subr.mxu0 0.0
      %1792 = vmatpush1.msra.mxu0 0.0
      %1793 = vmatprep.subr.mxu0 0.0
      %1794 = vmatpush1.msra.mxu0 0.0
      %1795 = vmatprep.subr.mxu0 0.0
      %1796 = vmatpush1.msra.mxu0 0.0
      %1797 = vmatprep.subr.mxu0 0.0
      %1798 = vmatpush1.msra.mxu0 0.0
      %1799 = vmatprep.subr.mxu0 0.0
      %1800 = vmatpush1.msra.mxu0 0.0
      %1801 = vmatprep.subr.mxu0 0.0
      %1802 = vmatpush1.msra.mxu0 0.0
      %1803 = vmatprep.subr.mxu0 0.0
      %1804 = vmatpush1.msra.mxu0 0.0
      %1805 = vmatprep.subr.mxu0 0.0
      %1806 = vmatpush1.msra.mxu0 0.0
      %1807 = vmatprep.subr.mxu0 0.0
      %1808 = vmatpush1.msra.mxu0 0.0
      %1809 = vmatprep.subr.mxu0 0.0
      %1810 = vmatpush1.msra.mxu0 0.0
      %1811 = vmatprep.subr.mxu0 0.0
      %1812 = vmatpush1.msra.mxu0 0.0
      %1813 = vmatprep.subr.mxu0 0.0
      %1814 = vmatpush1.msra.mxu0 0.0
      %1815 = vmatprep.subr.mxu0 0.0
      %1816 = vmatpush1.msra.mxu0 0.0
      %1817 = vmatprep.subr.mxu0 0.0
      %1818 = vmatpush1.msra.mxu0 0.0
      %1819 = vmatprep.subr.mxu0 0.0
      %1820 = vmatpush1.msra.mxu0 0.0
      %1821 = vmatprep.subr.mxu0 0.0
      %1822 = vmatpush1.msra.mxu0 0.0
      %1823 = vmatprep.subr.mxu0 0.0
      %1824 = vmatpush1.msra.mxu0 0.0
      %1825 = vmatprep.subr.mxu0 0.0
      %1826 = vmatpush1.msra.mxu0 0.0
      %1827 = vmatprep.subr.mxu0 0.0
      %1828 = vmatpush1.msra.mxu0 0.0
      %1829 = vmatprep.subr.mxu0 0.0
      %1830 = vmatpush1.msra.mxu0 0.0
      %1831 = vmatprep.subr.mxu0 0.0
      %1832 = vmatpush1.msra.mxu0 0.0
      %1833 = vmatprep.subr.mxu0 0.0
      %1834 = vmatpush1.msra.mxu0 0.0
      %1835 = vmatprep.subr.mxu0 0.0
      %1836 = vmatpush1.msra.mxu0 0.0
      %1837 = vmatprep.subr.mxu0 0.0
      %1838 = vmatpush1.msra.mxu0 0.0
      %1839 = vmatprep.subr.mxu0 0.0
      %1840 = vmatpush1.msra.mxu0 0.0
      %1841 = vmatprep.subr.mxu0 0.0
      %1842 = vmatpush1.msra.mxu0 0.0
      %1843 = vmatprep.mubr.f32.mxu0 0.0
      %1844 = vmatmul.mubr.f32.gmra.mrb[0].mxu0 %v1756
      %v1845 = vpop.f32.mrb[0].mxu0
      %v1846 = vadd.f32 0.0, %v1845
      %v1847 = vpop.f32.mrb[0].mxu0
      %1848 = vmatprep.mubr.f32.mxu0 0.0
      %1849 = vmatmul.mubr.f32.gmra.mrb[0].mxu0 %v1759
      %v1850 = vpop.f32.mrb[0].mxu0
      %v1851 = vadd.f32 0.0, %v1850
      %v1852 = vpop.f32.mrb[0].mxu0
      %1853 = vmatprep.mubr.f32.mxu0 0.0
      %1854 = vmatmul.mubr.f32.gmra.mrb[0].mxu0 %v1762
      %v1855 = vpop.f32.mrb[0].mxu0
      %v1856 = vadd.f32 0.0, %v1855
      %v1857 = vpop.f32.mrb[0].mxu0
      %1858 = vmatprep.mubr.f32.mxu0 0.0
      %1859 = vmatmul.mubr.f32.gmra.mrb[0].mxu0 %v1765
      %v1860 = vpop.f32.mrb[0].mxu0
      %v1861 = vadd.f32 0.0, %v1860
      %v1862 = vpop.f32.mrb[0].mxu0
      %1863 = vmatprep.mubr.f32.mxu0 0.0
      %1864 = vmatmul.mubr.f32.gmra.mrb[0].mxu0 %v1768
      %v1865 = vpop.f32.mrb[0].mxu0
      %v1866 = vadd.f32 0.0, %v1865
      %v1867 = vpop.f32.mrb[0].mxu0
      %1868 = vmatprep.mubr.f32.mxu0 0.0
      %1869 = vmatmul.mubr.f32.gmra.mrb[0].mxu0 %v1771
      %v1870 = vpop.f32.mrb[0].mxu0
      %v1871 = vadd.f32 0.0, %v1870
      %v1872 = vpop.f32.mrb[0].mxu0
      %1873 = vmatprep.mubr.f32.mxu0 0.0
      %1874 = vmatmul.mubr.f32.gmra.mrb[0].mxu0 %v1774
      %v1875 = vpop.f32.mrb[0].mxu0
      %v1876 = vadd.f32 0.0, %v1875
      %v1877 = vpop.f32.mrb[0].mxu0
      %1878 = vmatprep.mubr.f32.mxu0 0.0
      %1879 = vmatmul.mubr.f32.gmra.mrb[0].mxu0 %v1777
      %v1880 = vpop.f32.mrb[0].mxu0
      %v1881 = vadd.f32 0.0, %v1880
      %v1882 = vpop.f32.mrb[0].mxu0
      %1883 = vdwg.mxu0
      %v1885 = vsel %vm1700, %v1737, 0
      %v1888 = vsel %vm1700, %v1738, 0
      %v1891 = vsel %vm1700, %v1739, 0
      %v1894 = vsel %vm1700, %v1740, 0
      %v1897 = vsel %vm1700, %v1741, 0
      %v1900 = vsel %vm1700, %v1742, 0
      %v1903 = vsel %vm1700, %v1743, 0
      %v1906 = vsel %vm1700, %v1744, 0
      %1908 = vmatprep.subr.mxu0 0.0
      %1909 = vmatpush1.msra.mxu0 %v1745
      %1910 = vmatprep.subr.mxu0 0.0
      %1911 = vmatpush1.msra.mxu0 0.0
      %1912 = vmatprep.subr.mxu0 0.0
      %1913 = vmatpush1.msra.mxu0 0.0
      %1914 = vmatprep.subr.mxu0 0.0
      %1915 = vmatpush1.msra.mxu0 0.0
      %1916 = vmatprep.subr.mxu0 0.0
      %1917 = vmatpush1.msra.mxu0 0.0
      %1918 = vmatprep.subr.mxu0 0.0
      %1919 = vmatpush1.msra.mxu0 0.0
      %1920 = vmatprep.subr.mxu0 0.0
      %1921 = vmatpush1.msra.mxu0 0.0
      %1922 = vmatprep.subr.mxu0 0.0
      %1923 = vmatpush1.msra.mxu0 0.0
      %1924 = vmatprep.subr.mxu0 0.0
      %1925 = vmatpush1.msra.mxu0 0.0
      %1926 = vmatprep.subr.mxu0 0.0
      %1927 = vmatpush1.msra.mxu0 0.0
      %1928 = vmatprep.subr.mxu0 0.0
      %1929 = vmatpush1.msra.mxu0 0.0
      %1930 = vmatprep.subr.mxu0 0.0
      %1931 = vmatpush1.msra.mxu0 0.0
      %1932 = vmatprep.subr.mxu0 0.0
      %1933 = vmatpush1.msra.mxu0 0.0
      %1934 = vmatprep.subr.mxu0 0.0
      %1935 = vmatpush1.msra.mxu0 0.0
      %1936 = vmatprep.subr.mxu0 0.0
      %1937 = vmatpush1.msra.mxu0 0.0
      %1938 = vmatprep.subr.mxu0 0.0
      %1939 = vmatpush1.msra.mxu0 0.0
      %1940 = vmatprep.subr.mxu0 0.0
      %1941 = vmatpush1.msra.mxu0 0.0
      %1942 = vmatprep.subr.mxu0 0.0
      %1943 = vmatpush1.msra.mxu0 0.0
      %1944 = vmatprep.subr.mxu0 0.0
      %1945 = vmatpush1.msra.mxu0 0.0
      %1946 = vmatprep.subr.mxu0 0.0
      %1947 = vmatpush1.msra.mxu0 0.0
      %1948 = vmatprep.subr.mxu0 0.0
      %1949 = vmatpush1.msra.mxu0 0.0
      %1950 = vmatprep.subr.mxu0 0.0
      %1951 = vmatpush1.msra.mxu0 0.0
      %1952 = vmatprep.subr.mxu0 0.0
      %1953 = vmatpush1.msra.mxu0 0.0
      %1954 = vmatprep.subr.mxu0 0.0
      %1955 = vmatpush1.msra.mxu0 0.0
      %1956 = vmatprep.subr.mxu0 0.0
      %1957 = vmatpush1.msra.mxu0 0.0
      %1958 = vmatprep.subr.mxu0 0.0
      %1959 = vmatpush1.msra.mxu0 0.0
      %1960 = vmatprep.subr.mxu0 0.0
      %1961 = vmatpush1.msra.mxu0 0.0
      %1962 = vmatprep.subr.mxu0 0.0
      %1963 = vmatpush1.msra.mxu0 0.0
      %1964 = vmatprep.subr.mxu0 0.0
      %1965 = vmatpush1.msra.mxu0 0.0
      %1966 = vmatprep.subr.mxu0 0.0
      %1967 = vmatpush1.msra.mxu0 0.0
      %1968 = vmatprep.subr.mxu0 0.0
      %1969 = vmatpush1.msra.mxu0 0.0
      %1970 = vmatprep.subr.mxu0 0.0
      %1971 = vmatpush1.msra.mxu0 0.0
      %1972 = vmatprep.mubr.f32.mxu0 0.0
      %1973 = vmatmul.mubr.f32.gmra.mrb[0].mxu0 %v1885
      %v1974 = vpop.f32.mrb[0].mxu0
      %v1975 = vadd.f32 %v1846, %v1974
      %v1976 = vpop.f32.mrb[0].mxu0
      %1977 = vmatprep.mubr.f32.mxu0 0.0
      %1978 = vmatmul.mubr.f32.gmra.mrb[0].mxu0 %v1888
      %v1979 = vpop.f32.mrb[0].mxu0
      %v1980 = vadd.f32 %v1851, %v1979
      %v1981 = vpop.f32.mrb[0].mxu0
      %1982 = vmatprep.mubr.f32.mxu0 0.0
      %1983 = vmatmul.mubr.f32.gmra.mrb[0].mxu0 %v1891
      %v1984 = vpop.f32.mrb[0].mxu0
      %v1985 = vadd.f32 %v1856, %v1984
      %v1986 = vpop.f32.mrb[0].mxu0
      %1987 = vmatprep.mubr.f32.mxu0 0.0
      %1988 = vmatmul.mubr.f32.gmra.mrb[0].mxu0 %v1894
      %v1989 = vpop.f32.mrb[0].mxu0
      %v1990 = vadd.f32 %v1861, %v1989
      %v1991 = vpop.f32.mrb[0].mxu0
      %1992 = vmatprep.mubr.f32.mxu0 0.0
      %1993 = vmatmul.mubr.f32.gmra.mrb[0].mxu0 %v1897
      %v1994 = vpop.f32.mrb[0].mxu0
      %v1995 = vadd.f32 %v1866, %v1994
      %v1996 = vpop.f32.mrb[0].mxu0
      %1997 = vmatprep.mubr.f32.mxu0 0.0
      %1998 = vmatmul.mubr.f32.gmra.mrb[0].mxu0 %v1900
      %v1999 = vpop.f32.mrb[0].mxu0
      %v2000 = vadd.f32 %v1871, %v1999
      %v2001 = vpop.f32.mrb[0].mxu0
      %2002 = vmatprep.mubr.f32.mxu0 0.0
      %2003 = vmatmul.mubr.f32.gmra.mrb[0].mxu0 %v1903
      %v2004 = vpop.f32.mrb[0].mxu0
      %v2005 = vadd.f32 %v1876, %v2004
      %v2006 = vpop.f32.mrb[0].mxu0
      %2007 = vmatprep.mubr.f32.mxu0 0.0
      %2008 = vmatmul.mubr.f32.gmra.mrb[0].mxu0 %v1906
      %v2009 = vpop.f32.mrb[0].mxu0
      %v2010 = vadd.f32 %v1881, %v2009
      %v2011 = vpop.f32.mrb[0].mxu0
      %2012 = vdwg.mxu0
      %v2013 = vld [vmem:[#allocation3 + $0x2] sm:$0xff]
      %v2014 = vld [vmem:[#allocation3 + $0x12] sm:$0xff]
      %v2015 = vld [vmem:[#allocation3 + $0x22] sm:$0xff]
      %v2016 = vld [vmem:[#allocation3 + $0x32] sm:$0xff]
      %v2017 = vld [vmem:[#allocation3 + $0x42] sm:$0xff]
      %v2018 = vld [vmem:[#allocation3 + $0x52] sm:$0xff]
      %v2019 = vld [vmem:[#allocation3 + $0x62] sm:$0xff]
      %v2020 = vld [vmem:[#allocation3 + $0x72] sm:$0xff]
      %v2021 = vld [vmem:[%s3 + $0x10] sm:$0xff]
      %v2023 = vsel %vm1700, %v2013, 0
      %v2026 = vsel %vm1700, %v2014, 0
      %v2029 = vsel %vm1700, %v2015, 0
      %v2032 = vsel %vm1700, %v2016, 0
      %v2035 = vsel %vm1700, %v2017, 0
      %v2038 = vsel %vm1700, %v2018, 0
      %v2041 = vsel %vm1700, %v2019, 0
      %v2044 = vsel %vm1700, %v2020, 0
      %2046 = vmatprep.subr.mxu0 0.0
      %2047 = vmatpush1.msra.mxu0 %v2021
      %2048 = vmatprep.subr.mxu0 0.0
      %2049 = vmatpush1.msra.mxu0 0.0
      %2050 = vmatprep.subr.mxu0 0.0
      %2051 = vmatpush1.msra.mxu0 0.0
      %2052 = vmatprep.subr.mxu0 0.0
      %2053 = vmatpush1.msra.mxu0 0.0
      %2054 = vmatprep.subr.mxu0 0.0
      %2055 = vmatpush1.msra.mxu0 0.0
      %2056 = vmatprep.subr.mxu0 0.0
      %2057 = vmatpush1.msra.mxu0 0.0
      %2058 = vmatprep.subr.mxu0 0.0
      %2059 = vmatpush1.msra.mxu0 0.0
      %2060 = vmatprep.subr.mxu0 0.0
      %2061 = vmatpush1.msra.mxu0 0.0
      %2062 = vmatprep.subr.mxu0 0.0
      %2063 = vmatpush1.msra.mxu0 0.0
      %2064 = vmatprep.subr.mxu0 0.0
      %2065 = vmatpush1.msra.mxu0 0.0
      %2066 = vmatprep.subr.mxu0 0.0
      %2067 = vmatpush1.msra.mxu0 0.0
      %2068 = vmatprep.subr.mxu0 0.0
      %2069 = vmatpush1.msra.mxu0 0.0
      %2070 = vmatprep.subr.mxu0 0.0
      %2071 = vmatpush1.msra.mxu0 0.0
      %2072 = vmatprep.subr.mxu0 0.0
      %2073 = vmatpush1.msra.mxu0 0.0
      %2074 = vmatprep.subr.mxu0 0.0
      %2075 = vmatpush1.msra.mxu0 0.0
      %2076 = vmatprep.subr.mxu0 0.0
      %2077 = vmatpush1.msra.mxu0 0.0
      %2078 = vmatprep.subr.mxu0 0.0
      %2079 = vmatpush1.msra.mxu0 0.0
      %2080 = vmatprep.subr.mxu0 0.0
      %2081 = vmatpush1.msra.mxu0 0.0
      %2082 = vmatprep.subr.mxu0 0.0
      %2083 = vmatpush1.msra.mxu0 0.0
      %2084 = vmatprep.subr.mxu0 0.0
      %2085 = vmatpush1.msra.mxu0 0.0
      %2086 = vmatprep.subr.mxu0 0.0
      %2087 = vmatpush1.msra.mxu0 0.0
      %2088 = vmatprep.subr.mxu0 0.0
      %2089 = vmatpush1.msra.mxu0 0.0
      %2090 = vmatprep.subr.mxu0 0.0
      %2091 = vmatpush1.msra.mxu0 0.0
      %2092 = vmatprep.subr.mxu0 0.0
      %2093 = vmatpush1.msra.mxu0 0.0
      %2094 = vmatprep.subr.mxu0 0.0
      %2095 = vmatpush1.msra.mxu0 0.0
      %2096 = vmatprep.subr.mxu0 0.0
      %2097 = vmatpush1.msra.mxu0 0.0
      %2098 = vmatprep.subr.mxu0 0.0
      %2099 = vmatpush1.msra.mxu0 0.0
      %2100 = vmatprep.subr.mxu0 0.0
      %2101 = vmatpush1.msra.mxu0 0.0
      %2102 = vmatprep.subr.mxu0 0.0
      %2103 = vmatpush1.msra.mxu0 0.0
      %2104 = vmatprep.subr.mxu0 0.0
      %2105 = vmatpush1.msra.mxu0 0.0
      %2106 = vmatprep.subr.mxu0 0.0
      %2107 = vmatpush1.msra.mxu0 0.0
      %2108 = vmatprep.subr.mxu0 0.0
      %2109 = vmatpush1.msra.mxu0 0.0
      %2110 = vmatprep.mubr.f32.mxu0 0.0
      %2111 = vmatmul.mubr.f32.gmra.mrb[0].mxu0 %v2023
      %v2112 = vpop.f32.mrb[0].mxu0
      %v2113 = vadd.f32 0.0, %v2112
      %v2114 = vpop.f32.mrb[0].mxu0
      %2115 = vmatprep.mubr.f32.mxu0 0.0
      %2116 = vmatmul.mubr.f32.gmra.mrb[0].mxu0 %v2026
      %v2117 = vpop.f32.mrb[0].mxu0
      %v2118 = vadd.f32 0.0, %v2117
      %v2119 = vpop.f32.mrb[0].mxu0
      %2120 = vmatprep.mubr.f32.mxu0 0.0
      %2121 = vmatmul.mubr.f32.gmra.mrb[0].mxu0 %v2029
      %v2122 = vpop.f32.mrb[0].mxu0
      %v2123 = vadd.f32 0.0, %v2122
      %v2124 = vpop.f32.mrb[0].mxu0
      %2125 = vmatprep.mubr.f32.mxu0 0.0
      %2126 = vmatmul.mubr.f32.gmra.mrb[0].mxu0 %v2032
      %v2127 = vpop.f32.mrb[0].mxu0
      %v2128 = vadd.f32 0.0, %v2127
      %v2129 = vpop.f32.mrb[0].mxu0
      %2130 = vmatprep.mubr.f32.mxu0 0.0
      %2131 = vmatmul.mubr.f32.gmra.mrb[0].mxu0 %v2035
      %v2132 = vpop.f32.mrb[0].mxu0
      %v2133 = vadd.f32 0.0, %v2132
      %v2134 = vpop.f32.mrb[0].mxu0
      %2135 = vmatprep.mubr.f32.mxu0 0.0
      %2136 = vmatmul.mubr.f32.gmra.mrb[0].mxu0 %v2038
      %v2137 = vpop.f32.mrb[0].mxu0
      %v2138 = vadd.f32 0.0, %v2137
      %v2139 = vpop.f32.mrb[0].mxu0
      %2140 = vmatprep.mubr.f32.mxu0 0.0
      %2141 = vmatmul.mubr.f32.gmra.mrb[0].mxu0 %v2041
      %v2142 = vpop.f32.mrb[0].mxu0
      %v2143 = vadd.f32 0.0, %v2142
      %v2144 = vpop.f32.mrb[0].mxu0
      %2145 = vmatprep.mubr.f32.mxu0 0.0
      %2146 = vmatmul.mubr.f32.gmra.mrb[0].mxu0 %v2044
      %v2147 = vpop.f32.mrb[0].mxu0
      %v2148 = vadd.f32 0.0, %v2147
      %v2149 = vpop.f32.mrb[0].mxu0
      %2150 = vdwg.mxu0
      %v2151 = vadd.f32 %v1975, %v2113
      %v2152 = vadd.f32 %v1980, %v2118
      %v2153 = vadd.f32 %v1985, %v2123
      %v2154 = vadd.f32 %v1990, %v2128
      %v2155 = vadd.f32 %v1995, %v2133
      %v2156 = vadd.f32 %v2000, %v2138
      %v2157 = vadd.f32 %v2005, %v2143
      %v2158 = vadd.f32 %v2010, %v2148
      %v2159 = vld [vmem:[%s1728] sm:$0xff]
      %v2160 = vld [vmem:[%s1728 + $0x10] sm:$0xff]
      %v2161 = vld [vmem:[%s1728 + $0x20] sm:$0xff]
      %v2162 = vld [vmem:[%s1728 + $0x30] sm:$0xff]
      %v2163 = vld [vmem:[%s1728 + $0x40] sm:$0xff]
      %v2164 = vld [vmem:[%s1728 + $0x50] sm:$0xff]
      %v2165 = vld [vmem:[%s1728 + $0x60] sm:$0xff]
      %v2166 = vld [vmem:[%s1728 + $0x70] sm:$0xff]
      %v2167 = vld [vmem:[%s3 + $0x18] sm:$0xff]
      %v2169 = vsel %vm1700, %v2159, 0
      %v2172 = vsel %vm1700, %v2160, 0
      %v2175 = vsel %vm1700, %v2161, 0
      %v2178 = vsel %vm1700, %v2162, 0
      %v2181 = vsel %vm1700, %v2163, 0
      %v2184 = vsel %vm1700, %v2164, 0
      %v2187 = vsel %vm1700, %v2165, 0
      %v2190 = vsel %vm1700, %v2166, 0
      %2192 = vmatprep.subr.mxu0 0.0
      %2193 = vmatpush1.msra.mxu0 %v2167
      %2194 = vmatprep.subr.mxu0 0.0
      %2195 = vmatpush1.msra.mxu0 0.0
      %2196 = vmatprep.subr.mxu0 0.0
      %2197 = vmatpush1.msra.mxu0 0.0
      %2198 = vmatprep.subr.mxu0 0.0
      %2199 = vmatpush1.msra.mxu0 0.0
      %2200 = vmatprep.subr.mxu0 0.0
      %2201 = vmatpush1.msra.mxu0 0.0
      %2202 = vmatprep.subr.mxu0 0.0
      %2203 = vmatpush1.msra.mxu0 0.0
      %2204 = vmatprep.subr.mxu0 0.0
      %2205 = vmatpush1.msra.mxu0 0.0
      %2206 = vmatprep.subr.mxu0 0.0
      %2207 = vmatpush1.msra.mxu0 0.0
      %2208 = vmatprep.subr.mxu0 0.0
      %2209 = vmatpush1.msra.mxu0 0.0
      %2210 = vmatprep.subr.mxu0 0.0
      %2211 = vmatpush1.msra.mxu0 0.0
      %2212 = vmatprep.subr.mxu0 0.0
      %2213 = vmatpush1.msra.mxu0 0.0
      %2214 = vmatprep.subr.mxu0 0.0
      %2215 = vmatpush1.msra.mxu0 0.0
      %2216 = vmatprep.subr.mxu0 0.0
      %2217 = vmatpush1.msra.mxu0 0.0
      %2218 = vmatprep.subr.mxu0 0.0
      %2219 = vmatpush1.msra.mxu0 0.0
      %2220 = vmatprep.subr.mxu0 0.0
      %2221 = vmatpush1.msra.mxu0 0.0
      %2222 = vmatprep.subr.mxu0 0.0
      %2223 = vmatpush1.msra.mxu0 0.0
      %2224 = vmatprep.subr.mxu0 0.0
      %2225 = vmatpush1.msra.mxu0 0.0
      %2226 = vmatprep.subr.mxu0 0.0
      %2227 = vmatpush1.msra.mxu0 0.0
      %2228 = vmatprep.subr.mxu0 0.0
      %2229 = vmatpush1.msra.mxu0 0.0
      %2230 = vmatprep.subr.mxu0 0.0
      %2231 = vmatpush1.msra.mxu0 0.0
      %2232 = vmatprep.subr.mxu0 0.0
      %2233 = vmatpush1.msra.mxu0 0.0
      %2234 = vmatprep.subr.mxu0 0.0
      %2235 = vmatpush1.msra.mxu0 0.0
      %2236 = vmatprep.subr.mxu0 0.0
      %2237 = vmatpush1.msra.mxu0 0.0
      %2238 = vmatprep.subr.mxu0 0.0
      %2239 = vmatpush1.msra.mxu0 0.0
      %2240 = vmatprep.subr.mxu0 0.0
      %2241 = vmatpush1.msra.mxu0 0.0
      %2242 = vmatprep.subr.mxu0 0.0
      %2243 = vmatpush1.msra.mxu0 0.0
      %2244 = vmatprep.subr.mxu0 0.0
      %2245 = vmatpush1.msra.mxu0 0.0
      %2246 = vmatprep.subr.mxu0 0.0
      %2247 = vmatpush1.msra.mxu0 0.0
      %2248 = vmatprep.subr.mxu0 0.0
      %2249 = vmatpush1.msra.mxu0 0.0
      %2250 = vmatprep.subr.mxu0 0.0
      %2251 = vmatpush1.msra.mxu0 0.0
      %2252 = vmatprep.subr.mxu0 0.0
      %2253 = vmatpush1.msra.mxu0 0.0
      %2254 = vmatprep.subr.mxu0 0.0
      %2255 = vmatpush1.msra.mxu0 0.0
      %2256 = vmatprep.mubr.f32.mxu0 0.0
      %2257 = vmatmul.mubr.f32.gmra.mrb[0].mxu0 %v2169
      %v2258 = vpop.f32.mrb[0].mxu0
      %v2259 = vadd.f32 0.0, %v2258
      %v2260 = vpop.f32.mrb[0].mxu0
      %2261 = vmatprep.mubr.f32.mxu0 0.0
      %2262 = vmatmul.mubr.f32.gmra.mrb[0].mxu0 %v2172
      %v2263 = vpop.f32.mrb[0].mxu0
      %v2264 = vadd.f32 0.0, %v2263
      %v2265 = vpop.f32.mrb[0].mxu0
      %2266 = vmatprep.mubr.f32.mxu0 0.0
      %2267 = vmatmul.mubr.f32.gmra.mrb[0].mxu0 %v2175
      %v2268 = vpop.f32.mrb[0].mxu0
      %v2269 = vadd.f32 0.0, %v2268
      %v2270 = vpop.f32.mrb[0].mxu0
      %2271 = vmatprep.mubr.f32.mxu0 0.0
      %2272 = vmatmul.mubr.f32.gmra.mrb[0].mxu0 %v2178
      %v2273 = vpop.f32.mrb[0].mxu0
      %v2274 = vadd.f32 0.0, %v2273
      %v2275 = vpop.f32.mrb[0].mxu0
      %2276 = vmatprep.mubr.f32.mxu0 0.0
      %2277 = vmatmul.mubr.f32.gmra.mrb[0].mxu0 %v2181
      %v2278 = vpop.f32.mrb[0].mxu0
      %v2279 = vadd.f32 0.0, %v2278
      %v2280 = vpop.f32.mrb[0].mxu0
      %2281 = vmatprep.mubr.f32.mxu0 0.0
      %2282 = vmatmul.mubr.f32.gmra.mrb[0].mxu0 %v2184
      %v2283 = vpop.f32.mrb[0].mxu0
      %v2284 = vadd.f32 0.0, %v2283
      %v2285 = vpop.f32.mrb[0].mxu0
      %2286 = vmatprep.mubr.f32.mxu0 0.0
      %2287 = vmatmul.mubr.f32.gmra.mrb[0].mxu0 %v2187
      %v2288 = vpop.f32.mrb[0].mxu0
      %v2289 = vadd.f32 0.0, %v2288
      %v2290 = vpop.f32.mrb[0].mxu0
      %2291 = vmatprep.mubr.f32.mxu0 0.0
      %2292 = vmatmul.mubr.f32.gmra.mrb[0].mxu0 %v2190
      %v2293 = vpop.f32.mrb[0].mxu0
      %v2294 = vadd.f32 0.0, %v2293
      %v2295 = vpop.f32.mrb[0].mxu0
      %2296 = vdwg.mxu0
      %v2297 = vadd.f32 %v2151, %v2259
      %v2298 = vadd.f32 %v2152, %v2264
      %v2299 = vadd.f32 %v2153, %v2269
      %v2300 = vadd.f32 %v2154, %v2274
      %v2301 = vadd.f32 %v2155, %v2279
      %v2302 = vadd.f32 %v2156, %v2284
      %v2303 = vadd.f32 %v2157, %v2289
      %v2304 = vadd.f32 %v2158, %v2294
      %v2305 = vld [vmem:[%s1728 + $0x1] sm:$0xff]
      %v2306 = vld [vmem:[%s1728 + $0x11] sm:$0xff]
      %v2307 = vld [vmem:[%s1728 + $0x21] sm:$0xff]
      %v2308 = vld [vmem:[%s1728 + $0x31] sm:$0xff]
      %v2309 = vld [vmem:[%s1728 + $0x41] sm:$0xff]
      %v2310 = vld [vmem:[%s1728 + $0x51] sm:$0xff]
      %v2311 = vld [vmem:[%s1728 + $0x61] sm:$0xff]
      %v2312 = vld [vmem:[%s1728 + $0x71] sm:$0xff]
      %v2313 = vld [vmem:[%s3 + $0x20] sm:$0xff]
      %v2315 = vsel %vm1700, %v2305, 0
      %v2318 = vsel %vm1700, %v2306, 0
      %v2321 = vsel %vm1700, %v2307, 0
      %v2324 = vsel %vm1700, %v2308, 0
      %v2327 = vsel %vm1700, %v2309, 0
      %v2330 = vsel %vm1700, %v2310, 0
      %v2333 = vsel %vm1700, %v2311, 0
      %v2336 = vsel %vm1700, %v2312, 0
      %2338 = vmatprep.subr.mxu0 0.0
      %2339 = vmatpush1.msra.mxu0 %v2313
      %2340 = vmatprep.subr.mxu0 0.0
      %2341 = vmatpush1.msra.mxu0 0.0
      %2342 = vmatprep.subr.mxu0 0.0
      %2343 = vmatpush1.msra.mxu0 0.0
      %2344 = vmatprep.subr.mxu0 0.0
      %2345 = vmatpush1.msra.mxu0 0.0
      %2346 = vmatprep.subr.mxu0 0.0
      %2347 = vmatpush1.msra.mxu0 0.0
      %2348 = vmatprep.subr.mxu0 0.0
      %2349 = vmatpush1.msra.mxu0 0.0
      %2350 = vmatprep.subr.mxu0 0.0
      %2351 = vmatpush1.msra.mxu0 0.0
      %2352 = vmatprep.subr.mxu0 0.0
      %2353 = vmatpush1.msra.mxu0 0.0
      %2354 = vmatprep.subr.mxu0 0.0
      %2355 = vmatpush1.msra.mxu0 0.0
      %2356 = vmatprep.subr.mxu0 0.0
      %2357 = vmatpush1.msra.mxu0 0.0
      %2358 = vmatprep.subr.mxu0 0.0
      %2359 = vmatpush1.msra.mxu0 0.0
      %2360 = vmatprep.subr.mxu0 0.0
      %2361 = vmatpush1.msra.mxu0 0.0
      %2362 = vmatprep.subr.mxu0 0.0
      %2363 = vmatpush1.msra.mxu0 0.0
      %2364 = vmatprep.subr.mxu0 0.0
      %2365 = vmatpush1.msra.mxu0 0.0
      %2366 = vmatprep.subr.mxu0 0.0
      %2367 = vmatpush1.msra.mxu0 0.0
      %2368 = vmatprep.subr.mxu0 0.0
      %2369 = vmatpush1.msra.mxu0 0.0
      %2370 = vmatprep.subr.mxu0 0.0
      %2371 = vmatpush1.msra.mxu0 0.0
      %2372 = vmatprep.subr.mxu0 0.0
      %2373 = vmatpush1.msra.mxu0 0.0
      %2374 = vmatprep.subr.mxu0 0.0
      %2375 = vmatpush1.msra.mxu0 0.0
      %2376 = vmatprep.subr.mxu0 0.0
      %2377 = vmatpush1.msra.mxu0 0.0
      %2378 = vmatprep.subr.mxu0 0.0
      %2379 = vmatpush1.msra.mxu0 0.0
      %2380 = vmatprep.subr.mxu0 0.0
      %2381 = vmatpush1.msra.mxu0 0.0
      %2382 = vmatprep.subr.mxu0 0.0
      %2383 = vmatpush1.msra.mxu0 0.0
      %2384 = vmatprep.subr.mxu0 0.0
      %2385 = vmatpush1.msra.mxu0 0.0
      %2386 = vmatprep.subr.mxu0 0.0
      %2387 = vmatpush1.msra.mxu0 0.0
      %2388 = vmatprep.subr.mxu0 0.0
      %2389 = vmatpush1.msra.mxu0 0.0
      %2390 = vmatprep.subr.mxu0 0.0
      %2391 = vmatpush1.msra.mxu0 0.0
      %2392 = vmatprep.subr.mxu0 0.0
      %2393 = vmatpush1.msra.mxu0 0.0
      %2394 = vmatprep.subr.mxu0 0.0
      %2395 = vmatpush1.msra.mxu0 0.0
      %2396 = vmatprep.subr.mxu0 0.0
      %2397 = vmatpush1.msra.mxu0 0.0
      %2398 = vmatprep.subr.mxu0 0.0
      %2399 = vmatpush1.msra.mxu0 0.0
      %2400 = vmatprep.subr.mxu0 0.0
      %2401 = vmatpush1.msra.mxu0 0.0
      %2402 = vmatprep.mubr.f32.mxu0 0.0
      %2403 = vmatmul.mubr.f32.gmra.mrb[0].mxu0 %v2315
      %v2404 = vpop.f32.mrb[0].mxu0
      %v2405 = vadd.f32 0.0, %v2404
      %v2406 = vpop.f32.mrb[0].mxu0
      %2407 = vmatprep.mubr.f32.mxu0 0.0
      %2408 = vmatmul.mubr.f32.gmra.mrb[0].mxu0 %v2318
      %v2409 = vpop.f32.mrb[0].mxu0
      %v2410 = vadd.f32 0.0, %v2409
      %v2411 = vpop.f32.mrb[0].mxu0
      %2412 = vmatprep.mubr.f32.mxu0 0.0
      %2413 = vmatmul.mubr.f32.gmra.mrb[0].mxu0 %v2321
      %v2414 = vpop.f32.mrb[0].mxu0
      %v2415 = vadd.f32 0.0, %v2414
      %v2416 = vpop.f32.mrb[0].mxu0
      %2417 = vmatprep.mubr.f32.mxu0 0.0
      %2418 = vmatmul.mubr.f32.gmra.mrb[0].mxu0 %v2324
      %v2419 = vpop.f32.mrb[0].mxu0
      %v2420 = vadd.f32 0.0, %v2419
      %v2421 = vpop.f32.mrb[0].mxu0
      %2422 = vmatprep.mubr.f32.mxu0 0.0
      %2423 = vmatmul.mubr.f32.gmra.mrb[0].mxu0 %v2327
      %v2424 = vpop.f32.mrb[0].mxu0
      %v2425 = vadd.f32 0.0, %v2424
      %v2426 = vpop.f32.mrb[0].mxu0
      %2427 = vmatprep.mubr.f32.mxu0 0.0
      %2428 = vmatmul.mubr.f32.gmra.mrb[0].mxu0 %v2330
      %v2429 = vpop.f32.mrb[0].mxu0
      %v2430 = vadd.f32 0.0, %v2429
      %v2431 = vpop.f32.mrb[0].mxu0
      %2432 = vmatprep.mubr.f32.mxu0 0.0
      %2433 = vmatmul.mubr.f32.gmra.mrb[0].mxu0 %v2333
      %v2434 = vpop.f32.mrb[0].mxu0
      %v2435 = vadd.f32 0.0, %v2434
      %v2436 = vpop.f32.mrb[0].mxu0
      %2437 = vmatprep.mubr.f32.mxu0 0.0
      %2438 = vmatmul.mubr.f32.gmra.mrb[0].mxu0 %v2336
      %v2439 = vpop.f32.mrb[0].mxu0
      %v2440 = vadd.f32 0.0, %v2439
      %v2441 = vpop.f32.mrb[0].mxu0
      %2442 = vdwg.mxu0
      %v2443 = vadd.f32 %v2297, %v2405
      %v2444 = vadd.f32 %v2298, %v2410
      %v2445 = vadd.f32 %v2299, %v2415
      %v2446 = vadd.f32 %v2300, %v2420
      %v2447 = vadd.f32 %v2301, %v2425
      %v2448 = vadd.f32 %v2302, %v2430
      %v2449 = vadd.f32 %v2303, %v2435
      %v2450 = vadd.f32 %v2304, %v2440
      %v2451 = vld [vmem:[%s1728 + $0x2] sm:$0xff]
      %v2452 = vld [vmem:[%s1728 + $0x12] sm:$0xff]
      %v2453 = vld [vmem:[%s1728 + $0x22] sm:$0xff]
      %v2454 = vld [vmem:[%s1728 + $0x32] sm:$0xff]
      %v2455 = vld [vmem:[%s1728 + $0x42] sm:$0xff]
      %v2456 = vld [vmem:[%s1728 + $0x52] sm:$0xff]
      %v2457 = vld [vmem:[%s1728 + $0x62] sm:$0xff]
      %v2458 = vld [vmem:[%s1728 + $0x72] sm:$0xff]
      %v2459 = vld [vmem:[%s3 + $0x28] sm:$0xff]
      %v2461 = vsel %vm1700, %v2451, 0
      %v2464 = vsel %vm1700, %v2452, 0
      %v2467 = vsel %vm1700, %v2453, 0
      %v2470 = vsel %vm1700, %v2454, 0
      %v2473 = vsel %vm1700, %v2455, 0
      %v2476 = vsel %vm1700, %v2456, 0
      %v2479 = vsel %vm1700, %v2457, 0
      %v2482 = vsel %vm1700, %v2458, 0
      %2484 = vmatprep.subr.mxu0 0.0
      %2485 = vmatpush1.msra.mxu0 %v2459
      %2486 = vmatprep.subr.mxu0 0.0
      %2487 = vmatpush1.msra.mxu0 0.0
      %2488 = vmatprep.subr.mxu0 0.0
      %2489 = vmatpush1.msra.mxu0 0.0
      %2490 = vmatprep.subr.mxu0 0.0
      %2491 = vmatpush1.msra.mxu0 0.0
      %2492 = vmatprep.subr.mxu0 0.0
      %2493 = vmatpush1.msra.mxu0 0.0
      %2494 = vmatprep.subr.mxu0 0.0
      %2495 = vmatpush1.msra.mxu0 0.0
      %2496 = vmatprep.subr.mxu0 0.0
      %2497 = vmatpush1.msra.mxu0 0.0
      %2498 = vmatprep.subr.mxu0 0.0
      %2499 = vmatpush1.msra.mxu0 0.0
      %2500 = vmatprep.subr.mxu0 0.0
      %2501 = vmatpush1.msra.mxu0 0.0
      %2502 = vmatprep.subr.mxu0 0.0
      %2503 = vmatpush1.msra.mxu0 0.0
      %2504 = vmatprep.subr.mxu0 0.0
      %2505 = vmatpush1.msra.mxu0 0.0
      %2506 = vmatprep.subr.mxu0 0.0
      %2507 = vmatpush1.msra.mxu0 0.0
      %2508 = vmatprep.subr.mxu0 0.0
      %2509 = vmatpush1.msra.mxu0 0.0
      %2510 = vmatprep.subr.mxu0 0.0
      %2511 = vmatpush1.msra.mxu0 0.0
      %2512 = vmatprep.subr.mxu0 0.0
      %2513 = vmatpush1.msra.mxu0 0.0
      %2514 = vmatprep.subr.mxu0 0.0
      %2515 = vmatpush1.msra.mxu0 0.0
      %2516 = vmatprep.subr.mxu0 0.0
      %2517 = vmatpush1.msra.mxu0 0.0
      %2518 = vmatprep.subr.mxu0 0.0
      %2519 = vmatpush1.msra.mxu0 0.0
      %2520 = vmatprep.subr.mxu0 0.0
      %2521 = vmatpush1.msra.mxu0 0.0
      %2522 = vmatprep.subr.mxu0 0.0
      %2523 = vmatpush1.msra.mxu0 0.0
      %2524 = vmatprep.subr.mxu0 0.0
      %2525 = vmatpush1.msra.mxu0 0.0
      %2526 = vmatprep.subr.mxu0 0.0
      %2527 = vmatpush1.msra.mxu0 0.0
      %2528 = vmatprep.subr.mxu0 0.0
      %2529 = vmatpush1.msra.mxu0 0.0
      %2530 = vmatprep.subr.mxu0 0.0
      %2531 = vmatpush1.msra.mxu0 0.0
      %2532 = vmatprep.subr.mxu0 0.0
      %2533 = vmatpush1.msra.mxu0 0.0
      %2534 = vmatprep.subr.mxu0 0.0
      %2535 = vmatpush1.msra.mxu0 0.0
      %2536 = vmatprep.subr.mxu0 0.0
      %2537 = vmatpush1.msra.mxu0 0.0
      %2538 = vmatprep.subr.mxu0 0.0
      %2539 = vmatpush1.msra.mxu0 0.0
      %2540 = vmatprep.subr.mxu0 0.0
      %2541 = vmatpush1.msra.mxu0 0.0
      %2542 = vmatprep.subr.mxu0 0.0
      %2543 = vmatpush1.msra.mxu0 0.0
      %2544 = vmatprep.subr.mxu0 0.0
      %2545 = vmatpush1.msra.mxu0 0.0
      %2546 = vmatprep.subr.mxu0 0.0
      %2547 = vmatpush1.msra.mxu0 0.0
      %2548 = vmatprep.mubr.f32.mxu0 0.0
      %2549 = vmatmul.mubr.f32.gmra.mrb[0].mxu0 %v2461
      %v2550 = vpop.f32.mrb[0].mxu0
      %v2551 = vadd.f32 0.0, %v2550
      %v2552 = vpop.f32.mrb[0].mxu0
      %2553 = vmatprep.mubr.f32.mxu0 0.0
      %2554 = vmatmul.mubr.f32.gmra.mrb[0].mxu0 %v2464
      %v2555 = vpop.f32.mrb[0].mxu0
      %v2556 = vadd.f32 0.0, %v2555
      %v2557 = vpop.f32.mrb[0].mxu0
      %2558 = vmatprep.mubr.f32.mxu0 0.0
      %2559 = vmatmul.mubr.f32.gmra.mrb[0].mxu0 %v2467
      %v2560 = vpop.f32.mrb[0].mxu0
      %v2561 = vadd.f32 0.0, %v2560
      %v2562 = vpop.f32.mrb[0].mxu0
      %2563 = vmatprep.mubr.f32.mxu0 0.0
      %2564 = vmatmul.mubr.f32.gmra.mrb[0].mxu0 %v2470
      %v2565 = vpop.f32.mrb[0].mxu0
      %v2566 = vadd.f32 0.0, %v2565
      %v2567 = vpop.f32.mrb[0].mxu0
      %2568 = vmatprep.mubr.f32.mxu0 0.0
      %2569 = vmatmul.mubr.f32.gmra.mrb[0].mxu0 %v2473
      %v2570 = vpop.f32.mrb[0].mxu0
      %v2571 = vadd.f32 0.0, %v2570
      %v2572 = vpop.f32.mrb[0].mxu0
      %2573 = vmatprep.mubr.f32.mxu0 0.0
      %2574 = vmatmul.mubr.f32.gmra.mrb[0].mxu0 %v2476
      %v2575 = vpop.f32.mrb[0].mxu0
      %v2576 = vadd.f32 0.0, %v2575
      %v2577 = vpop.f32.mrb[0].mxu0
      %2578 = vmatprep.mubr.f32.mxu0 0.0
      %2579 = vmatmul.mubr.f32.gmra.mrb[0].mxu0 %v2479
      %v2580 = vpop.f32.mrb[0].mxu0
      %v2581 = vadd.f32 0.0, %v2580
      %v2582 = vpop.f32.mrb[0].mxu0
      %2583 = vmatprep.mubr.f32.mxu0 0.0
      %2584 = vmatmul.mubr.f32.gmra.mrb[0].mxu0 %v2482
      %v2585 = vpop.f32.mrb[0].mxu0
      %v2586 = vadd.f32 0.0, %v2585
      %v2587 = vpop.f32.mrb[0].mxu0
      %2588 = vdwg.mxu0
      %v2589 = vadd.f32 %v2443, %v2551
      %v2590 = vadd.f32 %v2444, %v2556
      %v2591 = vadd.f32 %v2445, %v2561
      %v2592 = vadd.f32 %v2446, %v2566
      %v2593 = vadd.f32 %v2447, %v2571
      %v2594 = vadd.f32 %v2448, %v2576
      %v2595 = vadd.f32 %v2449, %v2581
      %v2596 = vadd.f32 %v2450, %v2586
      %s2597 = scalar_lea.vmem [#allocation3], 32
      %v2598 = vld [vmem:[%s2597] sm:$0xff]
      %v2599 = vld [vmem:[%s2597 + $0x10] sm:$0xff]
      %v2600 = vld [vmem:[%s2597 + $0x20] sm:$0xff]
      %v2601 = vld [vmem:[%s2597 + $0x30] sm:$0xff]
      %v2602 = vld [vmem:[%s2597 + $0x40] sm:$0xff]
      %v2603 = vld [vmem:[%s2597 + $0x50] sm:$0xff]
      %v2604 = vld [vmem:[%s2597 + $0x60] sm:$0xff]
      %v2605 = vld [vmem:[%s2597 + $0x70] sm:$0xff]
      %v2606 = vld [vmem:[%s3 + $0x30] sm:$0xff]
      %v2608 = vsel %vm1700, %v2598, 0
      %v2611 = vsel %vm1700, %v2599, 0
      %v2614 = vsel %vm1700, %v2600, 0
      %v2617 = vsel %vm1700, %v2601, 0
      %v2620 = vsel %vm1700, %v2602, 0
      %v2623 = vsel %vm1700, %v2603, 0
      %v2626 = vsel %vm1700, %v2604, 0
      %v2629 = vsel %vm1700, %v2605, 0
      %2631 = vmatprep.subr.mxu0 0.0
      %2632 = vmatpush1.msra.mxu0 %v2606
      %2633 = vmatprep.subr.mxu0 0.0
      %2634 = vmatpush1.msra.mxu0 0.0
      %2635 = vmatprep.subr.mxu0 0.0
      %2636 = vmatpush1.msra.mxu0 0.0
      %2637 = vmatprep.subr.mxu0 0.0
      %2638 = vmatpush1.msra.mxu0 0.0
      %2639 = vmatprep.subr.mxu0 0.0
      %2640 = vmatpush1.msra.mxu0 0.0
      %2641 = vmatprep.subr.mxu0 0.0
      %2642 = vmatpush1.msra.mxu0 0.0
      %2643 = vmatprep.subr.mxu0 0.0
      %2644 = vmatpush1.msra.mxu0 0.0
      %2645 = vmatprep.subr.mxu0 0.0
      %2646 = vmatpush1.msra.mxu0 0.0
      %2647 = vmatprep.subr.mxu0 0.0
      %2648 = vmatpush1.msra.mxu0 0.0
      %2649 = vmatprep.subr.mxu0 0.0
      %2650 = vmatpush1.msra.mxu0 0.0
      %2651 = vmatprep.subr.mxu0 0.0
      %2652 = vmatpush1.msra.mxu0 0.0
      %2653 = vmatprep.subr.mxu0 0.0
      %2654 = vmatpush1.msra.mxu0 0.0
      %2655 = vmatprep.subr.mxu0 0.0
      %2656 = vmatpush1.msra.mxu0 0.0
      %2657 = vmatprep.subr.mxu0 0.0
      %2658 = vmatpush1.msra.mxu0 0.0
      %2659 = vmatprep.subr.mxu0 0.0
      %2660 = vmatpush1.msra.mxu0 0.0
      %2661 = vmatprep.subr.mxu0 0.0
      %2662 = vmatpush1.msra.mxu0 0.0
      %2663 = vmatprep.subr.mxu0 0.0
      %2664 = vmatpush1.msra.mxu0 0.0
      %2665 = vmatprep.subr.mxu0 0.0
      %2666 = vmatpush1.msra.mxu0 0.0
      %2667 = vmatprep.subr.mxu0 0.0
      %2668 = vmatpush1.msra.mxu0 0.0
      %2669 = vmatprep.subr.mxu0 0.0
      %2670 = vmatpush1.msra.mxu0 0.0
      %2671 = vmatprep.subr.mxu0 0.0
      %2672 = vmatpush1.msra.mxu0 0.0
      %2673 = vmatprep.subr.mxu0 0.0
      %2674 = vmatpush1.msra.mxu0 0.0
      %2675 = vmatprep.subr.mxu0 0.0
      %2676 = vmatpush1.msra.mxu0 0.0
      %2677 = vmatprep.subr.mxu0 0.0
      %2678 = vmatpush1.msra.mxu0 0.0
      %2679 = vmatprep.subr.mxu0 0.0
      %2680 = vmatpush1.msra.mxu0 0.0
      %2681 = vmatprep.subr.mxu0 0.0
      %2682 = vmatpush1.msra.mxu0 0.0
      %2683 = vmatprep.subr.mxu0 0.0
      %2684 = vmatpush1.msra.mxu0 0.0
      %2685 = vmatprep.subr.mxu0 0.0
      %2686 = vmatpush1.msra.mxu0 0.0
      %2687 = vmatprep.subr.mxu0 0.0
      %2688 = vmatpush1.msra.mxu0 0.0
      %2689 = vmatprep.subr.mxu0 0.0
      %2690 = vmatpush1.msra.mxu0 0.0
      %2691 = vmatprep.subr.mxu0 0.0
      %2692 = vmatpush1.msra.mxu0 0.0
      %2693 = vmatprep.subr.mxu0 0.0
      %2694 = vmatpush1.msra.mxu0 0.0
      %2695 = vmatprep.mubr.f32.mxu0 0.0
      %2696 = vmatmul.mubr.f32.gmra.mrb[0].mxu0 %v2608
      %v2697 = vpop.f32.mrb[0].mxu0
      %v2698 = vadd.f32 0.0, %v2697
      %v2699 = vpop.f32.mrb[0].mxu0
      %2700 = vmatprep.mubr.f32.mxu0 0.0
      %2701 = vmatmul.mubr.f32.gmra.mrb[0].mxu0 %v2611
      %v2702 = vpop.f32.mrb[0].mxu0
      %v2703 = vadd.f32 0.0, %v2702
      %v2704 = vpop.f32.mrb[0].mxu0
      %2705 = vmatprep.mubr.f32.mxu0 0.0
      %2706 = vmatmul.mubr.f32.gmra.mrb[0].mxu0 %v2614
      %v2707 = vpop.f32.mrb[0].mxu0
      %v2708 = vadd.f32 0.0, %v2707
      %v2709 = vpop.f32.mrb[0].mxu0
      %2710 = vmatprep.mubr.f32.mxu0 0.0
      %2711 = vmatmul.mubr.f32.gmra.mrb[0].mxu0 %v2617
      %v2712 = vpop.f32.mrb[0].mxu0
      %v2713 = vadd.f32 0.0, %v2712
      %v2714 = vpop.f32.mrb[0].mxu0
      %2715 = vmatprep.mubr.f32.mxu0 0.0
      %2716 = vmatmul.mubr.f32.gmra.mrb[0].mxu0 %v2620
      %v2717 = vpop.f32.mrb[0].mxu0
      %v2718 = vadd.f32 0.0, %v2717
      %v2719 = vpop.f32.mrb[0].mxu0
      %2720 = vmatprep.mubr.f32.mxu0 0.0
      %2721 = vmatmul.mubr.f32.gmra.mrb[0].mxu0 %v2623
      %v2722 = vpop.f32.mrb[0].mxu0
      %v2723 = vadd.f32 0.0, %v2722
      %v2724 = vpop.f32.mrb[0].mxu0
      %2725 = vmatprep.mubr.f32.mxu0 0.0
      %2726 = vmatmul.mubr.f32.gmra.mrb[0].mxu0 %v2626
      %v2727 = vpop.f32.mrb[0].mxu0
      %v2728 = vadd.f32 0.0, %v2727
      %v2729 = vpop.f32.mrb[0].mxu0
      %2730 = vmatprep.mubr.f32.mxu0 0.0
      %2731 = vmatmul.mubr.f32.gmra.mrb[0].mxu0 %v2629
      %v2732 = vpop.f32.mrb[0].mxu0
      %v2733 = vadd.f32 0.0, %v2732
      %v2734 = vpop.f32.mrb[0].mxu0
      %2735 = vdwg.mxu0
      %v2736 = vadd.f32 %v2589, %v2698
      %v2737 = vadd.f32 %v2590, %v2703
      %v2738 = vadd.f32 %v2591, %v2708
      %v2739 = vadd.f32 %v2592, %v2713
      %v2740 = vadd.f32 %v2593, %v2718
      %v2741 = vadd.f32 %v2594, %v2723
      %v2742 = vadd.f32 %v2595, %v2728
      %v2743 = vadd.f32 %v2596, %v2733
      %v2744 = vld [vmem:[%s2597 + $0x1] sm:$0xff]
      %v2745 = vld [vmem:[%s2597 + $0x11] sm:$0xff]
      %v2746 = vld [vmem:[%s2597 + $0x21] sm:$0xff]
      %v2747 = vld [vmem:[%s2597 + $0x31] sm:$0xff]
      %v2748 = vld [vmem:[%s2597 + $0x41] sm:$0xff]
      %v2749 = vld [vmem:[%s2597 + $0x51] sm:$0xff]
      %v2750 = vld [vmem:[%s2597 + $0x61] sm:$0xff]
      %v2751 = vld [vmem:[%s2597 + $0x71] sm:$0xff]
      %v2752 = vld [vmem:[%s3 + $0x38] sm:$0xff]
      %v2754 = vsel %vm1700, %v2744, 0
      %v2757 = vsel %vm1700, %v2745, 0
      %v2760 = vsel %vm1700, %v2746, 0
      %v2763 = vsel %vm1700, %v2747, 0
      %v2766 = vsel %vm1700, %v2748, 0
      %v2769 = vsel %vm1700, %v2749, 0
      %v2772 = vsel %vm1700, %v2750, 0
      %v2775 = vsel %vm1700, %v2751, 0
      %2777 = vmatprep.subr.mxu0 0.0
      %2778 = vmatpush1.msra.mxu0 %v2752
      %2779 = vmatprep.subr.mxu0 0.0
      %2780 = vmatpush1.msra.mxu0 0.0
      %2781 = vmatprep.subr.mxu0 0.0
      %2782 = vmatpush1.msra.mxu0 0.0
      %2783 = vmatprep.subr.mxu0 0.0
      %2784 = vmatpush1.msra.mxu0 0.0
      %2785 = vmatprep.subr.mxu0 0.0
      %2786 = vmatpush1.msra.mxu0 0.0
      %2787 = vmatprep.subr.mxu0 0.0
      %2788 = vmatpush1.msra.mxu0 0.0
      %2789 = vmatprep.subr.mxu0 0.0
      %2790 = vmatpush1.msra.mxu0 0.0
      %2791 = vmatprep.subr.mxu0 0.0
      %2792 = vmatpush1.msra.mxu0 0.0
      %2793 = vmatprep.subr.mxu0 0.0
      %2794 = vmatpush1.msra.mxu0 0.0
      %2795 = vmatprep.subr.mxu0 0.0
      %2796 = vmatpush1.msra.mxu0 0.0
      %2797 = vmatprep.subr.mxu0 0.0
      %2798 = vmatpush1.msra.mxu0 0.0
      %2799 = vmatprep.subr.mxu0 0.0
      %2800 = vmatpush1.msra.mxu0 0.0
      %2801 = vmatprep.subr.mxu0 0.0
      %2802 = vmatpush1.msra.mxu0 0.0
      %2803 = vmatprep.subr.mxu0 0.0
      %2804 = vmatpush1.msra.mxu0 0.0
      %2805 = vmatprep.subr.mxu0 0.0
      %2806 = vmatpush1.msra.mxu0 0.0
      %2807 = vmatprep.subr.mxu0 0.0
      %2808 = vmatpush1.msra.mxu0 0.0
      %2809 = vmatprep.subr.mxu0 0.0
      %2810 = vmatpush1.msra.mxu0 0.0
      %2811 = vmatprep.subr.mxu0 0.0
      %2812 = vmatpush1.msra.mxu0 0.0
      %2813 = vmatprep.subr.mxu0 0.0
      %2814 = vmatpush1.msra.mxu0 0.0
      %2815 = vmatprep.subr.mxu0 0.0
      %2816 = vmatpush1.msra.mxu0 0.0
      %2817 = vmatprep.subr.mxu0 0.0
      %2818 = vmatpush1.msra.mxu0 0.0
      %2819 = vmatprep.subr.mxu0 0.0
      %2820 = vmatpush1.msra.mxu0 0.0
      %2821 = vmatprep.subr.mxu0 0.0
      %2822 = vmatpush1.msra.mxu0 0.0
      %2823 = vmatprep.subr.mxu0 0.0
      %2824 = vmatpush1.msra.mxu0 0.0
      %2825 = vmatprep.subr.mxu0 0.0
      %2826 = vmatpush1.msra.mxu0 0.0
      %2827 = vmatprep.subr.mxu0 0.0
      %2828 = vmatpush1.msra.mxu0 0.0
      %2829 = vmatprep.subr.mxu0 0.0
      %2830 = vmatpush1.msra.mxu0 0.0
      %2831 = vmatprep.subr.mxu0 0.0
      %2832 = vmatpush1.msra.mxu0 0.0
      %2833 = vmatprep.subr.mxu0 0.0
      %2834 = vmatpush1.msra.mxu0 0.0
      %2835 = vmatprep.subr.mxu0 0.0
      %2836 = vmatpush1.msra.mxu0 0.0
      %2837 = vmatprep.subr.mxu0 0.0
      %2838 = vmatpush1.msra.mxu0 0.0
      %2839 = vmatprep.subr.mxu0 0.0
      %2840 = vmatpush1.msra.mxu0 0.0
      %2841 = vmatprep.mubr.f32.mxu0 0.0
      %2842 = vmatmul.mubr.f32.gmra.mrb[0].mxu0 %v2754
      %v2843 = vpop.f32.mrb[0].mxu0
      %v2844 = vadd.f32 0.0, %v2843
      %v2845 = vpop.f32.mrb[0].mxu0
      %2846 = vmatprep.mubr.f32.mxu0 0.0
      %2847 = vmatmul.mubr.f32.gmra.mrb[0].mxu0 %v2757
      %v2848 = vpop.f32.mrb[0].mxu0
      %v2849 = vadd.f32 0.0, %v2848
      %v2850 = vpop.f32.mrb[0].mxu0
      %2851 = vmatprep.mubr.f32.mxu0 0.0
      %2852 = vmatmul.mubr.f32.gmra.mrb[0].mxu0 %v2760
      %v2853 = vpop.f32.mrb[0].mxu0
      %v2854 = vadd.f32 0.0, %v2853
      %v2855 = vpop.f32.mrb[0].mxu0
      %2856 = vmatprep.mubr.f32.mxu0 0.0
      %2857 = vmatmul.mubr.f32.gmra.mrb[0].mxu0 %v2763
      %v2858 = vpop.f32.mrb[0].mxu0
      %v2859 = vadd.f32 0.0, %v2858
      %v2860 = vpop.f32.mrb[0].mxu0
      %2861 = vmatprep.mubr.f32.mxu0 0.0
      %2862 = vmatmul.mubr.f32.gmra.mrb[0].mxu0 %v2766
      %v2863 = vpop.f32.mrb[0].mxu0
      %v2864 = vadd.f32 0.0, %v2863
      %v2865 = vpop.f32.mrb[0].mxu0
      %2866 = vmatprep.mubr.f32.mxu0 0.0
      %2867 = vmatmul.mubr.f32.gmra.mrb[0].mxu0 %v2769
      %v2868 = vpop.f32.mrb[0].mxu0
      %v2869 = vadd.f32 0.0, %v2868
      %v2870 = vpop.f32.mrb[0].mxu0
      %2871 = vmatprep.mubr.f32.mxu0 0.0
      %2872 = vmatmul.mubr.f32.gmra.mrb[0].mxu0 %v2772
      %v2873 = vpop.f32.mrb[0].mxu0
      %v2874 = vadd.f32 0.0, %v2873
      %v2875 = vpop.f32.mrb[0].mxu0
      %2876 = vmatprep.mubr.f32.mxu0 0.0
      %2877 = vmatmul.mubr.f32.gmra.mrb[0].mxu0 %v2775
      %v2878 = vpop.f32.mrb[0].mxu0
      %v2879 = vadd.f32 0.0, %v2878
      %v2880 = vpop.f32.mrb[0].mxu0
      %2881 = vdwg.mxu0
      %v2882 = vadd.f32 %v2736, %v2844
      %v2883 = vadd.f32 %v2737, %v2849
      %v2884 = vadd.f32 %v2738, %v2854
      %v2885 = vadd.f32 %v2739, %v2859
      %v2886 = vadd.f32 %v2740, %v2864
      %v2887 = vadd.f32 %v2741, %v2869
      %v2888 = vadd.f32 %v2742, %v2874
      %v2889 = vadd.f32 %v2743, %v2879
      %v2890 = vld [vmem:[%s2597 + $0x2] sm:$0xff]
      %v2891 = vld [vmem:[%s2597 + $0x12] sm:$0xff]
      %v2892 = vld [vmem:[%s2597 + $0x22] sm:$0xff]
      %v2893 = vld [vmem:[%s2597 + $0x32] sm:$0xff]
      %v2894 = vld [vmem:[%s2597 + $0x42] sm:$0xff]
      %v2895 = vld [vmem:[%s2597 + $0x52] sm:$0xff]
      %v2896 = vld [vmem:[%s2597 + $0x62] sm:$0xff]
      %v2897 = vld [vmem:[%s2597 + $0x72] sm:$0xff]
      %v2898 = vld [vmem:[%s3 + $0x40] sm:$0xff]
      %v2900 = vsel %vm1700, %v2890, 0
      %v2903 = vsel %vm1700, %v2891, 0
      %v2906 = vsel %vm1700, %v2892, 0
      %v2909 = vsel %vm1700, %v2893, 0
      %v2912 = vsel %vm1700, %v2894, 0
      %v2915 = vsel %vm1700, %v2895, 0
      %v2918 = vsel %vm1700, %v2896, 0
      %v2921 = vsel %vm1700, %v2897, 0
      %2923 = vmatprep.subr.mxu0 0.0
      %2924 = vmatpush1.msra.mxu0 %v2898
      %2925 = vmatprep.subr.mxu0 0.0
      %2926 = vmatpush1.msra.mxu0 0.0
      %2927 = vmatprep.subr.mxu0 0.0
      %2928 = vmatpush1.msra.mxu0 0.0
      %2929 = vmatprep.subr.mxu0 0.0
      %2930 = vmatpush1.msra.mxu0 0.0
      %2931 = vmatprep.subr.mxu0 0.0
      %2932 = vmatpush1.msra.mxu0 0.0
      %2933 = vmatprep.subr.mxu0 0.0
      %2934 = vmatpush1.msra.mxu0 0.0
      %2935 = vmatprep.subr.mxu0 0.0
      %2936 = vmatpush1.msra.mxu0 0.0
      %2937 = vmatprep.subr.mxu0 0.0
      %2938 = vmatpush1.msra.mxu0 0.0
      %2939 = vmatprep.subr.mxu0 0.0
      %2940 = vmatpush1.msra.mxu0 0.0
      %2941 = vmatprep.subr.mxu0 0.0
      %2942 = vmatpush1.msra.mxu0 0.0
      %2943 = vmatprep.subr.mxu0 0.0
      %2944 = vmatpush1.msra.mxu0 0.0
      %2945 = vmatprep.subr.mxu0 0.0
      %2946 = vmatpush1.msra.mxu0 0.0
      %2947 = vmatprep.subr.mxu0 0.0
      %2948 = vmatpush1.msra.mxu0 0.0
      %2949 = vmatprep.subr.mxu0 0.0
      %2950 = vmatpush1.msra.mxu0 0.0
      %2951 = vmatprep.subr.mxu0 0.0
      %2952 = vmatpush1.msra.mxu0 0.0
      %2953 = vmatprep.subr.mxu0 0.0
      %2954 = vmatpush1.msra.mxu0 0.0
      %2955 = vmatprep.subr.mxu0 0.0
      %2956 = vmatpush1.msra.mxu0 0.0
      %2957 = vmatprep.subr.mxu0 0.0
      %2958 = vmatpush1.msra.mxu0 0.0
      %2959 = vmatprep.subr.mxu0 0.0
      %2960 = vmatpush1.msra.mxu0 0.0
      %2961 = vmatprep.subr.mxu0 0.0
      %2962 = vmatpush1.msra.mxu0 0.0
      %2963 = vmatprep.subr.mxu0 0.0
      %2964 = vmatpush1.msra.mxu0 0.0
      %2965 = vmatprep.subr.mxu0 0.0
      %2966 = vmatpush1.msra.mxu0 0.0
      %2967 = vmatprep.subr.mxu0 0.0
      %2968 = vmatpush1.msra.mxu0 0.0
      %2969 = vmatprep.subr.mxu0 0.0
      %2970 = vmatpush1.msra.mxu0 0.0
      %2971 = vmatprep.subr.mxu0 0.0
      %2972 = vmatpush1.msra.mxu0 0.0
      %2973 = vmatprep.subr.mxu0 0.0
      %2974 = vmatpush1.msra.mxu0 0.0
      %2975 = vmatprep.subr.mxu0 0.0
      %2976 = vmatpush1.msra.mxu0 0.0
      %2977 = vmatprep.subr.mxu0 0.0
      %2978 = vmatpush1.msra.mxu0 0.0
      %2979 = vmatprep.subr.mxu0 0.0
      %2980 = vmatpush1.msra.mxu0 0.0
      %2981 = vmatprep.subr.mxu0 0.0
      %2982 = vmatpush1.msra.mxu0 0.0
      %2983 = vmatprep.subr.mxu0 0.0
      %2984 = vmatpush1.msra.mxu0 0.0
      %2985 = vmatprep.subr.mxu0 0.0
      %2986 = vmatpush1.msra.mxu0 0.0
      %2987 = vmatprep.mubr.f32.mxu0 0.0
      %2988 = vmatmul.mubr.f32.gmra.mrb[0].mxu0 %v2900
      %v2989 = vpop.f32.mrb[0].mxu0
      %v2990 = vadd.f32 0.0, %v2989
      %v2991 = vpop.f32.mrb[0].mxu0
      %2992 = vmatprep.mubr.f32.mxu0 0.0
      %2993 = vmatmul.mubr.f32.gmra.mrb[0].mxu0 %v2903
      %v2994 = vpop.f32.mrb[0].mxu0
      %v2995 = vadd.f32 0.0, %v2994
      %v2996 = vpop.f32.mrb[0].mxu0
      %2997 = vmatprep.mubr.f32.mxu0 0.0
      %2998 = vmatmul.mubr.f32.gmra.mrb[0].mxu0 %v2906
      %v2999 = vpop.f32.mrb[0].mxu0
      %v3000 = vadd.f32 0.0, %v2999
      %v3001 = vpop.f32.mrb[0].mxu0
      %3002 = vmatprep.mubr.f32.mxu0 0.0
      %3003 = vmatmul.mubr.f32.gmra.mrb[0].mxu0 %v2909
      %v3004 = vpop.f32.mrb[0].mxu0
      %v3005 = vadd.f32 0.0, %v3004
      %v3006 = vpop.f32.mrb[0].mxu0
      %3007 = vmatprep.mubr.f32.mxu0 0.0
      %3008 = vmatmul.mubr.f32.gmra.mrb[0].mxu0 %v2912
      %v3009 = vpop.f32.mrb[0].mxu0
      %v3010 = vadd.f32 0.0, %v3009
      %v3011 = vpop.f32.mrb[0].mxu0
      %3012 = vmatprep.mubr.f32.mxu0 0.0
      %3013 = vmatmul.mubr.f32.gmra.mrb[0].mxu0 %v2915
      %v3014 = vpop.f32.mrb[0].mxu0
      %v3015 = vadd.f32 0.0, %v3014
      %v3016 = vpop.f32.mrb[0].mxu0
      %3017 = vmatprep.mubr.f32.mxu0 0.0
      %3018 = vmatmul.mubr.f32.gmra.mrb[0].mxu0 %v2918
      %v3019 = vpop.f32.mrb[0].mxu0
      %v3020 = vadd.f32 0.0, %v3019
      %v3021 = vpop.f32.mrb[0].mxu0
      %3022 = vmatprep.mubr.f32.mxu0 0.0
      %3023 = vmatmul.mubr.f32.gmra.mrb[0].mxu0 %v2921
      %v3024 = vpop.f32.mrb[0].mxu0
      %v3025 = vadd.f32 0.0, %v3024
      %v3026 = vpop.f32.mrb[0].mxu0
      %3027 = vdwg.mxu0
      %v3028 = vadd.f32 %v2882, %v2990
      %v3029 = vadd.f32 %v2883, %v2995
      %v3030 = vadd.f32 %v2884, %v3000
      %v3031 = vadd.f32 %v2885, %v3005
      %v3032 = vadd.f32 %v2886, %v3010
      %v3033 = vadd.f32 %v2887, %v3015
      %v3034 = vadd.f32 %v2888, %v3020
      %v3035 = vadd.f32 %v2889, %v3025
      %v3036 = vld [vmem:[%s4] sm:$0x1]
      %v3038 = vlaneseq
      %v3039 = vshrl.u32 %v3038, 7
      %v3040 = vsub.s32 0, %v3039
      %v3041 = vrot.slane %v3036, %v3040
      %v3043 = vadd.f32 %v3028, %v3041
      %v3044 = vadd.f32 %v3029, %v3041
      %v3045 = vadd.f32 %v3030, %v3041
      %v3046 = vadd.f32 %v3031, %v3041
      %v3047 = vadd.f32 %v3032, %v3041
      %v3048 = vadd.f32 %v3033, %v3041
      %v3049 = vadd.f32 %v3034, %v3041
      %v3050 = vadd.f32 %v3035, %v3041
      %v3051 = vmax.f32 %v3043, 0.0
      %v3052 = vmax.f32 %v3044, 0.0
      %v3053 = vmax.f32 %v3045, 0.0
      %v3054 = vmax.f32 %v3046, 0.0
      %v3055 = vmax.f32 %v3047, 0.0
      %v3056 = vmax.f32 %v3048, 0.0
      %v3057 = vmax.f32 %v3049, 0.0
      %v3058 = vmax.f32 %v3050, 0.0
      %3059 = vst.msk [vmem:[%s224] sm:$0xff] %vm1700, %v3051
      %3060 = vst.msk [vmem:[%s224 + $0x8] sm:$0xff] %vm1700, %v3052
      %3061 = vst.msk [vmem:[%s224 + $0x10] sm:$0xff] %vm1700, %v3053
      %3062 = vst.msk [vmem:[%s224 + $0x18] sm:$0xff] %vm1700, %v3054
      %3063 = vst.msk [vmem:[%s224 + $0x20] sm:$0xff] %vm1700, %v3055
      %3064 = vst.msk [vmem:[%s224 + $0x28] sm:$0xff] %vm1700, %v3056
      %3065 = vst.msk [vmem:[%s224 + $0x30] sm:$0xff] %vm1700, %v3057
      %3066 = vst.msk [vmem:[%s224 + $0x38] sm:$0xff] %vm1700, %v3058
      %s3067 = smul.u32 8, %s16
      %p3068 = scmp.lt.s32.totalorder %s3067, 15
      %s3069 = scalar_select %p3068, %s3067, 15
      %s3070 = smul.addr %s3069, 8
      %s3071 = scalar_lea.vmem %s5, %s3070
      // Predicated region
      $region41: #{down_forward.1} parent=39 // pred_check
        %p3072 = pneg %p144
      $region42: #{down_forward.1} parent=39 // pred_check_branch
        %3074 = sbr.rel (%p3072) target = $region44
      $region43: #{down_forward.1} parent=39 // pred_region
        %s3075 = smul.u32 8, %s16
      $region44: #{down_forward.1} parent=39 // pred_fallthru
        _
    $region40: #{down_forward.1} parent=5 // pred_fallthru
      _
    %p3076 = scmp.le.s32.totalorder 2, %s11
    // Predicated region
    $region45: #{down_forward.1} parent=5 // pred_check
      %p3077 = pneg %p3076
    $region46: #{down_forward.1} parent=5 // pred_check_branch
      %3079 = sbr.rel (%p3077) target = $region48
    $region47: #{down_forward.1} parent=5 // pred_region
      %s3080 = ssub.s32 %s11, 2
      // Predicated region
      $region49: #{down_forward.1} parent=47 // pred_check
        %p3081 = pneg %p150
      $region50: #{down_forward.1} parent=47 // pred_check_branch
        %3083 = sbr.rel (%p3081) target = $region52
      $region51: #{down_forward.1} parent=47 // pred_region
        %s3084 = smul.u32 8, %s17
        %p3085 = scmp.lt.s32.totalorder %s3084, 15
        %s3086 = scalar_select %p3085, %s3084, 15
        %s3087 = smul.addr %s3086, 8
        %s3088 = scalar_lea.vmem %s5, %s3087
      $region52: #{down_forward.1} parent=47 // pred_fallthru
        _
    $region48: #{down_forward.1} parent=5 // pred_fallthru
      _
  $region6: #{down_forward.1} parent=0 // loop_footer
    %s15 = sadd.s32 1, %s11
  $region7: #{down_forward.1} parent=0 // loop_footer_branch
    %10 = sbr.rel target = $region3
  $region8: #{down_forward.1} parent=0 // loop_exit
    _

</llo_original>
